<compile_context>
chip_gen: v6e
topology: v6e:2x2x1
jax: 0.10.0
libtpu: 0.0.40
codegen_flags: <defaults>
</compile_context>

<pallas_src>
import jax
import jax.numpy as jnp
from jax.experimental import pallas as pl
from jax.experimental.pallas import tpu as pltpu


_HEAD_PAD = 128  # lane-dense output width (col 0 = r1, col 1 = r2)


# ----------------------------------------------------------------------------
# Pallas kernel
# ----------------------------------------------------------------------------
def _make_rgprec_kernel(n_dev_fields: int, n_task_fields: int, vocab_dev: int,
                        hidden: int, n_deep: int, n_r: int):
    """Build a kernel for fixed field counts / tower depths.

    Ref order:
      dev_idx (TB, Fd) int32, task_idx (TB, Ft) int32,
      table (Vd+Vt, 2H) bf16 (block-diag [left; right]),
      [deep W(bf16), b(f32)] * n_deep,
      [fused-r W(bf16), b(f32)] * n_r,
      head W (d1+d2, 128) bf16 (block-diag, col0=r1p, col1=r2p), head b (1,128) f32,
      out (TB, 128) f32
    """

    def kernel(dev_ref, task_ref, tab_ref, *rest):
        out_ref = rest[-1]
        wb = rest[:-1]

        dev = dev_ref[...]                       # (TB, Fd) int32
        task = task_ref[...]                     # (TB, Ft) int32
        tb = dev.shape[0]
        vtot = tab_ref.shape[0]                  # Vd + Vt

        # --- fused embedding gather + field-sum via exact one-hot counts ----
        # counts accumulated as int32 (compare + add), single cast at the end.
        iota = jax.lax.broadcasted_iota(jnp.int32, (tb, vtot), 1)
        counts = (dev[:, 0:1] == iota).astype(jnp.int32)
        for f in range(1, n_dev_fields):
            counts = counts + (dev[:, f:f + 1] == iota).astype(jnp.int32)
        for f in range(n_task_fields):
            counts = counts + ((task[:, f:f + 1] + vocab_dev) == iota).astype(
                jnp.int32)

        # [sum_left | sum_right] = counts @ blockdiag(left_emb, right_emb)
        # bf16 operands (counts exact in bf16), f32 accumulate on the MXU.
        y = jnp.dot(counts.astype(jnp.bfloat16), tab_ref[...],
                    preferred_element_type=jnp.float32)     # (TB, 2H) f32
        sl = y[:, :hidden]
        sr = y[:, hidden:]

        # csmf = summed_all + summed_left * summed_right  (f32 elementwise)
        x = sl + sr + sl * sr

        def dense_relu(h, w_ref, b_ref):
            z = jnp.dot(h.astype(jnp.bfloat16), w_ref[...],
                        preferred_element_type=jnp.float32) + b_ref[...]
            return jnp.maximum(z, 0.0)

        p = 0
        # deep tower (Linear -> ReLU; Dropout identity in eval)
        for _ in range(n_deep):
            x = dense_relu(x, wb[p], wb[p + 1]); p += 2
        # fused [r1 | r2] tower (block-diagonal weights)
        r = x
        for _ in range(n_r):
            r = dense_relu(r, wb[p], wb[p + 1]); p += 2

        hw, hb = wb[p], wb[p + 1]
        # single lane-dense (TB, 128) slab: col 0 = r1 head, col 1 = r2 head
        slab = jnp.dot(r.astype(jnp.bfloat16), hw[...],
                       preferred_element_type=jnp.float32) + hb[...]
        out_ref[...] = slab.astype(out_ref.dtype)

    return kernel


# ----------------------------------------------------------------------------
# One-time parameter packing (outside the per-call wrapper)
# ----------------------------------------------------------------------------
def pack_params(params):
    """Pack/fuse weights once: bf16 casts, block-diag embedding table, fused
    r1/r2 tower weights, block-diag (d1+d2, 128) head."""
    bf16 = jnp.bfloat16
    f32 = jnp.float32
    H = params["left_emb"].shape[1]
    Vd = params["left_emb"].shape[0]
    Vt = params["right_emb"].shape[0]

    # block-diagonal [left; right] embedding table, bf16
    tab = jnp.zeros((Vd + Vt, 2 * H), f32)
    tab = tab.at[:Vd, :H].set(params["left_emb"])
    tab = tab.at[Vd:, H:].set(params["right_emb"])
    tab = tab.astype(bf16)

    weights = []
    for w, b in zip(params["deep_w"], params["deep_b"]):
        weights += [w.astype(bf16), b.astype(f32)]

    # Fuse the r1/r2 towers.  If depths differ, pad the shorter tower with
    # identity layers (ReLU of a non-negative identity pass-through is exact).
    r1 = list(zip(params["r1_w"], params["r1_b"]))
    r2 = list(zip(params["r2_w"], params["r2_b"]))
    depth = max(len(r1), len(r2))

    def _pad(tower):
        tower = list(tower)
        while len(tower) < depth:
            d = tower[-1][0].shape[1]
            tower.append((jnp.eye(d, dtype=f32), jnp.zeros((1, d), f32)))
        return tower

    r1, r2 = _pad(r1), _pad(r2)
    for li in range(depth):
        w1, b1 = r1[li]
        w2, b2 = r2[li]
        if li == 0:
            w = jnp.concatenate([w1, w2], axis=1)         # shared input x
        else:
            d1i, d1o = w1.shape
            d2i, d2o = w2.shape
            w = jnp.zeros((d1i + d2i, d1o + d2o), f32)
            w = w.at[:d1i, :d1o].set(w1).at[d1i:, d1o:].set(w2)
        b = jnp.concatenate([b1, b2], axis=1)
        weights += [w.astype(bf16), b.astype(f32)]

    d1 = r1[-1][0].shape[1]
    d2 = r2[-1][0].shape[1]
    hw = jnp.zeros((d1 + d2, _HEAD_PAD), f32)
    hw = hw.at[:d1, 0:1].set(params["r1p_w"]).at[d1:, 1:2].set(params["r2p_w"])
    hb = jnp.zeros((1, _HEAD_PAD), f32)
    hb = hb.at[:, 0:1].set(params["r1p_b"]).at[:, 1:2].set(params["r2p_b"])
    weights += [hw.astype(bf16), hb]

    return {
        "table": tab,
        "weights": tuple(weights),
        "meta": dict(H=H, Vd=Vd, Vt=Vt, n_deep=len(params["deep_w"]),
                     n_r=depth),
    }


# ----------------------------------------------------------------------------
# Wrapper
# ----------------------------------------------------------------------------
def rgprec_forward_pallas(dev_features, task_features, packed, *, block_b=256):
    """Fused RGPRecA forward (eval): embedding gather/sum + MLP towers + heads.

    On v5e/v6e a larger block_b (512-1024) amortizes grid overhead; on v7x keep
    the grid at an even number of >=2 steps so the two TensorCores split it.
    """
    B, Fd = dev_features.shape
    Ft = task_features.shape[1]
    meta = packed["meta"]

    n_blocks = pl.cdiv(B, block_b)
    B_pad = n_blocks * block_b
    dev = dev_features.astype(jnp.int32)
    task = task_features.astype(jnp.int32)
    if B_pad != B:
        dev = jnp.pad(dev, ((0, B_pad - B), (0, 0)))      # index 0 is valid
        task = jnp.pad(task, ((0, B_pad - B), (0, 0)))

    weight_inputs = [packed["table"], *packed["weights"]]

    kernel = _make_rgprec_kernel(Fd, Ft, meta["Vd"], meta["H"],
                                 meta["n_deep"], meta["n_r"])

    dev_spec = pl.BlockSpec((block_b, Fd), lambda i: (i, 0))
    task_spec = pl.BlockSpec((block_b, Ft), lambda i: (i, 0))

    def resident_spec(arr):
        nd = arr.ndim
        return pl.BlockSpec(arr.shape, lambda i, _nd=nd: (0,) * _nd)

    in_specs = [dev_spec, task_spec] + [resident_spec(a) for a in weight_inputs]
    out_spec = pl.BlockSpec((block_b, _HEAD_PAD), lambda i: (i, 0))

    out = pl.pallas_call(
        kernel,
        grid=(n_blocks,),
        out_shape=jax.ShapeDtypeStruct((B_pad, _HEAD_PAD), jnp.float32),
        in_specs=in_specs,
        out_specs=out_spec,
        compiler_params=pltpu.CompilerParams(
            dimension_semantics=("parallel",),           # megacore on v7x
            vmem_limit_bytes=32 * 1024 * 1024,            # v7x-safe, plenty
        ),
    )(dev, task, *weight_inputs)

    r1 = out[:B, 0:1]
    r2 = out[:B, 1:2]
    return r1, r2


# ----------------------------------------------------------------------------
# Parameter init / pure-JAX reference
# ----------------------------------------------------------------------------
def init_params(key, hidden_factor, layers, layers_r1, layers_r2,
                features_M_dev, features_M_task_rows):
    keys = iter(jax.random.split(key, 64))

    def linear(in_dim, out_dim):
        bound = 1.0 / jnp.sqrt(in_dim)
        w = jax.random.uniform(next(keys), (in_dim, out_dim),
                               minval=-bound, maxval=bound, dtype=jnp.float32)
        b = jax.random.uniform(next(keys), (1, out_dim),
                               minval=-bound, maxval=bound, dtype=jnp.float32)
        return w, b

    params = {}
    params["left_emb"] = jax.random.normal(
        next(keys), (features_M_dev, hidden_factor), dtype=jnp.float32)
    params["right_emb"] = jax.random.normal(
        next(keys), (features_M_task_rows, hidden_factor), dtype=jnp.float32)

    deep_w, deep_b = [], []
    prev = hidden_factor
    for sz in layers:
        w, b = linear(prev, sz)
        deep_w.append(w); deep_b.append(b); prev = sz
    params["deep_w"], params["deep_b"] = deep_w, deep_b

    r1_w, r1_b = [], []
    prev = layers[-1]
    for sz in layers_r1:
        w, b = linear(prev, sz)
        r1_w.append(w); r1_b.append(b); prev = sz
    params["r1_w"], params["r1_b"] = r1_w, r1_b
    params["r1p_w"], params["r1p_b"] = linear(layers_r1[-1], 1)

    r2_w, r2_b = [], []
    prev = layers[-1]
    for sz in layers_r2:
        w, b = linear(prev, sz)
        r2_w.append(w); r2_b.append(b); prev = sz
    params["r2_w"], params["r2_b"] = r2_w, r2_b
    params["r2p_w"], params["r2p_b"] = linear(layers_r2[-1], 1)
    return params


def reference_forward(params, dev_features, task_features):
    """Pure-JAX f32 reference mirroring RGPRecA.forward (eval mode, no BN)."""
    hp = jax.lax.Precision.HIGHEST
    sl = jnp.sum(params["left_emb"][dev_features], axis=1)
    sr = jnp.sum(params["right_emb"][task_features], axis=1)
    x = (sl + sr) + sl * sr
    for w, b in zip(params["deep_w"], params["deep_b"]):
        x = jnp.maximum(jnp.dot(x, w, precision=hp) + b, 0.0)
    r1 = x
    for w, b in zip(params["r1_w"], params["r1_b"]):
        r1 = jnp.maximum(jnp.dot(r1, w, precision=hp) + b, 0.0)
    r1 = jnp.dot(r1, params["r1p_w"], precision=hp) + params["r1p_b"]
    r2 = x
    for w, b in zip(params["r2_w"], params["r2_b"]):
        r2 = jnp.maximum(jnp.dot(r2, w, precision=hp) + b, 0.0)
    r2 = jnp.dot(r2, params["r2p_w"], precision=hp) + params["r2p_b"]
    return r1, r2


# ----------------------------------------------------------------------------
# Main
# ----------------------------------------------------------------------------
if __name__ == "__main__":
    # Module-consistent small config.  B=512 with a 256-row batch tile gives a
    # 2-step grid (pipeline + v7x megacore path exercised).
    B = 512               # batch
    H = 32                # hidden_factor
    layers = [64, 32]     # deep tower
    layers_r1 = [32]
    layers_r2 = [32]
    features_M_dev = 50
    features_M_task_rows = 40
    F_dev = 4             # dev feature fields
    F_task = 3            # task feature fields

    key = jax.random.PRNGKey(0)
    k_param, k_dev, k_task = jax.random.split(key, 3)

    params = init_params(k_param, H, layers, layers_r1, layers_r2,
                         features_M_dev, features_M_task_rows)
    packed = pack_params(params)   # one-time weight packing (outside the call)

    dev_features = jax.random.randint(k_dev, (B, F_dev), 0, features_M_dev,
                                      dtype=jnp.int32)
    task_features = jax.random.randint(k_task, (B, F_task), 0,
                                       features_M_task_rows, dtype=jnp.int32)

    r1, r2 = rgprec_forward_pallas(dev_features, task_features, packed,
                                   block_b=256)
    jax.block_until_ready((r1, r2))

    # Correctness check against the pure-f32 reference.  Kernel uses bf16
    # matmul operands (incl. embedding tables) with f32 accumulation, so
    # tolerances are loosened accordingly.
    r1_ref, r2_ref = reference_forward(params, dev_features, task_features)
    assert r1.shape == (B, 1) and r2.shape == (B, 1)
    assert jnp.allclose(r1, r1_ref, atol=1e-1, rtol=1e-1)
    assert jnp.allclose(r2, r2_ref, atol=1e-1, rtol=1e-1)

    print("KERNEL_OK")
</pallas_src>

<mosaic_0001>
module attributes {stable_mosaic.version = 11 : i64} {
  func.func @kernel(%arg0: i32, %arg1: memref<256x4xi32, #tpu.memory_space<vmem>>, %arg2: memref<256x3xi32, #tpu.memory_space<vmem>>, %arg3: memref<90x64xbf16, #tpu.memory_space<vmem>>, %arg4: memref<32x64xbf16, #tpu.memory_space<vmem>>, %arg5: memref<1x64xf32, #tpu.memory_space<vmem>>, %arg6: memref<64x32xbf16, #tpu.memory_space<vmem>>, %arg7: memref<1x32xf32, #tpu.memory_space<vmem>>, %arg8: memref<32x64xbf16, #tpu.memory_space<vmem>>, %arg9: memref<1x64xf32, #tpu.memory_space<vmem>>, %arg10: memref<64x128xbf16, #tpu.memory_space<vmem>>, %arg11: memref<1x128xf32, #tpu.memory_space<vmem>>, %arg12: memref<256x128xf32, #tpu.memory_space<vmem>>) attributes {dimension_semantics = [#tpu.dimension_semantics<parallel>], iteration_bounds = array<i64: 2>, scalar_prefetch = 0 : i64, scratch_operands = 0 : i64, tpu.core_type = #tpu.core_type<tc>, window_params = [{transform_indices = @transform_0, window_bounds = array<i64: 256, 4>}, {transform_indices = @transform_1, window_bounds = array<i64: 256, 3>}, {pipeline_mode = #tpu.pipeline_mode<synchronous>, transform_indices = @transform_2, window_bounds = array<i64: 90, 64>}, {pipeline_mode = #tpu.pipeline_mode<synchronous>, transform_indices = @transform_3, window_bounds = array<i64: 32, 64>}, {pipeline_mode = #tpu.pipeline_mode<synchronous>, transform_indices = @transform_4, window_bounds = array<i64: 1, 64>}, {pipeline_mode = #tpu.pipeline_mode<synchronous>, transform_indices = @transform_5, window_bounds = array<i64: 64, 32>}, {pipeline_mode = #tpu.pipeline_mode<synchronous>, transform_indices = @transform_6, window_bounds = array<i64: 1, 32>}, {pipeline_mode = #tpu.pipeline_mode<synchronous>, transform_indices = @transform_7, window_bounds = array<i64: 32, 64>}, {pipeline_mode = #tpu.pipeline_mode<synchronous>, transform_indices = @transform_8, window_bounds = array<i64: 1, 64>}, {pipeline_mode = #tpu.pipeline_mode<synchronous>, transform_indices = @transform_9, window_bounds = array<i64: 64, 128>}, {pipeline_mode = #tpu.pipeline_mode<synchronous>, transform_indices = @transform_10, window_bounds = array<i64: 1, 128>}, {transform_indices = @transform_11, window_bounds = array<i64: 256, 128>}]} {
    %c0 = arith.constant 0 : index
    %c0_0 = arith.constant 0 : index
    %0 = vector.load %arg1[%c0, %c0_0] : memref<256x4xi32, #tpu.memory_space<vmem>>, vector<256x4xi32>
    %c0_1 = arith.constant 0 : index
    %c0_2 = arith.constant 0 : index
    %1 = vector.load %arg2[%c0_1, %c0_2] : memref<256x3xi32, #tpu.memory_space<vmem>>, vector<256x3xi32>
    %2 = tpu.iota {dimensions = array<i32: 1>} : vector<256x90xi32>
    %3 = vector.extract_strided_slice %0 {offsets = [0, 0], sizes = [256, 1], strides = [1, 1]} : vector<256x4xi32> to vector<256x1xi32>
    %4 = vector.broadcast %3 : vector<256x1xi32> to vector<256x90xi32>
    %5 = arith.cmpi eq, %4, %2 : vector<256x90xi32>
    %6 = arith.extui %5 : vector<256x90xi1> to vector<256x90xi32>
    %7 = vector.extract_strided_slice %0 {offsets = [0, 1], sizes = [256, 1], strides = [1, 1]} : vector<256x4xi32> to vector<256x1xi32>
    %8 = vector.broadcast %7 : vector<256x1xi32> to vector<256x90xi32>
    %9 = arith.cmpi eq, %8, %2 : vector<256x90xi32>
    %10 = arith.extui %9 : vector<256x90xi1> to vector<256x90xi32>
    %11 = arith.addi %6, %10 : vector<256x90xi32>
    %12 = vector.extract_strided_slice %0 {offsets = [0, 2], sizes = [256, 1], strides = [1, 1]} : vector<256x4xi32> to vector<256x1xi32>
    %13 = vector.broadcast %12 : vector<256x1xi32> to vector<256x90xi32>
    %14 = arith.cmpi eq, %13, %2 : vector<256x90xi32>
    %15 = arith.extui %14 : vector<256x90xi1> to vector<256x90xi32>
    %16 = arith.addi %11, %15 : vector<256x90xi32>
    %17 = vector.extract_strided_slice %0 {offsets = [0, 3], sizes = [256, 1], strides = [1, 1]} : vector<256x4xi32> to vector<256x1xi32>
    %18 = vector.broadcast %17 : vector<256x1xi32> to vector<256x90xi32>
    %19 = arith.cmpi eq, %18, %2 : vector<256x90xi32>
    %20 = arith.extui %19 : vector<256x90xi1> to vector<256x90xi32>
    %21 = arith.addi %16, %20 : vector<256x90xi32>
    %22 = vector.extract_strided_slice %1 {offsets = [0, 0], sizes = [256, 1], strides = [1, 1]} : vector<256x3xi32> to vector<256x1xi32>
    %c50_i32 = arith.constant 50 : i32
    %23 = vector.broadcast %c50_i32 : i32 to vector<256x1xi32>
    %24 = arith.addi %22, %23 : vector<256x1xi32>
    %25 = vector.broadcast %24 : vector<256x1xi32> to vector<256x90xi32>
    %26 = arith.cmpi eq, %25, %2 : vector<256x90xi32>
    %27 = arith.extui %26 : vector<256x90xi1> to vector<256x90xi32>
    %28 = arith.addi %21, %27 : vector<256x90xi32>
    %29 = vector.extract_strided_slice %1 {offsets = [0, 1], sizes = [256, 1], strides = [1, 1]} : vector<256x3xi32> to vector<256x1xi32>
    %c50_i32_3 = arith.constant 50 : i32
    %30 = vector.broadcast %c50_i32_3 : i32 to vector<256x1xi32>
    %31 = arith.addi %29, %30 : vector<256x1xi32>
    %32 = vector.broadcast %31 : vector<256x1xi32> to vector<256x90xi32>
    %33 = arith.cmpi eq, %32, %2 : vector<256x90xi32>
    %34 = arith.extui %33 : vector<256x90xi1> to vector<256x90xi32>
    %35 = arith.addi %28, %34 : vector<256x90xi32>
    %36 = vector.extract_strided_slice %1 {offsets = [0, 2], sizes = [256, 1], strides = [1, 1]} : vector<256x3xi32> to vector<256x1xi32>
    %c50_i32_4 = arith.constant 50 : i32
    %37 = vector.broadcast %c50_i32_4 : i32 to vector<256x1xi32>
    %38 = arith.addi %36, %37 : vector<256x1xi32>
    %39 = vector.broadcast %38 : vector<256x1xi32> to vector<256x90xi32>
    %40 = arith.cmpi eq, %39, %2 : vector<256x90xi32>
    %41 = arith.extui %40 : vector<256x90xi1> to vector<256x90xi32>
    %42 = arith.addi %35, %41 : vector<256x90xi32>
    %43 = arith.sitofp %42 : vector<256x90xi32> to vector<256x90xbf16>
    %c0_5 = arith.constant 0 : index
    %c0_6 = arith.constant 0 : index
    %44 = vector.load %arg3[%c0_5, %c0_6] : memref<90x64xbf16, #tpu.memory_space<vmem>>, vector<90x64xbf16>
    %cst = arith.constant dense<0.000000e+00> : vector<256x64xf32>
    %45 = tpu.matmul %43, %44, %cst {dimension_numbers = #tpu.dot_dimension_numbers<[1], [0], [0], [1], [0, 0, 1, 1], [], []>} : vector<256x90xbf16>, vector<90x64xbf16>, vector<256x64xf32> -> vector<256x64xf32>
    %46 = vector.extract_strided_slice %45 {offsets = [0, 0], sizes = [256, 32], strides = [1, 1]} : vector<256x64xf32> to vector<256x32xf32>
    %47 = vector.extract_strided_slice %45 {offsets = [0, 32], sizes = [256, 32], strides = [1, 1]} : vector<256x64xf32> to vector<256x32xf32>
    %48 = arith.addf %46, %47 : vector<256x32xf32>
    %49 = arith.mulf %46, %47 : vector<256x32xf32>
    %50 = arith.addf %48, %49 : vector<256x32xf32>
    %51 = arith.truncf %50 : vector<256x32xf32> to vector<256x32xbf16>
    %c0_7 = arith.constant 0 : index
    %c0_8 = arith.constant 0 : index
    %52 = vector.load %arg4[%c0_7, %c0_8] : memref<32x64xbf16, #tpu.memory_space<vmem>>, vector<32x64xbf16>
    %cst_9 = arith.constant dense<0.000000e+00> : vector<256x64xf32>
    %53 = tpu.matmul %51, %52, %cst_9 {dimension_numbers = #tpu.dot_dimension_numbers<[1], [0], [0], [1], [0, 0, 1, 1], [], []>} : vector<256x32xbf16>, vector<32x64xbf16>, vector<256x64xf32> -> vector<256x64xf32>
    %c0_10 = arith.constant 0 : index
    %c0_11 = arith.constant 0 : index
    %54 = vector.load %arg5[%c0_10, %c0_11] : memref<1x64xf32, #tpu.memory_space<vmem>>, vector<1x64xf32>
    %55 = vector.broadcast %54 : vector<1x64xf32> to vector<256x64xf32>
    %56 = arith.addf %53, %55 : vector<256x64xf32>
    %cst_12 = arith.constant 0.000000e+00 : f32
    %57 = vector.broadcast %cst_12 : f32 to vector<256x64xf32>
    %58 = arith.maximumf %56, %57 : vector<256x64xf32>
    %59 = arith.truncf %58 : vector<256x64xf32> to vector<256x64xbf16>
    %c0_13 = arith.constant 0 : index
    %c0_14 = arith.constant 0 : index
    %60 = vector.load %arg6[%c0_13, %c0_14] : memref<64x32xbf16, #tpu.memory_space<vmem>>, vector<64x32xbf16>
    %cst_15 = arith.constant dense<0.000000e+00> : vector<256x32xf32>
    %61 = tpu.matmul %59, %60, %cst_15 {dimension_numbers = #tpu.dot_dimension_numbers<[1], [0], [0], [1], [0, 0, 1, 1], [], []>} : vector<256x64xbf16>, vector<64x32xbf16>, vector<256x32xf32> -> vector<256x32xf32>
    %c0_16 = arith.constant 0 : index
    %c0_17 = arith.constant 0 : index
    %62 = vector.load %arg7[%c0_16, %c0_17] : memref<1x32xf32, #tpu.memory_space<vmem>>, vector<1x32xf32>
    %63 = vector.broadcast %62 : vector<1x32xf32> to vector<256x32xf32>
    %64 = arith.addf %61, %63 : vector<256x32xf32>
    %cst_18 = arith.constant 0.000000e+00 : f32
    %65 = vector.broadcast %cst_18 : f32 to vector<256x32xf32>
    %66 = arith.maximumf %64, %65 : vector<256x32xf32>
    %67 = arith.truncf %66 : vector<256x32xf32> to vector<256x32xbf16>
    %c0_19 = arith.constant 0 : index
    %c0_20 = arith.constant 0 : index
    %68 = vector.load %arg8[%c0_19, %c0_20] : memref<32x64xbf16, #tpu.memory_space<vmem>>, vector<32x64xbf16>
    %cst_21 = arith.constant dense<0.000000e+00> : vector<256x64xf32>
    %69 = tpu.matmul %67, %68, %cst_21 {dimension_numbers = #tpu.dot_dimension_numbers<[1], [0], [0], [1], [0, 0, 1, 1], [], []>} : vector<256x32xbf16>, vector<32x64xbf16>, vector<256x64xf32> -> vector<256x64xf32>
    %c0_22 = arith.constant 0 : index
    %c0_23 = arith.constant 0 : index
    %70 = vector.load %arg9[%c0_22, %c0_23] : memref<1x64xf32, #tpu.memory_space<vmem>>, vector<1x64xf32>
    %71 = vector.broadcast %70 : vector<1x64xf32> to vector<256x64xf32>
    %72 = arith.addf %69, %71 : vector<256x64xf32>
    %cst_24 = arith.constant 0.000000e+00 : f32
    %73 = vector.broadcast %cst_24 : f32 to vector<256x64xf32>
    %74 = arith.maximumf %72, %73 : vector<256x64xf32>
    %75 = arith.truncf %74 : vector<256x64xf32> to vector<256x64xbf16>
    %c0_25 = arith.constant 0 : index
    %c0_26 = arith.constant 0 : index
    %76 = vector.load %arg10[%c0_25, %c0_26] : memref<64x128xbf16, #tpu.memory_space<vmem>>, vector<64x128xbf16>
    %cst_27 = arith.constant dense<0.000000e+00> : vector<256x128xf32>
    %77 = tpu.matmul %75, %76, %cst_27 {dimension_numbers = #tpu.dot_dimension_numbers<[1], [0], [0], [1], [0, 0, 1, 1], [], []>} : vector<256x64xbf16>, vector<64x128xbf16>, vector<256x128xf32> -> vector<256x128xf32>
    %c0_28 = arith.constant 0 : index
    %c0_29 = arith.constant 0 : index
    %78 = vector.load %arg11[%c0_28, %c0_29] : memref<1x128xf32, #tpu.memory_space<vmem>>, vector<1x128xf32>
    %79 = vector.broadcast %78 : vector<1x128xf32> to vector<256x128xf32>
    %80 = arith.addf %77, %79 : vector<256x128xf32>
    %c0_30 = arith.constant 0 : index
    %c0_31 = arith.constant 0 : index
    %81 = vector.load %arg12[%c0_30, %c0_31] : memref<256x128xf32, #tpu.memory_space<vmem>>, vector<256x128xf32>
    tpu.vector_store %arg12[%c0_30, %c0_31], %80 {strides = array<i32>} : memref<256x128xf32, #tpu.memory_space<vmem>>, vector<256x128xf32>,
    return
  }
  func.func @transform_0(%arg0: i32) -> (i32, i32) {
    %c0_i32 = arith.constant 0 : i32
    %c0_i32_0 = arith.constant 0 : i32
    return %arg0, %c0_i32 : i32, i32
  }
  func.func @transform_1(%arg0: i32) -> (i32, i32) {
    %c0_i32 = arith.constant 0 : i32
    %c0_i32_0 = arith.constant 0 : i32
    return %arg0, %c0_i32 : i32, i32
  }
  func.func @transform_2(%arg0: i32) -> (i32, i32) {
    %c0_i32 = arith.constant 0 : i32
    %c0_i32_0 = arith.constant 0 : i32
    %c0_i32_1 = arith.constant 0 : i32
    return %c0_i32, %c0_i32_0 : i32, i32
  }
  func.func @transform_3(%arg0: i32) -> (i32, i32) {
    %c0_i32 = arith.constant 0 : i32
    %c0_i32_0 = arith.constant 0 : i32
    %c0_i32_1 = arith.constant 0 : i32
    return %c0_i32, %c0_i32_0 : i32, i32
  }
  func.func @transform_4(%arg0: i32) -> (i32, i32) {
    %c0_i32 = arith.constant 0 : i32
    %c0_i32_0 = arith.constant 0 : i32
    %c0_i32_1 = arith.constant 0 : i32
    return %c0_i32, %c0_i32_0 : i32, i32
  }
  func.func @transform_5(%arg0: i32) -> (i32, i32) {
    %c0_i32 = arith.constant 0 : i32
    %c0_i32_0 = arith.constant 0 : i32
    %c0_i32_1 = arith.constant 0 : i32
    return %c0_i32, %c0_i32_0 : i32, i32
  }
  func.func @transform_6(%arg0: i32) -> (i32, i32) {
    %c0_i32 = arith.constant 0 : i32
    %c0_i32_0 = arith.constant 0 : i32
    %c0_i32_1 = arith.constant 0 : i32
    return %c0_i32, %c0_i32_0 : i32, i32
  }
  func.func @transform_7(%arg0: i32) -> (i32, i32) {
    %c0_i32 = arith.constant 0 : i32
    %c0_i32_0 = arith.constant 0 : i32
    %c0_i32_1 = arith.constant 0 : i32
    return %c0_i32, %c0_i32_0 : i32, i32
  }
  func.func @transform_8(%arg0: i32) -> (i32, i32) {
    %c0_i32 = arith.constant 0 : i32
    %c0_i32_0 = arith.constant 0 : i32
    %c0_i32_1 = arith.constant 0 : i32
    return %c0_i32, %c0_i32_0 : i32, i32
  }
  func.func @transform_9(%arg0: i32) -> (i32, i32) {
    %c0_i32 = arith.constant 0 : i32
    %c0_i32_0 = arith.constant 0 : i32
    %c0_i32_1 = arith.constant 0 : i32
    return %c0_i32, %c0_i32_0 : i32, i32
  }
  func.func @transform_10(%arg0: i32) -> (i32, i32) {
    %c0_i32 = arith.constant 0 : i32
    %c0_i32_0 = arith.constant 0 : i32
    %c0_i32_1 = arith.constant 0 : i32
    return %c0_i32, %c0_i32_0 : i32, i32
  }
  func.func @transform_11(%arg0: i32) -> (i32, i32) {
    %c0_i32 = arith.constant 0 : i32
    %c0_i32_0 = arith.constant 0 : i32
    return %arg0, %c0_i32 : i32, i32
  }
}

</mosaic_0001>

<llo_original>
// kernel: tpu_custom_call.1
$region0: #{tpu_custom_call.1}
  #allocation0 [shape = 'u32[]', space=smem, size = 0x4, offset = 0x4, fixed_abs, tag = 'smem constant byte address 0x4 - core index']
  #allocation1 [shape = 'u32[144,128]{1,0:T(1,128)}', space=vmem, size = 0x12000, scoped, tag = 'internal scratch']
  %s0 = inlined_call_operand.vmem [shape: s32[512,4], index: 0, kind: input, shape index: {}]
  %s1 = inlined_call_operand.vmem [shape: s32[512,3], index: 1, kind: input, shape index: {}]
  %s2 = inlined_call_operand.vmem [shape: bf16[90,64], index: 2, kind: input, shape index: {}]
  %s3 = inlined_call_operand.vmem [shape: bf16[32,64], index: 3, kind: input, shape index: {}]
  %s4 = inlined_call_operand.vmem [shape: f32[1,64], index: 4, kind: input, shape index: {}]
  %s5 = inlined_call_operand.vmem [shape: bf16[64,32], index: 5, kind: input, shape index: {}]
  %s6 = inlined_call_operand.vmem [shape: f32[1,32], index: 6, kind: input, shape index: {}]
  %s7 = inlined_call_operand.vmem [shape: bf16[32,64], index: 7, kind: input, shape index: {}]
  %s8 = inlined_call_operand.vmem [shape: f32[1,64], index: 8, kind: input, shape index: {}]
  %s9 = inlined_call_operand.vmem [shape: bf16[64,128], index: 9, kind: input, shape index: {}]
  %s10 = inlined_call_operand.vmem [shape: f32[1,128], index: 10, kind: input, shape index: {}]
  %s11 = inlined_call_operand.hbm [shape: f32[512,128], index: 11, kind: output, shape index: {}]
  %s12 = sld [smem:[#allocation0]]
  $region77: #{tpu_custom_call.1} parent=0
    _
  %s14 = ssub.s32 1, %s12
  %s15 = scalar_select 0, %s14, %s12
  $region1: #{tpu_custom_call.1} parent=0
    #allocation2 [shape = 'u8[262144]{0}', space=vmem, size = 0x40000, scoped, tag = 'output window, operand 0']
    #allocation3 [shape = 's32[2]{0}', space=sflag, size = 0x8, scoped, tag = 'scoped memory for tpu_custom_call.1']
    %16 = vsyncpa [#allocation3], 0
    %s17 = scalar_lea.sflag [#allocation3], 1
    %18 = vsyncpa %s17, 0
    loop: start=0, step=1, limit=4
    $region2: #{tpu_custom_call.1} parent=1 // loop_pre_header
      _
    $region3: #{tpu_custom_call.1} parent=1 // loop_header
      %s20 = sphi 0, %s24
      %p21 = scmp.ge.s32.totalorder %s20, 4
      %s30 = sphi 0, %s32
      %s33 = sphi 0, %s30
      %s34 = sphi 0, %s33
      %s50 = sphi 0, %s34
      %s56 = sphi 0, %s58
      %s59 = sphi 0, %s56
      %s60 = sphi 0, %s59
      %s76 = sphi 0, %s60
      %s80 = sphi 0, %s80
      %s82 = sphi 0, %s80
      %s83 = sphi 0, %s82
      %s97 = sphi 0, %s83
      %s101 = sphi 0, %s101
      %s103 = sphi 0, %s101
      %s104 = sphi 0, %s103
      %s118 = sphi 0, %s104
      %s122 = sphi 0, %s122
      %s124 = sphi 0, %s122
      %s125 = sphi 0, %s124
      %s139 = sphi 0, %s125
      %s143 = sphi 0, %s143
      %s145 = sphi 0, %s143
      %s146 = sphi 0, %s145
      %s160 = sphi 0, %s146
      %s164 = sphi 0, %s164
      %s166 = sphi 0, %s164
      %s167 = sphi 0, %s166
      %s181 = sphi 0, %s167
      %s185 = sphi 0, %s185
      %s187 = sphi 0, %s185
      %s188 = sphi 0, %s187
      %s202 = sphi 0, %s188
      %s206 = sphi 0, %s206
      %s208 = sphi 0, %s206
      %s209 = sphi 0, %s208
      %s223 = sphi 0, %s209
      %s227 = sphi 0, %s227
      %s229 = sphi 0, %s227
      %s230 = sphi 0, %s229
      %s244 = sphi 0, %s230
      %s248 = sphi 0, %s248
      %s250 = sphi 0, %s248
      %s251 = sphi 0, %s250
      %s265 = sphi 0, %s251
      %s271 = sphi 0, %s273
      %s274 = sphi 0, %s271
      %s275 = sphi 0, %s274
      %s291 = sphi 0, %s275
    $region4: #{tpu_custom_call.1} parent=1 // loop_header_branch
      %23 = sbr.rel (%p21) target = $region8
    $region5: #{tpu_custom_call.1} parent=1 // loop_body
      %s25 = ssub.s32 %s20, 1
      %s26 = ssub.s32 %s20, 2
      %s27 = sadd.s32 %s20, 1
      %s28 = ssub.s32 %s20, %s27
      %p29 = scmp.eq.s32.totalorder %s28, 0
      %s31 = sadd.s32 %s30, 1
      %s32 = scalar_select %p29, %s30, %s31
      %p35 = pneg %p29
      %p36 = scmp.eq.s32.totalorder %s20, 1
      %p37 = por %p35, %p36
      %p38 = scmp.ne.s32.totalorder %s30, %s33
      %p39 = scmp.eq.s32.totalorder %s20, 0
      %p40 = por %p38, %p39
      %p41 = scmp.ne.s32.totalorder %s30, %s33
      %p42 = scmp.eq.s32.totalorder %s25, 1
      %p43 = por %p41, %p42
      %p44 = scmp.ne.s32.totalorder %s33, %s34
      %p45 = scmp.eq.s32.totalorder %s25, 0
      %p46 = por %p44, %p45
      %p47 = scmp.ne.s32.totalorder %s33, %s34
      %p48 = scmp.eq.s32.totalorder %s26, 1
      %p49 = por %p47, %p48
      %p51 = scmp.ne.s32.totalorder %s34, %s50
      %p52 = scmp.eq.s32.totalorder %s26, 0
      %p53 = por %p51, %p52
      %s54 = ssub.s32 %s20, %s27
      %p55 = scmp.eq.s32.totalorder %s54, 0
      %s57 = sadd.s32 %s56, 1
      %s58 = scalar_select %p55, %s56, %s57
      %p61 = pneg %p55
      %p62 = scmp.eq.s32.totalorder %s20, 1
      %p63 = por %p61, %p62
      %p64 = scmp.ne.s32.totalorder %s56, %s59
      %p65 = scmp.eq.s32.totalorder %s20, 0
      %p66 = por %p64, %p65
      %p67 = scmp.ne.s32.totalorder %s56, %s59
      %p68 = scmp.eq.s32.totalorder %s25, 1
      %p69 = por %p67, %p68
      %p70 = scmp.ne.s32.totalorder %s59, %s60
      %p71 = scmp.eq.s32.totalorder %s25, 0
      %p72 = por %p70, %p71
      %p73 = scmp.ne.s32.totalorder %s59, %s60
      %p74 = scmp.eq.s32.totalorder %s26, 1
      %p75 = por %p73, %p74
      %p77 = scmp.ne.s32.totalorder %s60, %s76
      %p78 = scmp.eq.s32.totalorder %s26, 0
      %p79 = por %p77, %p78
      %s81 = sadd.s32 %s80, 1
      %p84 = scmp.eq.s32.totalorder %s20, 1
      %p85 = scmp.ne.s32.totalorder %s80, %s82
      %p86 = scmp.eq.s32.totalorder %s20, 0
      %p87 = por %p85, %p86
      %p88 = scmp.ne.s32.totalorder %s80, %s82
      %p89 = scmp.eq.s32.totalorder %s25, 1
      %p90 = por %p88, %p89
      %p91 = scmp.ne.s32.totalorder %s82, %s83
      %p92 = scmp.eq.s32.totalorder %s25, 0
      %p93 = por %p91, %p92
      %p94 = scmp.ne.s32.totalorder %s82, %s83
      %p95 = scmp.eq.s32.totalorder %s26, 1
      %p96 = por %p94, %p95
      %p98 = scmp.ne.s32.totalorder %s83, %s97
      %p99 = scmp.eq.s32.totalorder %s26, 0
      %p100 = por %p98, %p99
      %s102 = sadd.s32 %s101, 1
      %p105 = scmp.eq.s32.totalorder %s20, 1
      %p106 = scmp.ne.s32.totalorder %s101, %s103
      %p107 = scmp.eq.s32.totalorder %s20, 0
      %p108 = por %p106, %p107
      %p109 = scmp.ne.s32.totalorder %s101, %s103
      %p110 = scmp.eq.s32.totalorder %s25, 1
      %p111 = por %p109, %p110
      %p112 = scmp.ne.s32.totalorder %s103, %s104
      %p113 = scmp.eq.s32.totalorder %s25, 0
      %p114 = por %p112, %p113
      %p115 = scmp.ne.s32.totalorder %s103, %s104
      %p116 = scmp.eq.s32.totalorder %s26, 1
      %p117 = por %p115, %p116
      %p119 = scmp.ne.s32.totalorder %s104, %s118
      %p120 = scmp.eq.s32.totalorder %s26, 0
      %p121 = por %p119, %p120
      %s123 = sadd.s32 %s122, 1
      %p126 = scmp.eq.s32.totalorder %s20, 1
      %p127 = scmp.ne.s32.totalorder %s122, %s124
      %p128 = scmp.eq.s32.totalorder %s20, 0
      %p129 = por %p127, %p128
      %p130 = scmp.ne.s32.totalorder %s122, %s124
      %p131 = scmp.eq.s32.totalorder %s25, 1
      %p132 = por %p130, %p131
      %p133 = scmp.ne.s32.totalorder %s124, %s125
      %p134 = scmp.eq.s32.totalorder %s25, 0
      %p135 = por %p133, %p134
      %p136 = scmp.ne.s32.totalorder %s124, %s125
      %p137 = scmp.eq.s32.totalorder %s26, 1
      %p138 = por %p136, %p137
      %p140 = scmp.ne.s32.totalorder %s125, %s139
      %p141 = scmp.eq.s32.totalorder %s26, 0
      %p142 = por %p140, %p141
      %s144 = sadd.s32 %s143, 1
      %p147 = scmp.eq.s32.totalorder %s20, 1
      %p148 = scmp.ne.s32.totalorder %s143, %s145
      %p149 = scmp.eq.s32.totalorder %s20, 0
      %p150 = por %p148, %p149
      %p151 = scmp.ne.s32.totalorder %s143, %s145
      %p152 = scmp.eq.s32.totalorder %s25, 1
      %p153 = por %p151, %p152
      %p154 = scmp.ne.s32.totalorder %s145, %s146
      %p155 = scmp.eq.s32.totalorder %s25, 0
      %p156 = por %p154, %p155
      %p157 = scmp.ne.s32.totalorder %s145, %s146
      %p158 = scmp.eq.s32.totalorder %s26, 1
      %p159 = por %p157, %p158
      %p161 = scmp.ne.s32.totalorder %s146, %s160
      %p162 = scmp.eq.s32.totalorder %s26, 0
      %p163 = por %p161, %p162
      %s165 = sadd.s32 %s164, 1
      %p168 = scmp.eq.s32.totalorder %s20, 1
      %p169 = scmp.ne.s32.totalorder %s164, %s166
      %p170 = scmp.eq.s32.totalorder %s20, 0
      %p171 = por %p169, %p170
      %p172 = scmp.ne.s32.totalorder %s164, %s166
      %p173 = scmp.eq.s32.totalorder %s25, 1
      %p174 = por %p172, %p173
      %p175 = scmp.ne.s32.totalorder %s166, %s167
      %p176 = scmp.eq.s32.totalorder %s25, 0
      %p177 = por %p175, %p176
      %p178 = scmp.ne.s32.totalorder %s166, %s167
      %p179 = scmp.eq.s32.totalorder %s26, 1
      %p180 = por %p178, %p179
      %p182 = scmp.ne.s32.totalorder %s167, %s181
      %p183 = scmp.eq.s32.totalorder %s26, 0
      %p184 = por %p182, %p183
      %s186 = sadd.s32 %s185, 1
      %p189 = scmp.eq.s32.totalorder %s20, 1
      %p190 = scmp.ne.s32.totalorder %s185, %s187
      %p191 = scmp.eq.s32.totalorder %s20, 0
      %p192 = por %p190, %p191
      %p193 = scmp.ne.s32.totalorder %s185, %s187
      %p194 = scmp.eq.s32.totalorder %s25, 1
      %p195 = por %p193, %p194
      %p196 = scmp.ne.s32.totalorder %s187, %s188
      %p197 = scmp.eq.s32.totalorder %s25, 0
      %p198 = por %p196, %p197
      %p199 = scmp.ne.s32.totalorder %s187, %s188
      %p200 = scmp.eq.s32.totalorder %s26, 1
      %p201 = por %p199, %p200
      %p203 = scmp.ne.s32.totalorder %s188, %s202
      %p204 = scmp.eq.s32.totalorder %s26, 0
      %p205 = por %p203, %p204
      %s207 = sadd.s32 %s206, 1
      %p210 = scmp.eq.s32.totalorder %s20, 1
      %p211 = scmp.ne.s32.totalorder %s206, %s208
      %p212 = scmp.eq.s32.totalorder %s20, 0
      %p213 = por %p211, %p212
      %p214 = scmp.ne.s32.totalorder %s206, %s208
      %p215 = scmp.eq.s32.totalorder %s25, 1
      %p216 = por %p214, %p215
      %p217 = scmp.ne.s32.totalorder %s208, %s209
      %p218 = scmp.eq.s32.totalorder %s25, 0
      %p219 = por %p217, %p218
      %p220 = scmp.ne.s32.totalorder %s208, %s209
      %p221 = scmp.eq.s32.totalorder %s26, 1
      %p222 = por %p220, %p221
      %p224 = scmp.ne.s32.totalorder %s209, %s223
      %p225 = scmp.eq.s32.totalorder %s26, 0
      %p226 = por %p224, %p225
      %s228 = sadd.s32 %s227, 1
      %p231 = scmp.eq.s32.totalorder %s20, 1
      %p232 = scmp.ne.s32.totalorder %s227, %s229
      %p233 = scmp.eq.s32.totalorder %s20, 0
      %p234 = por %p232, %p233
      %p235 = scmp.ne.s32.totalorder %s227, %s229
      %p236 = scmp.eq.s32.totalorder %s25, 1
      %p237 = por %p235, %p236
      %p238 = scmp.ne.s32.totalorder %s229, %s230
      %p239 = scmp.eq.s32.totalorder %s25, 0
      %p240 = por %p238, %p239
      %p241 = scmp.ne.s32.totalorder %s229, %s230
      %p242 = scmp.eq.s32.totalorder %s26, 1
      %p243 = por %p241, %p242
      %p245 = scmp.ne.s32.totalorder %s230, %s244
      %p246 = scmp.eq.s32.totalorder %s26, 0
      %p247 = por %p245, %p246
      %s249 = sadd.s32 %s248, 1
      %p252 = scmp.eq.s32.totalorder %s20, 1
      %p253 = scmp.ne.s32.totalorder %s248, %s250
      %p254 = scmp.eq.s32.totalorder %s20, 0
      %p255 = por %p253, %p254
      %p256 = scmp.ne.s32.totalorder %s248, %s250
      %p257 = scmp.eq.s32.totalorder %s25, 1
      %p258 = por %p256, %p257
      %p259 = scmp.ne.s32.totalorder %s250, %s251
      %p260 = scmp.eq.s32.totalorder %s25, 0
      %p261 = por %p259, %p260
      %p262 = scmp.ne.s32.totalorder %s250, %s251
      %p263 = scmp.eq.s32.totalorder %s26, 1
      %p264 = por %p262, %p263
      %p266 = scmp.ne.s32.totalorder %s251, %s265
      %p267 = scmp.eq.s32.totalorder %s26, 0
      %p268 = por %p266, %p267
      %s269 = ssub.s32 %s20, %s27
      %p270 = scmp.eq.s32.totalorder %s269, 0
      %s272 = sadd.s32 %s271, 1
      %s273 = scalar_select %p270, %s271, %s272
      %p276 = pneg %p270
      %p277 = scmp.eq.s32.totalorder %s20, 1
      %p278 = por %p276, %p277
      %p279 = scmp.ne.s32.totalorder %s271, %s274
      %p280 = scmp.eq.s32.totalorder %s20, 0
      %p281 = por %p279, %p280
      %p282 = scmp.ne.s32.totalorder %s271, %s274
      %p283 = scmp.eq.s32.totalorder %s25, 1
      %p284 = por %p282, %p283
      %p285 = scmp.ne.s32.totalorder %s274, %s275
      %p286 = scmp.eq.s32.totalorder %s25, 0
      %p287 = por %p285, %p286
      %p288 = scmp.ne.s32.totalorder %s274, %s275
      %p289 = scmp.eq.s32.totalorder %s26, 1
      %p290 = por %p288, %p289
      %p292 = scmp.ne.s32.totalorder %s275, %s291
      %p293 = scmp.eq.s32.totalorder %s26, 0
      %p294 = por %p292, %p293
      %p295 = scmp.le.s32.totalorder 1, %s20
      %p296 = scmp.lt.s32.totalorder %s20, 3
      %p297 = pnand %p295, %p296
      %p298 = pneg %p297
      // Predicated region
      $region9: #{tpu_custom_call.1} parent=5 // pred_check
        _
      $region10: #{tpu_custom_call.1} parent=5 // pred_check_branch
        %300 = sbr.rel (%p297) target = $region12
      $region11: #{tpu_custom_call.1} parent=5 // pred_region
        %s301 = ssub.s32 %s20, 1
        // Predicated region
        $region13: #{tpu_custom_call.1} parent=11 // pred_check
          %p302 = pneg %p93
        $region14: #{tpu_custom_call.1} parent=11 // pred_check_branch
          %304 = sbr.rel (%p302) target = $region16
        $region15: #{tpu_custom_call.1} parent=11 // pred_region
          _
        $region16: #{tpu_custom_call.1} parent=11 // pred_fallthru
          _
        // Predicated region
        $region17: #{tpu_custom_call.1} parent=11 // pred_check
          %p305 = pneg %p114
        $region18: #{tpu_custom_call.1} parent=11 // pred_check_branch
          %307 = sbr.rel (%p305) target = $region20
        $region19: #{tpu_custom_call.1} parent=11 // pred_region
          _
        $region20: #{tpu_custom_call.1} parent=11 // pred_fallthru
          _
        // Predicated region
        $region21: #{tpu_custom_call.1} parent=11 // pred_check
          %p308 = pneg %p135
        $region22: #{tpu_custom_call.1} parent=11 // pred_check_branch
          %310 = sbr.rel (%p308) target = $region24
        $region23: #{tpu_custom_call.1} parent=11 // pred_region
          _
        $region24: #{tpu_custom_call.1} parent=11 // pred_fallthru
          _
        // Predicated region
        $region25: #{tpu_custom_call.1} parent=11 // pred_check
          %p311 = pneg %p156
        $region26: #{tpu_custom_call.1} parent=11 // pred_check_branch
          %313 = sbr.rel (%p311) target = $region28
        $region27: #{tpu_custom_call.1} parent=11 // pred_region
          _
        $region28: #{tpu_custom_call.1} parent=11 // pred_fallthru
          _
        // Predicated region
        $region29: #{tpu_custom_call.1} parent=11 // pred_check
          %p314 = pneg %p177
        $region30: #{tpu_custom_call.1} parent=11 // pred_check_branch
          %316 = sbr.rel (%p314) target = $region32
        $region31: #{tpu_custom_call.1} parent=11 // pred_region
          _
        $region32: #{tpu_custom_call.1} parent=11 // pred_fallthru
          _
        // Predicated region
        $region33: #{tpu_custom_call.1} parent=11 // pred_check
          %p317 = pneg %p198
        $region34: #{tpu_custom_call.1} parent=11 // pred_check_branch
          %319 = sbr.rel (%p317) target = $region36
        $region35: #{tpu_custom_call.1} parent=11 // pred_region
          _
        $region36: #{tpu_custom_call.1} parent=11 // pred_fallthru
          _
        // Predicated region
        $region37: #{tpu_custom_call.1} parent=11 // pred_check
          %p320 = pneg %p219
        $region38: #{tpu_custom_call.1} parent=11 // pred_check_branch
          %322 = sbr.rel (%p320) target = $region40
        $region39: #{tpu_custom_call.1} parent=11 // pred_region
          _
        $region40: #{tpu_custom_call.1} parent=11 // pred_fallthru
          _
        // Predicated region
        $region41: #{tpu_custom_call.1} parent=11 // pred_check
          %p323 = pneg %p240
        $region42: #{tpu_custom_call.1} parent=11 // pred_check_branch
          %325 = sbr.rel (%p323) target = $region44
        $region43: #{tpu_custom_call.1} parent=11 // pred_region
          _
        $region44: #{tpu_custom_call.1} parent=11 // pred_fallthru
          _
        // Predicated region
        $region45: #{tpu_custom_call.1} parent=11 // pred_check
          %p326 = pneg %p261
        $region46: #{tpu_custom_call.1} parent=11 // pred_check_branch
          %328 = sbr.rel (%p326) target = $region48
        $region47: #{tpu_custom_call.1} parent=11 // pred_region
          _
        $region48: #{tpu_custom_call.1} parent=11 // pred_fallthru
          _
      $region12: #{tpu_custom_call.1} parent=5 // pred_fallthru
        _
      %p329 = scmp.lt.s32.totalorder %s20, 2
      // Predicated region
      $region49: #{tpu_custom_call.1} parent=5 // pred_check
        %p330 = pneg %p329
      $region50: #{tpu_custom_call.1} parent=5 // pred_check_branch
        %332 = sbr.rel (%p330) target = $region52
      $region51: #{tpu_custom_call.1} parent=5 // pred_region
        // Predicated region
        $region53: #{tpu_custom_call.1} parent=51 // pred_check
          %p333 = pneg %p40
        $region54: #{tpu_custom_call.1} parent=51 // pred_check_branch
          %335 = sbr.rel (%p333) target = $region56
        $region55: #{tpu_custom_call.1} parent=51 // pred_region
          %s336 = smul.u32 32, %s20
          %p337 = scmp.lt.s32.totalorder %s336, 63
          %s338 = scalar_select %p337, %s336, 63
          %s339 = smul.addr %s338, 8
          %s340 = scalar_lea.vmem %s0, %s339
          %s341 = smul.u32 32, %s20
        $region56: #{tpu_custom_call.1} parent=51 // pred_fallthru
          _
        // Predicated region
        $region57: #{tpu_custom_call.1} parent=51 // pred_check
          %p342 = pneg %p66
        $region58: #{tpu_custom_call.1} parent=51 // pred_check_branch
          %344 = sbr.rel (%p342) target = $region60
        $region59: #{tpu_custom_call.1} parent=51 // pred_region
          %s345 = smul.u32 32, %s20
          %p346 = scmp.lt.s32.totalorder %s345, 63
          %s347 = scalar_select %p346, %s345, 63
          %s348 = smul.addr %s347, 8
          %s349 = scalar_lea.vmem %s1, %s348
          %s350 = smul.u32 32, %s20
        $region60: #{tpu_custom_call.1} parent=51 // pred_fallthru
          _
      $region52: #{tpu_custom_call.1} parent=5 // pred_fallthru
        _
      %p351 = scmp.le.s32.totalorder 1, %s20
      %p352 = scmp.lt.s32.totalorder %s20, 3
      %p353 = pnand %p351, %p352
      %p354 = pneg %p353
      // Predicated region
      $region61: #{tpu_custom_call.1} parent=5 // pred_check
        _
      $region62: #{tpu_custom_call.1} parent=5 // pred_check_branch
        %356 = sbr.rel (%p353) target = $region64
      $region63: #{tpu_custom_call.1} parent=5 // pred_region
        %s357 = ssub.s32 %s20, 1
        %s358 = smul.u32 32, %s25
        %p359 = scmp.lt.s32.totalorder %s358, 63
        %s360 = scalar_select %p359, %s358, 63
        %s361 = smul.addr %s360, 8
        %s362 = scalar_lea.vmem %s0, %s361
        %p363 = pneg %p46
        %p364 = pneg %p43
        %s365 = smul.u32 32, %s25
        %p366 = scmp.lt.s32.totalorder %s365, 63
        %s367 = scalar_select %p366, %s365, 63
        %s368 = smul.addr %s367, 8
        %s369 = scalar_lea.vmem %s1, %s368
        %p370 = pneg %p72
        %p371 = pneg %p69
        %p372 = pneg %p93
        %p373 = pneg %p90
        %p374 = pneg %p114
        %p375 = pneg %p111
        %p376 = pneg %p135
        %p377 = pneg %p132
        %p378 = pneg %p156
        %p379 = pneg %p153
        %p380 = pneg %p177
        %p381 = pneg %p174
        %p382 = pneg %p198
        %p383 = pneg %p195
        %p384 = pneg %p219
        %p385 = pneg %p216
        %p386 = pneg %p240
        %p387 = pneg %p237
        %p388 = pneg %p261
        %p389 = pneg %p258
        %p390 = pneg %p287
        %p391 = pneg %p284
        %s392 = sand.u32 %s274, 1
        %s393 = scalar_lea.sflag [#allocation3], %s392
        %s394 = sand.u32 %s274, 1
        %s395 = smul.addr %s394, 256
        %s396 = scalar_lea.vmem [#allocation2], %s395
        %s397 = smul.u32 32, %s25
        %p398 = scmp.lt.s32.totalorder %s397, 63
        %s399 = scalar_select %p398, %s397, 63
        %s400 = smul.addr %s399, 8
        %s401 = scalar_lea.vmem %s0, %s400
        %s402 = smul.u32 32, %s25
        %s403 = smul.u32 32, %s25
        %p404 = scmp.lt.s32.totalorder %s403, 63
        %s405 = scalar_select %p404, %s403, 63
        %s406 = smul.addr %s405, 8
        %s407 = scalar_lea.vmem %s1, %s406
        %s408 = smul.u32 32, %s25
        %s409 = smul.u32 32, %s25
        %v411 = vld [vmem:[%s401] sm:$0xff]
        %v412 = vld [vmem:[%s401 + $0x8] sm:$0xff]
        %v413 = vld [vmem:[%s401 + $0x10] sm:$0xff]
        %v414 = vld [vmem:[%s401 + $0x18] sm:$0xff]
        %v415 = vld [vmem:[%s401 + $0x20] sm:$0xff]
        %v416 = vld [vmem:[%s401 + $0x28] sm:$0xff]
        %v417 = vld [vmem:[%s401 + $0x30] sm:$0xff]
        %v418 = vld [vmem:[%s401 + $0x38] sm:$0xff]
        %v419 = vld [vmem:[%s401 + $0x40] sm:$0xff]
        %v420 = vld [vmem:[%s401 + $0x48] sm:$0xff]
        %v421 = vld [vmem:[%s401 + $0x50] sm:$0xff]
        %v422 = vld [vmem:[%s401 + $0x58] sm:$0xff]
        %v423 = vld [vmem:[%s401 + $0x60] sm:$0xff]
        %v424 = vld [vmem:[%s401 + $0x68] sm:$0xff]
        %v425 = vld [vmem:[%s401 + $0x70] sm:$0xff]
        %v426 = vld [vmem:[%s401 + $0x78] sm:$0xff]
        %v427 = vld [vmem:[%s401 + $0x80] sm:$0xff]
        %v428 = vld [vmem:[%s401 + $0x88] sm:$0xff]
        %v429 = vld [vmem:[%s401 + $0x90] sm:$0xff]
        %v430 = vld [vmem:[%s401 + $0x98] sm:$0xff]
        %v431 = vld [vmem:[%s401 + $0xa0] sm:$0xff]
        %v432 = vld [vmem:[%s401 + $0xa8] sm:$0xff]
        %v433 = vld [vmem:[%s401 + $0xb0] sm:$0xff]
        %v434 = vld [vmem:[%s401 + $0xb8] sm:$0xff]
        %v435 = vld [vmem:[%s401 + $0xc0] sm:$0xff]
        %v436 = vld [vmem:[%s401 + $0xc8] sm:$0xff]
        %v437 = vld [vmem:[%s401 + $0xd0] sm:$0xff]
        %v438 = vld [vmem:[%s401 + $0xd8] sm:$0xff]
        %v439 = vld [vmem:[%s401 + $0xe0] sm:$0xff]
        %v440 = vld [vmem:[%s401 + $0xe8] sm:$0xff]
        %v441 = vld [vmem:[%s401 + $0xf0] sm:$0xff]
        %v442 = vld [vmem:[%s401 + $0xf8] sm:$0xff]
        %v443 = vld [vmem:[%s407] sm:$0xff]
        %v444 = vld [vmem:[%s407 + $0x8] sm:$0xff]
        %v445 = vld [vmem:[%s407 + $0x10] sm:$0xff]
        %v446 = vld [vmem:[%s407 + $0x18] sm:$0xff]
        %v447 = vld [vmem:[%s407 + $0x20] sm:$0xff]
        %v448 = vld [vmem:[%s407 + $0x28] sm:$0xff]
        %v449 = vld [vmem:[%s407 + $0x30] sm:$0xff]
        %v450 = vld [vmem:[%s407 + $0x38] sm:$0xff]
        %v451 = vld [vmem:[%s407 + $0x40] sm:$0xff]
        %v452 = vld [vmem:[%s407 + $0x48] sm:$0xff]
        %v453 = vld [vmem:[%s407 + $0x50] sm:$0xff]
        %v454 = vld [vmem:[%s407 + $0x58] sm:$0xff]
        %v455 = vld [vmem:[%s407 + $0x60] sm:$0xff]
        %v456 = vld [vmem:[%s407 + $0x68] sm:$0xff]
        %v457 = vld [vmem:[%s407 + $0x70] sm:$0xff]
        %v458 = vld [vmem:[%s407 + $0x78] sm:$0xff]
        %v459 = vld [vmem:[%s407 + $0x80] sm:$0xff]
        %v460 = vld [vmem:[%s407 + $0x88] sm:$0xff]
        %v461 = vld [vmem:[%s407 + $0x90] sm:$0xff]
        %v462 = vld [vmem:[%s407 + $0x98] sm:$0xff]
        %v463 = vld [vmem:[%s407 + $0xa0] sm:$0xff]
        %v464 = vld [vmem:[%s407 + $0xa8] sm:$0xff]
        %v465 = vld [vmem:[%s407 + $0xb0] sm:$0xff]
        %v466 = vld [vmem:[%s407 + $0xb8] sm:$0xff]
        %v467 = vld [vmem:[%s407 + $0xc0] sm:$0xff]
        %v468 = vld [vmem:[%s407 + $0xc8] sm:$0xff]
        %v469 = vld [vmem:[%s407 + $0xd0] sm:$0xff]
        %v470 = vld [vmem:[%s407 + $0xd8] sm:$0xff]
        %v471 = vld [vmem:[%s407 + $0xe0] sm:$0xff]
        %v472 = vld [vmem:[%s407 + $0xe8] sm:$0xff]
        %v473 = vld [vmem:[%s407 + $0xf0] sm:$0xff]
        %v474 = vld [vmem:[%s407 + $0xf8] sm:$0xff]
        %v475 = vlaneseq
        %v476 = vand.u32 %v475, 127
        %477 = vset.pattern.permute.xlu0 0
        %478 = vperm.xlu0 %477, %v411
        %v479 = vpop.permute.xlu0 %478
        %480 = vset.pattern.permute.xlu0 0
        %481 = vperm.xlu0 %480, %v412
        %v482 = vpop.permute.xlu0 %481
        %483 = vset.pattern.permute.xlu0 0
        %484 = vperm.xlu0 %483, %v413
        %v485 = vpop.permute.xlu0 %484
        %486 = vset.pattern.permute.xlu0 0
        %487 = vperm.xlu0 %486, %v414
        %v488 = vpop.permute.xlu0 %487
        %489 = vset.pattern.permute.xlu0 0
        %490 = vperm.xlu0 %489, %v415
        %v491 = vpop.permute.xlu0 %490
        %492 = vset.pattern.permute.xlu0 0
        %493 = vperm.xlu0 %492, %v416
        %v494 = vpop.permute.xlu0 %493
        %495 = vset.pattern.permute.xlu0 0
        %496 = vperm.xlu0 %495, %v417
        %v497 = vpop.permute.xlu0 %496
        %498 = vset.pattern.permute.xlu0 0
        %499 = vperm.xlu0 %498, %v418
        %v500 = vpop.permute.xlu0 %499
        %501 = vset.pattern.permute.xlu0 0
        %502 = vperm.xlu0 %501, %v419
        %v503 = vpop.permute.xlu0 %502
        %504 = vset.pattern.permute.xlu0 0
        %505 = vperm.xlu0 %504, %v420
        %v506 = vpop.permute.xlu0 %505
        %507 = vset.pattern.permute.xlu0 0
        %508 = vperm.xlu0 %507, %v421
        %v509 = vpop.permute.xlu0 %508
        %510 = vset.pattern.permute.xlu0 0
        %511 = vperm.xlu0 %510, %v422
        %v512 = vpop.permute.xlu0 %511
        %513 = vset.pattern.permute.xlu0 0
        %514 = vperm.xlu0 %513, %v423
        %v515 = vpop.permute.xlu0 %514
        %516 = vset.pattern.permute.xlu0 0
        %517 = vperm.xlu0 %516, %v424
        %v518 = vpop.permute.xlu0 %517
        %519 = vset.pattern.permute.xlu0 0
        %520 = vperm.xlu0 %519, %v425
        %v521 = vpop.permute.xlu0 %520
        %522 = vset.pattern.permute.xlu0 0
        %523 = vperm.xlu0 %522, %v426
        %v524 = vpop.permute.xlu0 %523
        %525 = vset.pattern.permute.xlu0 0
        %526 = vperm.xlu0 %525, %v427
        %v527 = vpop.permute.xlu0 %526
        %528 = vset.pattern.permute.xlu0 0
        %529 = vperm.xlu0 %528, %v428
        %v530 = vpop.permute.xlu0 %529
        %531 = vset.pattern.permute.xlu0 0
        %532 = vperm.xlu0 %531, %v429
        %v533 = vpop.permute.xlu0 %532
        %534 = vset.pattern.permute.xlu0 0
        %535 = vperm.xlu0 %534, %v430
        %v536 = vpop.permute.xlu0 %535
        %537 = vset.pattern.permute.xlu0 0
        %538 = vperm.xlu0 %537, %v431
        %v539 = vpop.permute.xlu0 %538
        %540 = vset.pattern.permute.xlu0 0
        %541 = vperm.xlu0 %540, %v432
        %v542 = vpop.permute.xlu0 %541
        %543 = vset.pattern.permute.xlu0 0
        %544 = vperm.xlu0 %543, %v433
        %v545 = vpop.permute.xlu0 %544
        %546 = vset.pattern.permute.xlu0 0
        %547 = vperm.xlu0 %546, %v434
        %v548 = vpop.permute.xlu0 %547
        %549 = vset.pattern.permute.xlu0 0
        %550 = vperm.xlu0 %549, %v435
        %v551 = vpop.permute.xlu0 %550
        %552 = vset.pattern.permute.xlu0 0
        %553 = vperm.xlu0 %552, %v436
        %v554 = vpop.permute.xlu0 %553
        %555 = vset.pattern.permute.xlu0 0
        %556 = vperm.xlu0 %555, %v437
        %v557 = vpop.permute.xlu0 %556
        %558 = vset.pattern.permute.xlu0 0
        %559 = vperm.xlu0 %558, %v438
        %v560 = vpop.permute.xlu0 %559
        %561 = vset.pattern.permute.xlu0 0
        %562 = vperm.xlu0 %561, %v439
        %v563 = vpop.permute.xlu0 %562
        %564 = vset.pattern.permute.xlu0 0
        %565 = vperm.xlu0 %564, %v440
        %v566 = vpop.permute.xlu0 %565
        %567 = vset.pattern.permute.xlu0 0
        %568 = vperm.xlu0 %567, %v441
        %v569 = vpop.permute.xlu0 %568
        %570 = vset.pattern.permute.xlu0 0
        %571 = vperm.xlu0 %570, %v442
        %v572 = vpop.permute.xlu0 %571
        %vm573 = vcmp.eq.s32.totalorder %v479, %v476
        %vm574 = vcmp.eq.s32.totalorder %v482, %v476
        %vm575 = vcmp.eq.s32.totalorder %v485, %v476
        %vm576 = vcmp.eq.s32.totalorder %v488, %v476
        %vm577 = vcmp.eq.s32.totalorder %v491, %v476
        %vm578 = vcmp.eq.s32.totalorder %v494, %v476
        %vm579 = vcmp.eq.s32.totalorder %v497, %v476
        %vm580 = vcmp.eq.s32.totalorder %v500, %v476
        %vm581 = vcmp.eq.s32.totalorder %v503, %v476
        %vm582 = vcmp.eq.s32.totalorder %v506, %v476
        %vm583 = vcmp.eq.s32.totalorder %v509, %v476
        %vm584 = vcmp.eq.s32.totalorder %v512, %v476
        %vm585 = vcmp.eq.s32.totalorder %v515, %v476
        %vm586 = vcmp.eq.s32.totalorder %v518, %v476
        %vm587 = vcmp.eq.s32.totalorder %v521, %v476
        %vm588 = vcmp.eq.s32.totalorder %v524, %v476
        %vm589 = vcmp.eq.s32.totalorder %v527, %v476
        %vm590 = vcmp.eq.s32.totalorder %v530, %v476
        %vm591 = vcmp.eq.s32.totalorder %v533, %v476
        %vm592 = vcmp.eq.s32.totalorder %v536, %v476
        %vm593 = vcmp.eq.s32.totalorder %v539, %v476
        %vm594 = vcmp.eq.s32.totalorder %v542, %v476
        %vm595 = vcmp.eq.s32.totalorder %v545, %v476
        %vm596 = vcmp.eq.s32.totalorder %v548, %v476
        %vm597 = vcmp.eq.s32.totalorder %v551, %v476
        %vm598 = vcmp.eq.s32.totalorder %v554, %v476
        %vm599 = vcmp.eq.s32.totalorder %v557, %v476
        %vm600 = vcmp.eq.s32.totalorder %v560, %v476
        %vm601 = vcmp.eq.s32.totalorder %v563, %v476
        %vm602 = vcmp.eq.s32.totalorder %v566, %v476
        %vm603 = vcmp.eq.s32.totalorder %v569, %v476
        %vm604 = vcmp.eq.s32.totalorder %v572, %v476
        %v605 = vsel %vm573, 1, 0
        %v606 = vsel %vm574, 1, 0
        %v607 = vsel %vm575, 1, 0
        %v608 = vsel %vm576, 1, 0
        %v609 = vsel %vm577, 1, 0
        %v610 = vsel %vm578, 1, 0
        %v611 = vsel %vm579, 1, 0
        %v612 = vsel %vm580, 1, 0
        %v613 = vsel %vm581, 1, 0
        %v614 = vsel %vm582, 1, 0
        %v615 = vsel %vm583, 1, 0
        %v616 = vsel %vm584, 1, 0
        %v617 = vsel %vm585, 1, 0
        %v618 = vsel %vm586, 1, 0
        %v619 = vsel %vm587, 1, 0
        %v620 = vsel %vm588, 1, 0
        %v621 = vsel %vm589, 1, 0
        %v622 = vsel %vm590, 1, 0
        %v623 = vsel %vm591, 1, 0
        %v624 = vsel %vm592, 1, 0
        %v625 = vsel %vm593, 1, 0
        %v626 = vsel %vm594, 1, 0
        %v627 = vsel %vm595, 1, 0
        %v628 = vsel %vm596, 1, 0
        %v629 = vsel %vm597, 1, 0
        %v630 = vsel %vm598, 1, 0
        %v631 = vsel %vm599, 1, 0
        %v632 = vsel %vm600, 1, 0
        %v633 = vsel %vm601, 1, 0
        %v634 = vsel %vm602, 1, 0
        %v635 = vsel %vm603, 1, 0
        %v636 = vsel %vm604, 1, 0
        %637 = vset.pattern.permute.xlu0 1
        %638 = vperm.xlu0 %637, %v411
        %v639 = vpop.permute.xlu0 %638
        %640 = vset.pattern.permute.xlu0 1
        %641 = vperm.xlu0 %640, %v412
        %v642 = vpop.permute.xlu0 %641
        %643 = vset.pattern.permute.xlu0 1
        %644 = vperm.xlu0 %643, %v413
        %v645 = vpop.permute.xlu0 %644
        %646 = vset.pattern.permute.xlu0 1
        %647 = vperm.xlu0 %646, %v414
        %v648 = vpop.permute.xlu0 %647
        %649 = vset.pattern.permute.xlu0 1
        %650 = vperm.xlu0 %649, %v415
        %v651 = vpop.permute.xlu0 %650
        %652 = vset.pattern.permute.xlu0 1
        %653 = vperm.xlu0 %652, %v416
        %v654 = vpop.permute.xlu0 %653
        %655 = vset.pattern.permute.xlu0 1
        %656 = vperm.xlu0 %655, %v417
        %v657 = vpop.permute.xlu0 %656
        %658 = vset.pattern.permute.xlu0 1
        %659 = vperm.xlu0 %658, %v418
        %v660 = vpop.permute.xlu0 %659
        %661 = vset.pattern.permute.xlu0 1
        %662 = vperm.xlu0 %661, %v419
        %v663 = vpop.permute.xlu0 %662
        %664 = vset.pattern.permute.xlu0 1
        %665 = vperm.xlu0 %664, %v420
        %v666 = vpop.permute.xlu0 %665
        %667 = vset.pattern.permute.xlu0 1
        %668 = vperm.xlu0 %667, %v421
        %v669 = vpop.permute.xlu0 %668
        %670 = vset.pattern.permute.xlu0 1
        %671 = vperm.xlu0 %670, %v422
        %v672 = vpop.permute.xlu0 %671
        %673 = vset.pattern.permute.xlu0 1
        %674 = vperm.xlu0 %673, %v423
        %v675 = vpop.permute.xlu0 %674
        %676 = vset.pattern.permute.xlu0 1
        %677 = vperm.xlu0 %676, %v424
        %v678 = vpop.permute.xlu0 %677
        %679 = vset.pattern.permute.xlu0 1
        %680 = vperm.xlu0 %679, %v425
        %v681 = vpop.permute.xlu0 %680
        %682 = vset.pattern.permute.xlu0 1
        %683 = vperm.xlu0 %682, %v426
        %v684 = vpop.permute.xlu0 %683
        %685 = vset.pattern.permute.xlu0 1
        %686 = vperm.xlu0 %685, %v427
        %v687 = vpop.permute.xlu0 %686
        %688 = vset.pattern.permute.xlu0 1
        %689 = vperm.xlu0 %688, %v428
        %v690 = vpop.permute.xlu0 %689
        %691 = vset.pattern.permute.xlu0 1
        %692 = vperm.xlu0 %691, %v429
        %v693 = vpop.permute.xlu0 %692
        %694 = vset.pattern.permute.xlu0 1
        %695 = vperm.xlu0 %694, %v430
        %v696 = vpop.permute.xlu0 %695
        %697 = vset.pattern.permute.xlu0 1
        %698 = vperm.xlu0 %697, %v431
        %v699 = vpop.permute.xlu0 %698
        %700 = vset.pattern.permute.xlu0 1
        %701 = vperm.xlu0 %700, %v432
        %v702 = vpop.permute.xlu0 %701
        %703 = vset.pattern.permute.xlu0 1
        %704 = vperm.xlu0 %703, %v433
        %v705 = vpop.permute.xlu0 %704
        %706 = vset.pattern.permute.xlu0 1
        %707 = vperm.xlu0 %706, %v434
        %v708 = vpop.permute.xlu0 %707
        %709 = vset.pattern.permute.xlu0 1
        %710 = vperm.xlu0 %709, %v435
        %v711 = vpop.permute.xlu0 %710
        %712 = vset.pattern.permute.xlu0 1
        %713 = vperm.xlu0 %712, %v436
        %v714 = vpop.permute.xlu0 %713
        %715 = vset.pattern.permute.xlu0 1
        %716 = vperm.xlu0 %715, %v437
        %v717 = vpop.permute.xlu0 %716
        %718 = vset.pattern.permute.xlu0 1
        %719 = vperm.xlu0 %718, %v438
        %v720 = vpop.permute.xlu0 %719
        %721 = vset.pattern.permute.xlu0 1
        %722 = vperm.xlu0 %721, %v439
        %v723 = vpop.permute.xlu0 %722
        %724 = vset.pattern.permute.xlu0 1
        %725 = vperm.xlu0 %724, %v440
        %v726 = vpop.permute.xlu0 %725
        %727 = vset.pattern.permute.xlu0 1
        %728 = vperm.xlu0 %727, %v441
        %v729 = vpop.permute.xlu0 %728
        %730 = vset.pattern.permute.xlu0 1
        %731 = vperm.xlu0 %730, %v442
        %v732 = vpop.permute.xlu0 %731
        %vm733 = vcmp.eq.s32.totalorder %v639, %v476
        %vm734 = vcmp.eq.s32.totalorder %v642, %v476
        %vm735 = vcmp.eq.s32.totalorder %v645, %v476
        %vm736 = vcmp.eq.s32.totalorder %v648, %v476
        %vm737 = vcmp.eq.s32.totalorder %v651, %v476
        %vm738 = vcmp.eq.s32.totalorder %v654, %v476
        %vm739 = vcmp.eq.s32.totalorder %v657, %v476
        %vm740 = vcmp.eq.s32.totalorder %v660, %v476
        %vm741 = vcmp.eq.s32.totalorder %v663, %v476
        %vm742 = vcmp.eq.s32.totalorder %v666, %v476
        %vm743 = vcmp.eq.s32.totalorder %v669, %v476
        %vm744 = vcmp.eq.s32.totalorder %v672, %v476
        %vm745 = vcmp.eq.s32.totalorder %v675, %v476
        %vm746 = vcmp.eq.s32.totalorder %v678, %v476
        %vm747 = vcmp.eq.s32.totalorder %v681, %v476
        %vm748 = vcmp.eq.s32.totalorder %v684, %v476
        %vm749 = vcmp.eq.s32.totalorder %v687, %v476
        %vm750 = vcmp.eq.s32.totalorder %v690, %v476
        %vm751 = vcmp.eq.s32.totalorder %v693, %v476
        %vm752 = vcmp.eq.s32.totalorder %v696, %v476
        %vm753 = vcmp.eq.s32.totalorder %v699, %v476
        %vm754 = vcmp.eq.s32.totalorder %v702, %v476
        %vm755 = vcmp.eq.s32.totalorder %v705, %v476
        %vm756 = vcmp.eq.s32.totalorder %v708, %v476
        %vm757 = vcmp.eq.s32.totalorder %v711, %v476
        %vm758 = vcmp.eq.s32.totalorder %v714, %v476
        %vm759 = vcmp.eq.s32.totalorder %v717, %v476
        %vm760 = vcmp.eq.s32.totalorder %v720, %v476
        %vm761 = vcmp.eq.s32.totalorder %v723, %v476
        %vm762 = vcmp.eq.s32.totalorder %v726, %v476
        %vm763 = vcmp.eq.s32.totalorder %v729, %v476
        %vm764 = vcmp.eq.s32.totalorder %v732, %v476
        %v765 = vsel %vm733, 1, 0
        %v766 = vsel %vm734, 1, 0
        %v767 = vsel %vm735, 1, 0
        %v768 = vsel %vm736, 1, 0
        %v769 = vsel %vm737, 1, 0
        %v770 = vsel %vm738, 1, 0
        %v771 = vsel %vm739, 1, 0
        %v772 = vsel %vm740, 1, 0
        %v773 = vsel %vm741, 1, 0
        %v774 = vsel %vm742, 1, 0
        %v775 = vsel %vm743, 1, 0
        %v776 = vsel %vm744, 1, 0
        %v777 = vsel %vm745, 1, 0
        %v778 = vsel %vm746, 1, 0
        %v779 = vsel %vm747, 1, 0
        %v780 = vsel %vm748, 1, 0
        %v781 = vsel %vm749, 1, 0
        %v782 = vsel %vm750, 1, 0
        %v783 = vsel %vm751, 1, 0
        %v784 = vsel %vm752, 1, 0
        %v785 = vsel %vm753, 1, 0
        %v786 = vsel %vm754, 1, 0
        %v787 = vsel %vm755, 1, 0
        %v788 = vsel %vm756, 1, 0
        %v789 = vsel %vm757, 1, 0
        %v790 = vsel %vm758, 1, 0
        %v791 = vsel %vm759, 1, 0
        %v792 = vsel %vm760, 1, 0
        %v793 = vsel %vm761, 1, 0
        %v794 = vsel %vm762, 1, 0
        %v795 = vsel %vm763, 1, 0
        %v796 = vsel %vm764, 1, 0
        %v797 = vadd.s32 %v605, %v765
        %v798 = vadd.s32 %v606, %v766
        %v799 = vadd.s32 %v607, %v767
        %v800 = vadd.s32 %v608, %v768
        %v801 = vadd.s32 %v609, %v769
        %v802 = vadd.s32 %v610, %v770
        %v803 = vadd.s32 %v611, %v771
        %v804 = vadd.s32 %v612, %v772
        %v805 = vadd.s32 %v613, %v773
        %v806 = vadd.s32 %v614, %v774
        %v807 = vadd.s32 %v615, %v775
        %v808 = vadd.s32 %v616, %v776
        %v809 = vadd.s32 %v617, %v777
        %v810 = vadd.s32 %v618, %v778
        %v811 = vadd.s32 %v619, %v779
        %v812 = vadd.s32 %v620, %v780
        %v813 = vadd.s32 %v621, %v781
        %v814 = vadd.s32 %v622, %v782
        %v815 = vadd.s32 %v623, %v783
        %v816 = vadd.s32 %v624, %v784
        %v817 = vadd.s32 %v625, %v785
        %v818 = vadd.s32 %v626, %v786
        %v819 = vadd.s32 %v627, %v787
        %v820 = vadd.s32 %v628, %v788
        %v821 = vadd.s32 %v629, %v789
        %v822 = vadd.s32 %v630, %v790
        %v823 = vadd.s32 %v631, %v791
        %v824 = vadd.s32 %v632, %v792
        %v825 = vadd.s32 %v633, %v793
        %v826 = vadd.s32 %v634, %v794
        %v827 = vadd.s32 %v635, %v795
        %v828 = vadd.s32 %v636, %v796
        %829 = vset.pattern.permute.xlu0 2
        %830 = vperm.xlu0 %829, %v411
        %v831 = vpop.permute.xlu0 %830
        %832 = vset.pattern.permute.xlu0 2
        %833 = vperm.xlu0 %832, %v412
        %v834 = vpop.permute.xlu0 %833
        %835 = vset.pattern.permute.xlu0 2
        %836 = vperm.xlu0 %835, %v413
        %v837 = vpop.permute.xlu0 %836
        %838 = vset.pattern.permute.xlu0 2
        %839 = vperm.xlu0 %838, %v414
        %v840 = vpop.permute.xlu0 %839
        %841 = vset.pattern.permute.xlu0 2
        %842 = vperm.xlu0 %841, %v415
        %v843 = vpop.permute.xlu0 %842
        %844 = vset.pattern.permute.xlu0 2
        %845 = vperm.xlu0 %844, %v416
        %v846 = vpop.permute.xlu0 %845
        %847 = vset.pattern.permute.xlu0 2
        %848 = vperm.xlu0 %847, %v417
        %v849 = vpop.permute.xlu0 %848
        %850 = vset.pattern.permute.xlu0 2
        %851 = vperm.xlu0 %850, %v418
        %v852 = vpop.permute.xlu0 %851
        %853 = vset.pattern.permute.xlu0 2
        %854 = vperm.xlu0 %853, %v419
        %v855 = vpop.permute.xlu0 %854
        %856 = vset.pattern.permute.xlu0 2
        %857 = vperm.xlu0 %856, %v420
        %v858 = vpop.permute.xlu0 %857
        %859 = vset.pattern.permute.xlu0 2
        %860 = vperm.xlu0 %859, %v421
        %v861 = vpop.permute.xlu0 %860
        %862 = vset.pattern.permute.xlu0 2
        %863 = vperm.xlu0 %862, %v422
        %v864 = vpop.permute.xlu0 %863
        %865 = vset.pattern.permute.xlu0 2
        %866 = vperm.xlu0 %865, %v423
        %v867 = vpop.permute.xlu0 %866
        %868 = vset.pattern.permute.xlu0 2
        %869 = vperm.xlu0 %868, %v424
        %v870 = vpop.permute.xlu0 %869
        %871 = vset.pattern.permute.xlu0 2
        %872 = vperm.xlu0 %871, %v425
        %v873 = vpop.permute.xlu0 %872
        %874 = vset.pattern.permute.xlu0 2
        %875 = vperm.xlu0 %874, %v426
        %v876 = vpop.permute.xlu0 %875
        %877 = vset.pattern.permute.xlu0 2
        %878 = vperm.xlu0 %877, %v427
        %v879 = vpop.permute.xlu0 %878
        %880 = vset.pattern.permute.xlu0 2
        %881 = vperm.xlu0 %880, %v428
        %v882 = vpop.permute.xlu0 %881
        %883 = vset.pattern.permute.xlu0 2
        %884 = vperm.xlu0 %883, %v429
        %v885 = vpop.permute.xlu0 %884
        %886 = vset.pattern.permute.xlu0 2
        %887 = vperm.xlu0 %886, %v430
        %v888 = vpop.permute.xlu0 %887
        %889 = vset.pattern.permute.xlu0 2
        %890 = vperm.xlu0 %889, %v431
        %v891 = vpop.permute.xlu0 %890
        %892 = vset.pattern.permute.xlu0 2
        %893 = vperm.xlu0 %892, %v432
        %v894 = vpop.permute.xlu0 %893
        %895 = vset.pattern.permute.xlu0 2
        %896 = vperm.xlu0 %895, %v433
        %v897 = vpop.permute.xlu0 %896
        %898 = vset.pattern.permute.xlu0 2
        %899 = vperm.xlu0 %898, %v434
        %v900 = vpop.permute.xlu0 %899
        %901 = vset.pattern.permute.xlu0 2
        %902 = vperm.xlu0 %901, %v435
        %v903 = vpop.permute.xlu0 %902
        %904 = vset.pattern.permute.xlu0 2
        %905 = vperm.xlu0 %904, %v436
        %v906 = vpop.permute.xlu0 %905
        %907 = vset.pattern.permute.xlu0 2
        %908 = vperm.xlu0 %907, %v437
        %v909 = vpop.permute.xlu0 %908
        %910 = vset.pattern.permute.xlu0 2
        %911 = vperm.xlu0 %910, %v438
        %v912 = vpop.permute.xlu0 %911
        %913 = vset.pattern.permute.xlu0 2
        %914 = vperm.xlu0 %913, %v439
        %v915 = vpop.permute.xlu0 %914
        %916 = vset.pattern.permute.xlu0 2
        %917 = vperm.xlu0 %916, %v440
        %v918 = vpop.permute.xlu0 %917
        %919 = vset.pattern.permute.xlu0 2
        %920 = vperm.xlu0 %919, %v441
        %v921 = vpop.permute.xlu0 %920
        %922 = vset.pattern.permute.xlu0 2
        %923 = vperm.xlu0 %922, %v442
        %v924 = vpop.permute.xlu0 %923
        %vm925 = vcmp.eq.s32.totalorder %v831, %v476
        %vm926 = vcmp.eq.s32.totalorder %v834, %v476
        %vm927 = vcmp.eq.s32.totalorder %v837, %v476
        %vm928 = vcmp.eq.s32.totalorder %v840, %v476
        %vm929 = vcmp.eq.s32.totalorder %v843, %v476
        %vm930 = vcmp.eq.s32.totalorder %v846, %v476
        %vm931 = vcmp.eq.s32.totalorder %v849, %v476
        %vm932 = vcmp.eq.s32.totalorder %v852, %v476
        %vm933 = vcmp.eq.s32.totalorder %v855, %v476
        %vm934 = vcmp.eq.s32.totalorder %v858, %v476
        %vm935 = vcmp.eq.s32.totalorder %v861, %v476
        %vm936 = vcmp.eq.s32.totalorder %v864, %v476
        %vm937 = vcmp.eq.s32.totalorder %v867, %v476
        %vm938 = vcmp.eq.s32.totalorder %v870, %v476
        %vm939 = vcmp.eq.s32.totalorder %v873, %v476
        %vm940 = vcmp.eq.s32.totalorder %v876, %v476
        %vm941 = vcmp.eq.s32.totalorder %v879, %v476
        %vm942 = vcmp.eq.s32.totalorder %v882, %v476
        %vm943 = vcmp.eq.s32.totalorder %v885, %v476
        %vm944 = vcmp.eq.s32.totalorder %v888, %v476
        %vm945 = vcmp.eq.s32.totalorder %v891, %v476
        %vm946 = vcmp.eq.s32.totalorder %v894, %v476
        %vm947 = vcmp.eq.s32.totalorder %v897, %v476
        %vm948 = vcmp.eq.s32.totalorder %v900, %v476
        %vm949 = vcmp.eq.s32.totalorder %v903, %v476
        %vm950 = vcmp.eq.s32.totalorder %v906, %v476
        %vm951 = vcmp.eq.s32.totalorder %v909, %v476
        %vm952 = vcmp.eq.s32.totalorder %v912, %v476
        %vm953 = vcmp.eq.s32.totalorder %v915, %v476
        %vm954 = vcmp.eq.s32.totalorder %v918, %v476
        %vm955 = vcmp.eq.s32.totalorder %v921, %v476
        %vm956 = vcmp.eq.s32.totalorder %v924, %v476
        %v957 = vsel %vm925, 1, 0
        %v958 = vsel %vm926, 1, 0
        %v959 = vsel %vm927, 1, 0
        %v960 = vsel %vm928, 1, 0
        %v961 = vsel %vm929, 1, 0
        %v962 = vsel %vm930, 1, 0
        %v963 = vsel %vm931, 1, 0
        %v964 = vsel %vm932, 1, 0
        %v965 = vsel %vm933, 1, 0
        %v966 = vsel %vm934, 1, 0
        %v967 = vsel %vm935, 1, 0
        %v968 = vsel %vm936, 1, 0
        %v969 = vsel %vm937, 1, 0
        %v970 = vsel %vm938, 1, 0
        %v971 = vsel %vm939, 1, 0
        %v972 = vsel %vm940, 1, 0
        %v973 = vsel %vm941, 1, 0
        %v974 = vsel %vm942, 1, 0
        %v975 = vsel %vm943, 1, 0
        %v976 = vsel %vm944, 1, 0
        %v977 = vsel %vm945, 1, 0
        %v978 = vsel %vm946, 1, 0
        %v979 = vsel %vm947, 1, 0
        %v980 = vsel %vm948, 1, 0
        %v981 = vsel %vm949, 1, 0
        %v982 = vsel %vm950, 1, 0
        %v983 = vsel %vm951, 1, 0
        %v984 = vsel %vm952, 1, 0
        %v985 = vsel %vm953, 1, 0
        %v986 = vsel %vm954, 1, 0
        %v987 = vsel %vm955, 1, 0
        %v988 = vsel %vm956, 1, 0
        %v989 = vadd.s32 %v797, %v957
        %v990 = vadd.s32 %v798, %v958
        %v991 = vadd.s32 %v799, %v959
        %v992 = vadd.s32 %v800, %v960
        %v993 = vadd.s32 %v801, %v961
        %v994 = vadd.s32 %v802, %v962
        %v995 = vadd.s32 %v803, %v963
        %v996 = vadd.s32 %v804, %v964
        %v997 = vadd.s32 %v805, %v965
        %v998 = vadd.s32 %v806, %v966
        %v999 = vadd.s32 %v807, %v967
        %v1000 = vadd.s32 %v808, %v968
        %v1001 = vadd.s32 %v809, %v969
        %v1002 = vadd.s32 %v810, %v970
        %v1003 = vadd.s32 %v811, %v971
        %v1004 = vadd.s32 %v812, %v972
        %v1005 = vadd.s32 %v813, %v973
        %v1006 = vadd.s32 %v814, %v974
        %v1007 = vadd.s32 %v815, %v975
        %v1008 = vadd.s32 %v816, %v976
        %v1009 = vadd.s32 %v817, %v977
        %v1010 = vadd.s32 %v818, %v978
        %v1011 = vadd.s32 %v819, %v979
        %v1012 = vadd.s32 %v820, %v980
        %v1013 = vadd.s32 %v821, %v981
        %v1014 = vadd.s32 %v822, %v982
        %v1015 = vadd.s32 %v823, %v983
        %v1016 = vadd.s32 %v824, %v984
        %v1017 = vadd.s32 %v825, %v985
        %v1018 = vadd.s32 %v826, %v986
        %v1019 = vadd.s32 %v827, %v987
        %v1020 = vadd.s32 %v828, %v988
        %1021 = vset.pattern.permute.xlu0 3
        %1022 = vperm.xlu0 %1021, %v411
        %v1023 = vpop.permute.xlu0 %1022
        %1024 = vset.pattern.permute.xlu0 3
        %1025 = vperm.xlu0 %1024, %v412
        %v1026 = vpop.permute.xlu0 %1025
        %1027 = vset.pattern.permute.xlu0 3
        %1028 = vperm.xlu0 %1027, %v413
        %v1029 = vpop.permute.xlu0 %1028
        %1030 = vset.pattern.permute.xlu0 3
        %1031 = vperm.xlu0 %1030, %v414
        %v1032 = vpop.permute.xlu0 %1031
        %1033 = vset.pattern.permute.xlu0 3
        %1034 = vperm.xlu0 %1033, %v415
        %v1035 = vpop.permute.xlu0 %1034
        %1036 = vset.pattern.permute.xlu0 3
        %1037 = vperm.xlu0 %1036, %v416
        %v1038 = vpop.permute.xlu0 %1037
        %1039 = vset.pattern.permute.xlu0 3
        %1040 = vperm.xlu0 %1039, %v417
        %v1041 = vpop.permute.xlu0 %1040
        %1042 = vset.pattern.permute.xlu0 3
        %1043 = vperm.xlu0 %1042, %v418
        %v1044 = vpop.permute.xlu0 %1043
        %1045 = vset.pattern.permute.xlu0 3
        %1046 = vperm.xlu0 %1045, %v419
        %v1047 = vpop.permute.xlu0 %1046
        %1048 = vset.pattern.permute.xlu0 3
        %1049 = vperm.xlu0 %1048, %v420
        %v1050 = vpop.permute.xlu0 %1049
        %1051 = vset.pattern.permute.xlu0 3
        %1052 = vperm.xlu0 %1051, %v421
        %v1053 = vpop.permute.xlu0 %1052
        %1054 = vset.pattern.permute.xlu0 3
        %1055 = vperm.xlu0 %1054, %v422
        %v1056 = vpop.permute.xlu0 %1055
        %1057 = vset.pattern.permute.xlu0 3
        %1058 = vperm.xlu0 %1057, %v423
        %v1059 = vpop.permute.xlu0 %1058
        %1060 = vset.pattern.permute.xlu0 3
        %1061 = vperm.xlu0 %1060, %v424
        %v1062 = vpop.permute.xlu0 %1061
        %1063 = vset.pattern.permute.xlu0 3
        %1064 = vperm.xlu0 %1063, %v425
        %v1065 = vpop.permute.xlu0 %1064
        %1066 = vset.pattern.permute.xlu0 3
        %1067 = vperm.xlu0 %1066, %v426
        %v1068 = vpop.permute.xlu0 %1067
        %1069 = vset.pattern.permute.xlu0 3
        %1070 = vperm.xlu0 %1069, %v427
        %v1071 = vpop.permute.xlu0 %1070
        %1072 = vset.pattern.permute.xlu0 3
        %1073 = vperm.xlu0 %1072, %v428
        %v1074 = vpop.permute.xlu0 %1073
        %1075 = vset.pattern.permute.xlu0 3
        %1076 = vperm.xlu0 %1075, %v429
        %v1077 = vpop.permute.xlu0 %1076
        %1078 = vset.pattern.permute.xlu0 3
        %1079 = vperm.xlu0 %1078, %v430
        %v1080 = vpop.permute.xlu0 %1079
        %1081 = vset.pattern.permute.xlu0 3
        %1082 = vperm.xlu0 %1081, %v431
        %v1083 = vpop.permute.xlu0 %1082
        %1084 = vset.pattern.permute.xlu0 3
        %1085 = vperm.xlu0 %1084, %v432
        %v1086 = vpop.permute.xlu0 %1085
        %1087 = vset.pattern.permute.xlu0 3
        %1088 = vperm.xlu0 %1087, %v433
        %v1089 = vpop.permute.xlu0 %1088
        %1090 = vset.pattern.permute.xlu0 3
        %1091 = vperm.xlu0 %1090, %v434
        %v1092 = vpop.permute.xlu0 %1091
        %1093 = vset.pattern.permute.xlu0 3
        %1094 = vperm.xlu0 %1093, %v435
        %v1095 = vpop.permute.xlu0 %1094
        %1096 = vset.pattern.permute.xlu0 3
        %1097 = vperm.xlu0 %1096, %v436
        %v1098 = vpop.permute.xlu0 %1097
        %1099 = vset.pattern.permute.xlu0 3
        %1100 = vperm.xlu0 %1099, %v437
        %v1101 = vpop.permute.xlu0 %1100
        %1102 = vset.pattern.permute.xlu0 3
        %1103 = vperm.xlu0 %1102, %v438
        %v1104 = vpop.permute.xlu0 %1103
        %1105 = vset.pattern.permute.xlu0 3
        %1106 = vperm.xlu0 %1105, %v439
        %v1107 = vpop.permute.xlu0 %1106
        %1108 = vset.pattern.permute.xlu0 3
        %1109 = vperm.xlu0 %1108, %v440
        %v1110 = vpop.permute.xlu0 %1109
        %1111 = vset.pattern.permute.xlu0 3
        %1112 = vperm.xlu0 %1111, %v441
        %v1113 = vpop.permute.xlu0 %1112
        %1114 = vset.pattern.permute.xlu0 3
        %1115 = vperm.xlu0 %1114, %v442
        %v1116 = vpop.permute.xlu0 %1115
        %vm1117 = vcmp.eq.s32.totalorder %v1023, %v476
        %vm1118 = vcmp.eq.s32.totalorder %v1026, %v476
        %vm1119 = vcmp.eq.s32.totalorder %v1029, %v476
        %vm1120 = vcmp.eq.s32.totalorder %v1032, %v476
        %vm1121 = vcmp.eq.s32.totalorder %v1035, %v476
        %vm1122 = vcmp.eq.s32.totalorder %v1038, %v476
        %vm1123 = vcmp.eq.s32.totalorder %v1041, %v476
        %vm1124 = vcmp.eq.s32.totalorder %v1044, %v476
        %vm1125 = vcmp.eq.s32.totalorder %v1047, %v476
        %vm1126 = vcmp.eq.s32.totalorder %v1050, %v476
        %vm1127 = vcmp.eq.s32.totalorder %v1053, %v476
        %vm1128 = vcmp.eq.s32.totalorder %v1056, %v476
        %vm1129 = vcmp.eq.s32.totalorder %v1059, %v476
        %vm1130 = vcmp.eq.s32.totalorder %v1062, %v476
        %vm1131 = vcmp.eq.s32.totalorder %v1065, %v476
        %vm1132 = vcmp.eq.s32.totalorder %v1068, %v476
        %vm1133 = vcmp.eq.s32.totalorder %v1071, %v476
        %vm1134 = vcmp.eq.s32.totalorder %v1074, %v476
        %vm1135 = vcmp.eq.s32.totalorder %v1077, %v476
        %vm1136 = vcmp.eq.s32.totalorder %v1080, %v476
        %vm1137 = vcmp.eq.s32.totalorder %v1083, %v476
        %vm1138 = vcmp.eq.s32.totalorder %v1086, %v476
        %vm1139 = vcmp.eq.s32.totalorder %v1089, %v476
        %vm1140 = vcmp.eq.s32.totalorder %v1092, %v476
        %vm1141 = vcmp.eq.s32.totalorder %v1095, %v476
        %vm1142 = vcmp.eq.s32.totalorder %v1098, %v476
        %vm1143 = vcmp.eq.s32.totalorder %v1101, %v476
        %vm1144 = vcmp.eq.s32.totalorder %v1104, %v476
        %vm1145 = vcmp.eq.s32.totalorder %v1107, %v476
        %vm1146 = vcmp.eq.s32.totalorder %v1110, %v476
        %vm1147 = vcmp.eq.s32.totalorder %v1113, %v476
        %vm1148 = vcmp.eq.s32.totalorder %v1116, %v476
        %v1149 = vsel %vm1117, 1, 0
        %v1150 = vsel %vm1118, 1, 0
        %v1151 = vsel %vm1119, 1, 0
        %v1152 = vsel %vm1120, 1, 0
        %v1153 = vsel %vm1121, 1, 0
        %v1154 = vsel %vm1122, 1, 0
        %v1155 = vsel %vm1123, 1, 0
        %v1156 = vsel %vm1124, 1, 0
        %v1157 = vsel %vm1125, 1, 0
        %v1158 = vsel %vm1126, 1, 0
        %v1159 = vsel %vm1127, 1, 0
        %v1160 = vsel %vm1128, 1, 0
        %v1161 = vsel %vm1129, 1, 0
        %v1162 = vsel %vm1130, 1, 0
        %v1163 = vsel %vm1131, 1, 0
        %v1164 = vsel %vm1132, 1, 0
        %v1165 = vsel %vm1133, 1, 0
        %v1166 = vsel %vm1134, 1, 0
        %v1167 = vsel %vm1135, 1, 0
        %v1168 = vsel %vm1136, 1, 0
        %v1169 = vsel %vm1137, 1, 0
        %v1170 = vsel %vm1138, 1, 0
        %v1171 = vsel %vm1139, 1, 0
        %v1172 = vsel %vm1140, 1, 0
        %v1173 = vsel %vm1141, 1, 0
        %v1174 = vsel %vm1142, 1, 0
        %v1175 = vsel %vm1143, 1, 0
        %v1176 = vsel %vm1144, 1, 0
        %v1177 = vsel %vm1145, 1, 0
        %v1178 = vsel %vm1146, 1, 0
        %v1179 = vsel %vm1147, 1, 0
        %v1180 = vsel %vm1148, 1, 0
        %v1181 = vadd.s32 %v989, %v1149
        %v1182 = vadd.s32 %v990, %v1150
        %v1183 = vadd.s32 %v991, %v1151
        %v1184 = vadd.s32 %v992, %v1152
        %v1185 = vadd.s32 %v993, %v1153
        %v1186 = vadd.s32 %v994, %v1154
        %v1187 = vadd.s32 %v995, %v1155
        %v1188 = vadd.s32 %v996, %v1156
        %v1189 = vadd.s32 %v997, %v1157
        %v1190 = vadd.s32 %v998, %v1158
        %v1191 = vadd.s32 %v999, %v1159
        %v1192 = vadd.s32 %v1000, %v1160
        %v1193 = vadd.s32 %v1001, %v1161
        %v1194 = vadd.s32 %v1002, %v1162
        %v1195 = vadd.s32 %v1003, %v1163
        %v1196 = vadd.s32 %v1004, %v1164
        %v1197 = vadd.s32 %v1005, %v1165
        %v1198 = vadd.s32 %v1006, %v1166
        %v1199 = vadd.s32 %v1007, %v1167
        %v1200 = vadd.s32 %v1008, %v1168
        %v1201 = vadd.s32 %v1009, %v1169
        %v1202 = vadd.s32 %v1010, %v1170
        %v1203 = vadd.s32 %v1011, %v1171
        %v1204 = vadd.s32 %v1012, %v1172
        %v1205 = vadd.s32 %v1013, %v1173
        %v1206 = vadd.s32 %v1014, %v1174
        %v1207 = vadd.s32 %v1015, %v1175
        %v1208 = vadd.s32 %v1016, %v1176
        %v1209 = vadd.s32 %v1017, %v1177
        %v1210 = vadd.s32 %v1018, %v1178
        %v1211 = vadd.s32 %v1019, %v1179
        %v1212 = vadd.s32 %v1020, %v1180
        %v1213 = vadd.s32 %v443, 50
        %v1214 = vadd.s32 %v444, 50
        %v1215 = vadd.s32 %v445, 50
        %v1216 = vadd.s32 %v446, 50
        %v1217 = vadd.s32 %v447, 50
        %v1218 = vadd.s32 %v448, 50
        %v1219 = vadd.s32 %v449, 50
        %v1220 = vadd.s32 %v450, 50
        %v1221 = vadd.s32 %v451, 50
        %v1222 = vadd.s32 %v452, 50
        %v1223 = vadd.s32 %v453, 50
        %v1224 = vadd.s32 %v454, 50
        %v1225 = vadd.s32 %v455, 50
        %v1226 = vadd.s32 %v456, 50
        %v1227 = vadd.s32 %v457, 50
        %v1228 = vadd.s32 %v458, 50
        %v1229 = vadd.s32 %v459, 50
        %v1230 = vadd.s32 %v460, 50
        %v1231 = vadd.s32 %v461, 50
        %v1232 = vadd.s32 %v462, 50
        %v1233 = vadd.s32 %v463, 50
        %v1234 = vadd.s32 %v464, 50
        %v1235 = vadd.s32 %v465, 50
        %v1236 = vadd.s32 %v466, 50
        %v1237 = vadd.s32 %v467, 50
        %v1238 = vadd.s32 %v468, 50
        %v1239 = vadd.s32 %v469, 50
        %v1240 = vadd.s32 %v470, 50
        %v1241 = vadd.s32 %v471, 50
        %v1242 = vadd.s32 %v472, 50
        %v1243 = vadd.s32 %v473, 50
        %v1244 = vadd.s32 %v474, 50
        %1245 = vset.pattern.permute.xlu0 0
        %1246 = vperm.xlu0 %1245, %v1213
        %v1247 = vpop.permute.xlu0 %1246
        %1248 = vset.pattern.permute.xlu0 0
        %1249 = vperm.xlu0 %1248, %v1214
        %v1250 = vpop.permute.xlu0 %1249
        %1251 = vset.pattern.permute.xlu0 0
        %1252 = vperm.xlu0 %1251, %v1215
        %v1253 = vpop.permute.xlu0 %1252
        %1254 = vset.pattern.permute.xlu0 0
        %1255 = vperm.xlu0 %1254, %v1216
        %v1256 = vpop.permute.xlu0 %1255
        %1257 = vset.pattern.permute.xlu0 0
        %1258 = vperm.xlu0 %1257, %v1217
        %v1259 = vpop.permute.xlu0 %1258
        %1260 = vset.pattern.permute.xlu0 0
        %1261 = vperm.xlu0 %1260, %v1218
        %v1262 = vpop.permute.xlu0 %1261
        %1263 = vset.pattern.permute.xlu0 0
        %1264 = vperm.xlu0 %1263, %v1219
        %v1265 = vpop.permute.xlu0 %1264
        %1266 = vset.pattern.permute.xlu0 0
        %1267 = vperm.xlu0 %1266, %v1220
        %v1268 = vpop.permute.xlu0 %1267
        %1269 = vset.pattern.permute.xlu0 0
        %1270 = vperm.xlu0 %1269, %v1221
        %v1271 = vpop.permute.xlu0 %1270
        %1272 = vset.pattern.permute.xlu0 0
        %1273 = vperm.xlu0 %1272, %v1222
        %v1274 = vpop.permute.xlu0 %1273
        %1275 = vset.pattern.permute.xlu0 0
        %1276 = vperm.xlu0 %1275, %v1223
        %v1277 = vpop.permute.xlu0 %1276
        %1278 = vset.pattern.permute.xlu0 0
        %1279 = vperm.xlu0 %1278, %v1224
        %v1280 = vpop.permute.xlu0 %1279
        %1281 = vset.pattern.permute.xlu0 0
        %1282 = vperm.xlu0 %1281, %v1225
        %v1283 = vpop.permute.xlu0 %1282
        %1284 = vset.pattern.permute.xlu0 0
        %1285 = vperm.xlu0 %1284, %v1226
        %v1286 = vpop.permute.xlu0 %1285
        %1287 = vset.pattern.permute.xlu0 0
        %1288 = vperm.xlu0 %1287, %v1227
        %v1289 = vpop.permute.xlu0 %1288
        %1290 = vset.pattern.permute.xlu0 0
        %1291 = vperm.xlu0 %1290, %v1228
        %v1292 = vpop.permute.xlu0 %1291
        %1293 = vset.pattern.permute.xlu0 0
        %1294 = vperm.xlu0 %1293, %v1229
        %v1295 = vpop.permute.xlu0 %1294
        %1296 = vset.pattern.permute.xlu0 0
        %1297 = vperm.xlu0 %1296, %v1230
        %v1298 = vpop.permute.xlu0 %1297
        %1299 = vset.pattern.permute.xlu0 0
        %1300 = vperm.xlu0 %1299, %v1231
        %v1301 = vpop.permute.xlu0 %1300
        %1302 = vset.pattern.permute.xlu0 0
        %1303 = vperm.xlu0 %1302, %v1232
        %v1304 = vpop.permute.xlu0 %1303
        %1305 = vset.pattern.permute.xlu0 0
        %1306 = vperm.xlu0 %1305, %v1233
        %v1307 = vpop.permute.xlu0 %1306
        %1308 = vset.pattern.permute.xlu0 0
        %1309 = vperm.xlu0 %1308, %v1234
        %v1310 = vpop.permute.xlu0 %1309
        %1311 = vset.pattern.permute.xlu0 0
        %1312 = vperm.xlu0 %1311, %v1235
        %v1313 = vpop.permute.xlu0 %1312
        %1314 = vset.pattern.permute.xlu0 0
        %1315 = vperm.xlu0 %1314, %v1236
        %v1316 = vpop.permute.xlu0 %1315
        %1317 = vset.pattern.permute.xlu0 0
        %1318 = vperm.xlu0 %1317, %v1237
        %v1319 = vpop.permute.xlu0 %1318
        %1320 = vset.pattern.permute.xlu0 0
        %1321 = vperm.xlu0 %1320, %v1238
        %v1322 = vpop.permute.xlu0 %1321
        %1323 = vset.pattern.permute.xlu0 0
        %1324 = vperm.xlu0 %1323, %v1239
        %v1325 = vpop.permute.xlu0 %1324
        %1326 = vset.pattern.permute.xlu0 0
        %1327 = vperm.xlu0 %1326, %v1240
        %v1328 = vpop.permute.xlu0 %1327
        %1329 = vset.pattern.permute.xlu0 0
        %1330 = vperm.xlu0 %1329, %v1241
        %v1331 = vpop.permute.xlu0 %1330
        %1332 = vset.pattern.permute.xlu0 0
        %1333 = vperm.xlu0 %1332, %v1242
        %v1334 = vpop.permute.xlu0 %1333
        %1335 = vset.pattern.permute.xlu0 0
        %1336 = vperm.xlu0 %1335, %v1243
        %v1337 = vpop.permute.xlu0 %1336
        %1338 = vset.pattern.permute.xlu0 0
        %1339 = vperm.xlu0 %1338, %v1244
        %v1340 = vpop.permute.xlu0 %1339
        %vm1341 = vcmp.eq.s32.totalorder %v1247, %v476
        %vm1342 = vcmp.eq.s32.totalorder %v1250, %v476
        %vm1343 = vcmp.eq.s32.totalorder %v1253, %v476
        %vm1344 = vcmp.eq.s32.totalorder %v1256, %v476
        %vm1345 = vcmp.eq.s32.totalorder %v1259, %v476
        %vm1346 = vcmp.eq.s32.totalorder %v1262, %v476
        %vm1347 = vcmp.eq.s32.totalorder %v1265, %v476
        %vm1348 = vcmp.eq.s32.totalorder %v1268, %v476
        %vm1349 = vcmp.eq.s32.totalorder %v1271, %v476
        %vm1350 = vcmp.eq.s32.totalorder %v1274, %v476
        %vm1351 = vcmp.eq.s32.totalorder %v1277, %v476
        %vm1352 = vcmp.eq.s32.totalorder %v1280, %v476
        %vm1353 = vcmp.eq.s32.totalorder %v1283, %v476
        %vm1354 = vcmp.eq.s32.totalorder %v1286, %v476
        %vm1355 = vcmp.eq.s32.totalorder %v1289, %v476
        %vm1356 = vcmp.eq.s32.totalorder %v1292, %v476
        %vm1357 = vcmp.eq.s32.totalorder %v1295, %v476
        %vm1358 = vcmp.eq.s32.totalorder %v1298, %v476
        %vm1359 = vcmp.eq.s32.totalorder %v1301, %v476
        %vm1360 = vcmp.eq.s32.totalorder %v1304, %v476
        %vm1361 = vcmp.eq.s32.totalorder %v1307, %v476
        %vm1362 = vcmp.eq.s32.totalorder %v1310, %v476
        %vm1363 = vcmp.eq.s32.totalorder %v1313, %v476
        %vm1364 = vcmp.eq.s32.totalorder %v1316, %v476
        %vm1365 = vcmp.eq.s32.totalorder %v1319, %v476
        %vm1366 = vcmp.eq.s32.totalorder %v1322, %v476
        %vm1367 = vcmp.eq.s32.totalorder %v1325, %v476
        %vm1368 = vcmp.eq.s32.totalorder %v1328, %v476
        %vm1369 = vcmp.eq.s32.totalorder %v1331, %v476
        %vm1370 = vcmp.eq.s32.totalorder %v1334, %v476
        %vm1371 = vcmp.eq.s32.totalorder %v1337, %v476
        %vm1372 = vcmp.eq.s32.totalorder %v1340, %v476
        %v1373 = vsel %vm1341, 1, 0
        %v1374 = vsel %vm1342, 1, 0
        %v1375 = vsel %vm1343, 1, 0
        %v1376 = vsel %vm1344, 1, 0
        %v1377 = vsel %vm1345, 1, 0
        %v1378 = vsel %vm1346, 1, 0
        %v1379 = vsel %vm1347, 1, 0
        %v1380 = vsel %vm1348, 1, 0
        %v1381 = vsel %vm1349, 1, 0
        %v1382 = vsel %vm1350, 1, 0
        %v1383 = vsel %vm1351, 1, 0
        %v1384 = vsel %vm1352, 1, 0
        %v1385 = vsel %vm1353, 1, 0
        %v1386 = vsel %vm1354, 1, 0
        %v1387 = vsel %vm1355, 1, 0
        %v1388 = vsel %vm1356, 1, 0
        %v1389 = vsel %vm1357, 1, 0
        %v1390 = vsel %vm1358, 1, 0
        %v1391 = vsel %vm1359, 1, 0
        %v1392 = vsel %vm1360, 1, 0
        %v1393 = vsel %vm1361, 1, 0
        %v1394 = vsel %vm1362, 1, 0
        %v1395 = vsel %vm1363, 1, 0
        %v1396 = vsel %vm1364, 1, 0
        %v1397 = vsel %vm1365, 1, 0
        %v1398 = vsel %vm1366, 1, 0
        %v1399 = vsel %vm1367, 1, 0
        %v1400 = vsel %vm1368, 1, 0
        %v1401 = vsel %vm1369, 1, 0
        %v1402 = vsel %vm1370, 1, 0
        %v1403 = vsel %vm1371, 1, 0
        %v1404 = vsel %vm1372, 1, 0
        %v1405 = vadd.s32 %v1181, %v1373
        %v1406 = vadd.s32 %v1182, %v1374
        %v1407 = vadd.s32 %v1183, %v1375
        %v1408 = vadd.s32 %v1184, %v1376
        %v1409 = vadd.s32 %v1185, %v1377
        %v1410 = vadd.s32 %v1186, %v1378
        %v1411 = vadd.s32 %v1187, %v1379
        %v1412 = vadd.s32 %v1188, %v1380
        %v1413 = vadd.s32 %v1189, %v1381
        %v1414 = vadd.s32 %v1190, %v1382
        %v1415 = vadd.s32 %v1191, %v1383
        %v1416 = vadd.s32 %v1192, %v1384
        %v1417 = vadd.s32 %v1193, %v1385
        %v1418 = vadd.s32 %v1194, %v1386
        %v1419 = vadd.s32 %v1195, %v1387
        %v1420 = vadd.s32 %v1196, %v1388
        %v1421 = vadd.s32 %v1197, %v1389
        %v1422 = vadd.s32 %v1198, %v1390
        %v1423 = vadd.s32 %v1199, %v1391
        %v1424 = vadd.s32 %v1200, %v1392
        %v1425 = vadd.s32 %v1201, %v1393
        %v1426 = vadd.s32 %v1202, %v1394
        %v1427 = vadd.s32 %v1203, %v1395
        %v1428 = vadd.s32 %v1204, %v1396
        %v1429 = vadd.s32 %v1205, %v1397
        %v1430 = vadd.s32 %v1206, %v1398
        %v1431 = vadd.s32 %v1207, %v1399
        %v1432 = vadd.s32 %v1208, %v1400
        %v1433 = vadd.s32 %v1209, %v1401
        %v1434 = vadd.s32 %v1210, %v1402
        %v1435 = vadd.s32 %v1211, %v1403
        %v1436 = vadd.s32 %v1212, %v1404
        %1437 = vset.pattern.permute.xlu0 1
        %1438 = vperm.xlu0 %1437, %v1213
        %v1439 = vpop.permute.xlu0 %1438
        %1440 = vset.pattern.permute.xlu0 1
        %1441 = vperm.xlu0 %1440, %v1214
        %v1442 = vpop.permute.xlu0 %1441
        %1443 = vset.pattern.permute.xlu0 1
        %1444 = vperm.xlu0 %1443, %v1215
        %v1445 = vpop.permute.xlu0 %1444
        %1446 = vset.pattern.permute.xlu0 1
        %1447 = vperm.xlu0 %1446, %v1216
        %v1448 = vpop.permute.xlu0 %1447
        %1449 = vset.pattern.permute.xlu0 1
        %1450 = vperm.xlu0 %1449, %v1217
        %v1451 = vpop.permute.xlu0 %1450
        %1452 = vset.pattern.permute.xlu0 1
        %1453 = vperm.xlu0 %1452, %v1218
        %v1454 = vpop.permute.xlu0 %1453
        %1455 = vset.pattern.permute.xlu0 1
        %1456 = vperm.xlu0 %1455, %v1219
        %v1457 = vpop.permute.xlu0 %1456
        %1458 = vset.pattern.permute.xlu0 1
        %1459 = vperm.xlu0 %1458, %v1220
        %v1460 = vpop.permute.xlu0 %1459
        %1461 = vset.pattern.permute.xlu0 1
        %1462 = vperm.xlu0 %1461, %v1221
        %v1463 = vpop.permute.xlu0 %1462
        %1464 = vset.pattern.permute.xlu0 1
        %1465 = vperm.xlu0 %1464, %v1222
        %v1466 = vpop.permute.xlu0 %1465
        %1467 = vset.pattern.permute.xlu0 1
        %1468 = vperm.xlu0 %1467, %v1223
        %v1469 = vpop.permute.xlu0 %1468
        %1470 = vset.pattern.permute.xlu0 1
        %1471 = vperm.xlu0 %1470, %v1224
        %v1472 = vpop.permute.xlu0 %1471
        %1473 = vset.pattern.permute.xlu0 1
        %1474 = vperm.xlu0 %1473, %v1225
        %v1475 = vpop.permute.xlu0 %1474
        %1476 = vset.pattern.permute.xlu0 1
        %1477 = vperm.xlu0 %1476, %v1226
        %v1478 = vpop.permute.xlu0 %1477
        %1479 = vset.pattern.permute.xlu0 1
        %1480 = vperm.xlu0 %1479, %v1227
        %v1481 = vpop.permute.xlu0 %1480
        %1482 = vset.pattern.permute.xlu0 1
        %1483 = vperm.xlu0 %1482, %v1228
        %v1484 = vpop.permute.xlu0 %1483
        %1485 = vset.pattern.permute.xlu0 1
        %1486 = vperm.xlu0 %1485, %v1229
        %v1487 = vpop.permute.xlu0 %1486
        %1488 = vset.pattern.permute.xlu0 1
        %1489 = vperm.xlu0 %1488, %v1230
        %v1490 = vpop.permute.xlu0 %1489
        %1491 = vset.pattern.permute.xlu0 1
        %1492 = vperm.xlu0 %1491, %v1231
        %v1493 = vpop.permute.xlu0 %1492
        %1494 = vset.pattern.permute.xlu0 1
        %1495 = vperm.xlu0 %1494, %v1232
        %v1496 = vpop.permute.xlu0 %1495
        %1497 = vset.pattern.permute.xlu0 1
        %1498 = vperm.xlu0 %1497, %v1233
        %v1499 = vpop.permute.xlu0 %1498
        %1500 = vset.pattern.permute.xlu0 1
        %1501 = vperm.xlu0 %1500, %v1234
        %v1502 = vpop.permute.xlu0 %1501
        %1503 = vset.pattern.permute.xlu0 1
        %1504 = vperm.xlu0 %1503, %v1235
        %v1505 = vpop.permute.xlu0 %1504
        %1506 = vset.pattern.permute.xlu0 1
        %1507 = vperm.xlu0 %1506, %v1236
        %v1508 = vpop.permute.xlu0 %1507
        %1509 = vset.pattern.permute.xlu0 1
        %1510 = vperm.xlu0 %1509, %v1237
        %v1511 = vpop.permute.xlu0 %1510
        %1512 = vset.pattern.permute.xlu0 1
        %1513 = vperm.xlu0 %1512, %v1238
        %v1514 = vpop.permute.xlu0 %1513
        %1515 = vset.pattern.permute.xlu0 1
        %1516 = vperm.xlu0 %1515, %v1239
        %v1517 = vpop.permute.xlu0 %1516
        %1518 = vset.pattern.permute.xlu0 1
        %1519 = vperm.xlu0 %1518, %v1240
        %v1520 = vpop.permute.xlu0 %1519
        %1521 = vset.pattern.permute.xlu0 1
        %1522 = vperm.xlu0 %1521, %v1241
        %v1523 = vpop.permute.xlu0 %1522
        %1524 = vset.pattern.permute.xlu0 1
        %1525 = vperm.xlu0 %1524, %v1242
        %v1526 = vpop.permute.xlu0 %1525
        %1527 = vset.pattern.permute.xlu0 1
        %1528 = vperm.xlu0 %1527, %v1243
        %v1529 = vpop.permute.xlu0 %1528
        %1530 = vset.pattern.permute.xlu0 1
        %1531 = vperm.xlu0 %1530, %v1244
        %v1532 = vpop.permute.xlu0 %1531
        %vm1533 = vcmp.eq.s32.totalorder %v1439, %v476
        %vm1534 = vcmp.eq.s32.totalorder %v1442, %v476
        %vm1535 = vcmp.eq.s32.totalorder %v1445, %v476
        %vm1536 = vcmp.eq.s32.totalorder %v1448, %v476
        %vm1537 = vcmp.eq.s32.totalorder %v1451, %v476
        %vm1538 = vcmp.eq.s32.totalorder %v1454, %v476
        %vm1539 = vcmp.eq.s32.totalorder %v1457, %v476
        %vm1540 = vcmp.eq.s32.totalorder %v1460, %v476
        %vm1541 = vcmp.eq.s32.totalorder %v1463, %v476
        %vm1542 = vcmp.eq.s32.totalorder %v1466, %v476
        %vm1543 = vcmp.eq.s32.totalorder %v1469, %v476
        %vm1544 = vcmp.eq.s32.totalorder %v1472, %v476
        %vm1545 = vcmp.eq.s32.totalorder %v1475, %v476
        %vm1546 = vcmp.eq.s32.totalorder %v1478, %v476
        %vm1547 = vcmp.eq.s32.totalorder %v1481, %v476
        %vm1548 = vcmp.eq.s32.totalorder %v1484, %v476
        %vm1549 = vcmp.eq.s32.totalorder %v1487, %v476
        %vm1550 = vcmp.eq.s32.totalorder %v1490, %v476
        %vm1551 = vcmp.eq.s32.totalorder %v1493, %v476
        %vm1552 = vcmp.eq.s32.totalorder %v1496, %v476
        %vm1553 = vcmp.eq.s32.totalorder %v1499, %v476
        %vm1554 = vcmp.eq.s32.totalorder %v1502, %v476
        %vm1555 = vcmp.eq.s32.totalorder %v1505, %v476
        %vm1556 = vcmp.eq.s32.totalorder %v1508, %v476
        %vm1557 = vcmp.eq.s32.totalorder %v1511, %v476
        %vm1558 = vcmp.eq.s32.totalorder %v1514, %v476
        %vm1559 = vcmp.eq.s32.totalorder %v1517, %v476
        %vm1560 = vcmp.eq.s32.totalorder %v1520, %v476
        %vm1561 = vcmp.eq.s32.totalorder %v1523, %v476
        %vm1562 = vcmp.eq.s32.totalorder %v1526, %v476
        %vm1563 = vcmp.eq.s32.totalorder %v1529, %v476
        %vm1564 = vcmp.eq.s32.totalorder %v1532, %v476
        %v1565 = vsel %vm1533, 1, 0
        %v1566 = vsel %vm1534, 1, 0
        %v1567 = vsel %vm1535, 1, 0
        %v1568 = vsel %vm1536, 1, 0
        %v1569 = vsel %vm1537, 1, 0
        %v1570 = vsel %vm1538, 1, 0
        %v1571 = vsel %vm1539, 1, 0
        %v1572 = vsel %vm1540, 1, 0
        %v1573 = vsel %vm1541, 1, 0
        %v1574 = vsel %vm1542, 1, 0
        %v1575 = vsel %vm1543, 1, 0
        %v1576 = vsel %vm1544, 1, 0
        %v1577 = vsel %vm1545, 1, 0
        %v1578 = vsel %vm1546, 1, 0
        %v1579 = vsel %vm1547, 1, 0
        %v1580 = vsel %vm1548, 1, 0
        %v1581 = vsel %vm1549, 1, 0
        %v1582 = vsel %vm1550, 1, 0
        %v1583 = vsel %vm1551, 1, 0
        %v1584 = vsel %vm1552, 1, 0
        %v1585 = vsel %vm1553, 1, 0
        %v1586 = vsel %vm1554, 1, 0
        %v1587 = vsel %vm1555, 1, 0
        %v1588 = vsel %vm1556, 1, 0
        %v1589 = vsel %vm1557, 1, 0
        %v1590 = vsel %vm1558, 1, 0
        %v1591 = vsel %vm1559, 1, 0
        %v1592 = vsel %vm1560, 1, 0
        %v1593 = vsel %vm1561, 1, 0
        %v1594 = vsel %vm1562, 1, 0
        %v1595 = vsel %vm1563, 1, 0
        %v1596 = vsel %vm1564, 1, 0
        %v1597 = vadd.s32 %v1405, %v1565
        %v1598 = vadd.s32 %v1406, %v1566
        %v1599 = vadd.s32 %v1407, %v1567
        %v1600 = vadd.s32 %v1408, %v1568
        %v1601 = vadd.s32 %v1409, %v1569
        %v1602 = vadd.s32 %v1410, %v1570
        %v1603 = vadd.s32 %v1411, %v1571
        %v1604 = vadd.s32 %v1412, %v1572
        %v1605 = vadd.s32 %v1413, %v1573
        %v1606 = vadd.s32 %v1414, %v1574
        %v1607 = vadd.s32 %v1415, %v1575
        %v1608 = vadd.s32 %v1416, %v1576
        %v1609 = vadd.s32 %v1417, %v1577
        %v1610 = vadd.s32 %v1418, %v1578
        %v1611 = vadd.s32 %v1419, %v1579
        %v1612 = vadd.s32 %v1420, %v1580
        %v1613 = vadd.s32 %v1421, %v1581
        %v1614 = vadd.s32 %v1422, %v1582
        %v1615 = vadd.s32 %v1423, %v1583
        %v1616 = vadd.s32 %v1424, %v1584
        %v1617 = vadd.s32 %v1425, %v1585
        %v1618 = vadd.s32 %v1426, %v1586
        %v1619 = vadd.s32 %v1427, %v1587
        %v1620 = vadd.s32 %v1428, %v1588
        %v1621 = vadd.s32 %v1429, %v1589
        %v1622 = vadd.s32 %v1430, %v1590
        %v1623 = vadd.s32 %v1431, %v1591
        %v1624 = vadd.s32 %v1432, %v1592
        %v1625 = vadd.s32 %v1433, %v1593
        %v1626 = vadd.s32 %v1434, %v1594
        %v1627 = vadd.s32 %v1435, %v1595
        %v1628 = vadd.s32 %v1436, %v1596
        %1629 = vset.pattern.permute.xlu0 2
        %1630 = vperm.xlu0 %1629, %v1213
        %v1631 = vpop.permute.xlu0 %1630
        %1632 = vset.pattern.permute.xlu0 2
        %1633 = vperm.xlu0 %1632, %v1214
        %v1634 = vpop.permute.xlu0 %1633
        %1635 = vset.pattern.permute.xlu0 2
        %1636 = vperm.xlu0 %1635, %v1215
        %v1637 = vpop.permute.xlu0 %1636
        %1638 = vset.pattern.permute.xlu0 2
        %1639 = vperm.xlu0 %1638, %v1216
        %v1640 = vpop.permute.xlu0 %1639
        %1641 = vset.pattern.permute.xlu0 2
        %1642 = vperm.xlu0 %1641, %v1217
        %v1643 = vpop.permute.xlu0 %1642
        %1644 = vset.pattern.permute.xlu0 2
        %1645 = vperm.xlu0 %1644, %v1218
        %v1646 = vpop.permute.xlu0 %1645
        %1647 = vset.pattern.permute.xlu0 2
        %1648 = vperm.xlu0 %1647, %v1219
        %v1649 = vpop.permute.xlu0 %1648
        %1650 = vset.pattern.permute.xlu0 2
        %1651 = vperm.xlu0 %1650, %v1220
        %v1652 = vpop.permute.xlu0 %1651
        %1653 = vset.pattern.permute.xlu0 2
        %1654 = vperm.xlu0 %1653, %v1221
        %v1655 = vpop.permute.xlu0 %1654
        %1656 = vset.pattern.permute.xlu0 2
        %1657 = vperm.xlu0 %1656, %v1222
        %v1658 = vpop.permute.xlu0 %1657
        %1659 = vset.pattern.permute.xlu0 2
        %1660 = vperm.xlu0 %1659, %v1223
        %v1661 = vpop.permute.xlu0 %1660
        %1662 = vset.pattern.permute.xlu0 2
        %1663 = vperm.xlu0 %1662, %v1224
        %v1664 = vpop.permute.xlu0 %1663
        %1665 = vset.pattern.permute.xlu0 2
        %1666 = vperm.xlu0 %1665, %v1225
        %v1667 = vpop.permute.xlu0 %1666
        %1668 = vset.pattern.permute.xlu0 2
        %1669 = vperm.xlu0 %1668, %v1226
        %v1670 = vpop.permute.xlu0 %1669
        %1671 = vset.pattern.permute.xlu0 2
        %1672 = vperm.xlu0 %1671, %v1227
        %v1673 = vpop.permute.xlu0 %1672
        %1674 = vset.pattern.permute.xlu0 2
        %1675 = vperm.xlu0 %1674, %v1228
        %v1676 = vpop.permute.xlu0 %1675
        %1677 = vset.pattern.permute.xlu0 2
        %1678 = vperm.xlu0 %1677, %v1229
        %v1679 = vpop.permute.xlu0 %1678
        %1680 = vset.pattern.permute.xlu0 2
        %1681 = vperm.xlu0 %1680, %v1230
        %v1682 = vpop.permute.xlu0 %1681
        %1683 = vset.pattern.permute.xlu0 2
        %1684 = vperm.xlu0 %1683, %v1231
        %v1685 = vpop.permute.xlu0 %1684
        %1686 = vset.pattern.permute.xlu0 2
        %1687 = vperm.xlu0 %1686, %v1232
        %v1688 = vpop.permute.xlu0 %1687
        %1689 = vset.pattern.permute.xlu0 2
        %1690 = vperm.xlu0 %1689, %v1233
        %v1691 = vpop.permute.xlu0 %1690
        %1692 = vset.pattern.permute.xlu0 2
        %1693 = vperm.xlu0 %1692, %v1234
        %v1694 = vpop.permute.xlu0 %1693
        %1695 = vset.pattern.permute.xlu0 2
        %1696 = vperm.xlu0 %1695, %v1235
        %v1697 = vpop.permute.xlu0 %1696
        %1698 = vset.pattern.permute.xlu0 2
        %1699 = vperm.xlu0 %1698, %v1236
        %v1700 = vpop.permute.xlu0 %1699
        %1701 = vset.pattern.permute.xlu0 2
        %1702 = vperm.xlu0 %1701, %v1237
        %v1703 = vpop.permute.xlu0 %1702
        %1704 = vset.pattern.permute.xlu0 2
        %1705 = vperm.xlu0 %1704, %v1238
        %v1706 = vpop.permute.xlu0 %1705
        %1707 = vset.pattern.permute.xlu0 2
        %1708 = vperm.xlu0 %1707, %v1239
        %v1709 = vpop.permute.xlu0 %1708
        %1710 = vset.pattern.permute.xlu0 2
        %1711 = vperm.xlu0 %1710, %v1240
        %v1712 = vpop.permute.xlu0 %1711
        %1713 = vset.pattern.permute.xlu0 2
        %1714 = vperm.xlu0 %1713, %v1241
        %v1715 = vpop.permute.xlu0 %1714
        %1716 = vset.pattern.permute.xlu0 2
        %1717 = vperm.xlu0 %1716, %v1242
        %v1718 = vpop.permute.xlu0 %1717
        %1719 = vset.pattern.permute.xlu0 2
        %1720 = vperm.xlu0 %1719, %v1243
        %v1721 = vpop.permute.xlu0 %1720
        %1722 = vset.pattern.permute.xlu0 2
        %1723 = vperm.xlu0 %1722, %v1244
        %v1724 = vpop.permute.xlu0 %1723
        %vm1725 = vcmp.eq.s32.totalorder %v1631, %v476
        %vm1726 = vcmp.eq.s32.totalorder %v1634, %v476
        %vm1727 = vcmp.eq.s32.totalorder %v1637, %v476
        %vm1728 = vcmp.eq.s32.totalorder %v1640, %v476
        %vm1729 = vcmp.eq.s32.totalorder %v1643, %v476
        %vm1730 = vcmp.eq.s32.totalorder %v1646, %v476
        %vm1731 = vcmp.eq.s32.totalorder %v1649, %v476
        %vm1732 = vcmp.eq.s32.totalorder %v1652, %v476
        %vm1733 = vcmp.eq.s32.totalorder %v1655, %v476
        %vm1734 = vcmp.eq.s32.totalorder %v1658, %v476
        %vm1735 = vcmp.eq.s32.totalorder %v1661, %v476
        %vm1736 = vcmp.eq.s32.totalorder %v1664, %v476
        %vm1737 = vcmp.eq.s32.totalorder %v1667, %v476
        %vm1738 = vcmp.eq.s32.totalorder %v1670, %v476
        %vm1739 = vcmp.eq.s32.totalorder %v1673, %v476
        %vm1740 = vcmp.eq.s32.totalorder %v1676, %v476
        %vm1741 = vcmp.eq.s32.totalorder %v1679, %v476
        %vm1742 = vcmp.eq.s32.totalorder %v1682, %v476
        %vm1743 = vcmp.eq.s32.totalorder %v1685, %v476
        %vm1744 = vcmp.eq.s32.totalorder %v1688, %v476
        %vm1745 = vcmp.eq.s32.totalorder %v1691, %v476
        %vm1746 = vcmp.eq.s32.totalorder %v1694, %v476
        %vm1747 = vcmp.eq.s32.totalorder %v1697, %v476
        %vm1748 = vcmp.eq.s32.totalorder %v1700, %v476
        %vm1749 = vcmp.eq.s32.totalorder %v1703, %v476
        %vm1750 = vcmp.eq.s32.totalorder %v1706, %v476
        %vm1751 = vcmp.eq.s32.totalorder %v1709, %v476
        %vm1752 = vcmp.eq.s32.totalorder %v1712, %v476
        %vm1753 = vcmp.eq.s32.totalorder %v1715, %v476
        %vm1754 = vcmp.eq.s32.totalorder %v1718, %v476
        %vm1755 = vcmp.eq.s32.totalorder %v1721, %v476
        %vm1756 = vcmp.eq.s32.totalorder %v1724, %v476
        %v1757 = vsel %vm1725, 1, 0
        %v1758 = vsel %vm1726, 1, 0
        %v1759 = vsel %vm1727, 1, 0
        %v1760 = vsel %vm1728, 1, 0
        %v1761 = vsel %vm1729, 1, 0
        %v1762 = vsel %vm1730, 1, 0
        %v1763 = vsel %vm1731, 1, 0
        %v1764 = vsel %vm1732, 1, 0
        %v1765 = vsel %vm1733, 1, 0
        %v1766 = vsel %vm1734, 1, 0
        %v1767 = vsel %vm1735, 1, 0
        %v1768 = vsel %vm1736, 1, 0
        %v1769 = vsel %vm1737, 1, 0
        %v1770 = vsel %vm1738, 1, 0
        %v1771 = vsel %vm1739, 1, 0
        %v1772 = vsel %vm1740, 1, 0
        %v1773 = vsel %vm1741, 1, 0
        %v1774 = vsel %vm1742, 1, 0
        %v1775 = vsel %vm1743, 1, 0
        %v1776 = vsel %vm1744, 1, 0
        %v1777 = vsel %vm1745, 1, 0
        %v1778 = vsel %vm1746, 1, 0
        %v1779 = vsel %vm1747, 1, 0
        %v1780 = vsel %vm1748, 1, 0
        %v1781 = vsel %vm1749, 1, 0
        %v1782 = vsel %vm1750, 1, 0
        %v1783 = vsel %vm1751, 1, 0
        %v1784 = vsel %vm1752, 1, 0
        %v1785 = vsel %vm1753, 1, 0
        %v1786 = vsel %vm1754, 1, 0
        %v1787 = vsel %vm1755, 1, 0
        %v1788 = vsel %vm1756, 1, 0
        %v1789 = vadd.s32 %v1597, %v1757
        %v1790 = vadd.s32 %v1598, %v1758
        %v1791 = vadd.s32 %v1599, %v1759
        %v1792 = vadd.s32 %v1600, %v1760
        %v1793 = vadd.s32 %v1601, %v1761
        %v1794 = vadd.s32 %v1602, %v1762
        %v1795 = vadd.s32 %v1603, %v1763
        %v1796 = vadd.s32 %v1604, %v1764
        %v1797 = vadd.s32 %v1605, %v1765
        %v1798 = vadd.s32 %v1606, %v1766
        %v1799 = vadd.s32 %v1607, %v1767
        %v1800 = vadd.s32 %v1608, %v1768
        %v1801 = vadd.s32 %v1609, %v1769
        %v1802 = vadd.s32 %v1610, %v1770
        %v1803 = vadd.s32 %v1611, %v1771
        %v1804 = vadd.s32 %v1612, %v1772
        %v1805 = vadd.s32 %v1613, %v1773
        %v1806 = vadd.s32 %v1614, %v1774
        %v1807 = vadd.s32 %v1615, %v1775
        %v1808 = vadd.s32 %v1616, %v1776
        %v1809 = vadd.s32 %v1617, %v1777
        %v1810 = vadd.s32 %v1618, %v1778
        %v1811 = vadd.s32 %v1619, %v1779
        %v1812 = vadd.s32 %v1620, %v1780
        %v1813 = vadd.s32 %v1621, %v1781
        %v1814 = vadd.s32 %v1622, %v1782
        %v1815 = vadd.s32 %v1623, %v1783
        %v1816 = vadd.s32 %v1624, %v1784
        %v1817 = vadd.s32 %v1625, %v1785
        %v1818 = vadd.s32 %v1626, %v1786
        %v1819 = vadd.s32 %v1627, %v1787
        %v1820 = vadd.s32 %v1628, %v1788
        %v1821 = vcvt.s32.f32 %v1789
        %v1822 = vcvt.s32.f32 %v1790
        %v1823 = vcvt.s32.f32 %v1791
        %v1824 = vcvt.s32.f32 %v1792
        %v1825 = vcvt.s32.f32 %v1793
        %v1826 = vcvt.s32.f32 %v1794
        %v1827 = vcvt.s32.f32 %v1795
        %v1828 = vcvt.s32.f32 %v1796
        %v1829 = vcvt.s32.f32 %v1797
        %v1830 = vcvt.s32.f32 %v1798
        %v1831 = vcvt.s32.f32 %v1799
        %v1832 = vcvt.s32.f32 %v1800
        %v1833 = vcvt.s32.f32 %v1801
        %v1834 = vcvt.s32.f32 %v1802
        %v1835 = vcvt.s32.f32 %v1803
        %v1836 = vcvt.s32.f32 %v1804
        %v1837 = vcvt.s32.f32 %v1805
        %v1838 = vcvt.s32.f32 %v1806
        %v1839 = vcvt.s32.f32 %v1807
        %v1840 = vcvt.s32.f32 %v1808
        %v1841 = vcvt.s32.f32 %v1809
        %v1842 = vcvt.s32.f32 %v1810
        %v1843 = vcvt.s32.f32 %v1811
        %v1844 = vcvt.s32.f32 %v1812
        %v1845 = vcvt.s32.f32 %v1813
        %v1846 = vcvt.s32.f32 %v1814
        %v1847 = vcvt.s32.f32 %v1815
        %v1848 = vcvt.s32.f32 %v1816
        %v1849 = vcvt.s32.f32 %v1817
        %v1850 = vcvt.s32.f32 %v1818
        %v1851 = vcvt.s32.f32 %v1819
        %v1852 = vcvt.s32.f32 %v1820
        %v1853 = vpack.c.bf16 %v1822, %v1821
        %v1854 = vpack.c.bf16 %v1824, %v1823
        %v1855 = vpack.c.bf16 %v1826, %v1825
        %v1856 = vpack.c.bf16 %v1828, %v1827
        %v1857 = vpack.c.bf16 %v1830, %v1829
        %v1858 = vpack.c.bf16 %v1832, %v1831
        %v1859 = vpack.c.bf16 %v1834, %v1833
        %v1860 = vpack.c.bf16 %v1836, %v1835
        %v1861 = vpack.c.bf16 %v1838, %v1837
        %v1862 = vpack.c.bf16 %v1840, %v1839
        %v1863 = vpack.c.bf16 %v1842, %v1841
        %v1864 = vpack.c.bf16 %v1844, %v1843
        %v1865 = vpack.c.bf16 %v1846, %v1845
        %v1866 = vpack.c.bf16 %v1848, %v1847
        %v1867 = vpack.c.bf16 %v1850, %v1849
        %v1868 = vpack.c.bf16 %v1852, %v1851
        %v1869 = vld [vmem:[%s2] sm:$0xf]
        %v1870 = vld [vmem:[%s2 + $0x4] sm:$0xf]
        %v1871 = vld [vmem:[%s2 + $0x8] sm:$0xf]
        %v1872 = vld [vmem:[%s2 + $0xc] sm:$0xf]
        %v1873 = vld [vmem:[%s2 + $0x10] sm:$0xf]
        %v1874 = vld [vmem:[%s2 + $0x14] sm:$0xf]
        %v1875 = vld [vmem:[%s2 + $0x18] sm:$0xf]
        %v1876 = vld [vmem:[%s2 + $0x1c] sm:$0xf]
        %v1877 = vld [vmem:[%s2 + $0x20] sm:$0xf]
        %v1878 = vld [vmem:[%s2 + $0x24] sm:$0xf]
        %v1879 = vld [vmem:[%s2 + $0x28] sm:$0xf]
        %v1880 = vld [vmem:[%s2 + $0x2c] sm:$0x1]
        %v1893 = vunpack.c.l.b16 %v1869
        %v1894 = vunpack.c.l.b16 %v1870
        %v1895 = vunpack.c.l.b16 %v1871
        %v1896 = vunpack.c.l.b16 %v1872
        %v1897 = vunpack.c.l.b16 %v1873
        %v1898 = vunpack.c.l.b16 %v1874
        %v1899 = vunpack.c.l.b16 %v1875
        %v1900 = vunpack.c.l.b16 %v1876
        %v1901 = vunpack.c.l.b16 %v1877
        %v1902 = vunpack.c.l.b16 %v1878
        %v1903 = vunpack.c.l.b16 %v1879
        %v1904 = vunpack.c.l.b16 %v1880
        %v1905 = vpack.c.b16 %v1894, %v1893
        %v1906 = vpack.c.b16 %v1896, %v1895
        %v1907 = vpack.c.b16 %v1898, %v1897
        %v1908 = vpack.c.b16 %v1900, %v1899
        %v1909 = vpack.c.b16 %v1902, %v1901
        %v1910 = vpack.c.b16 %v1904, %v1903
        %vm1916 = vcmask 736256
        %v1918 = vsel %vm1916, %v1853, 0
        %v1921 = vsel %vm1916, %v1854, 0
        %v1924 = vsel %vm1916, %v1855, 0
        %v1927 = vsel %vm1916, %v1856, 0
        %v1930 = vsel %vm1916, %v1857, 0
        %v1933 = vsel %vm1916, %v1858, 0
        %v1936 = vsel %vm1916, %v1859, 0
        %v1939 = vsel %vm1916, %v1860, 0
        %v1942 = vsel %vm1916, %v1861, 0
        %v1945 = vsel %vm1916, %v1862, 0
        %v1948 = vsel %vm1916, %v1863, 0
        %v1951 = vsel %vm1916, %v1864, 0
        %v1954 = vsel %vm1916, %v1865, 0
        %v1957 = vsel %vm1916, %v1866, 0
        %v1960 = vsel %vm1916, %v1867, 0
        %v1963 = vsel %vm1916, %v1868, 0
        %vm1965 = vcmask 1044480
        %v1967 = vsel %vm1965, %v1910, 0
        %1969 = vmatprep.subr.bf16.mxu0 0
        %1970 = vmatpush1.bf16.msra.mxu0 0
        %1971 = vmatprep.subr.bf16.mxu0 0
        %1972 = vmatpush1.bf16.msra.mxu0 0
        %1973 = vmatprep.subr.bf16.mxu0 0
        %1974 = vmatpush1.bf16.msra.mxu0 %v1967
        %1975 = vmatprep.subr.bf16.mxu0 0
        %1976 = vmatpush1.bf16.msra.mxu0 %v1909
        %1977 = vmatprep.subr.bf16.mxu0 0
        %1978 = vmatpush1.bf16.msra.mxu0 %v1908
        %1979 = vmatprep.subr.bf16.mxu0 0
        %1980 = vmatpush1.bf16.msra.mxu0 %v1907
        %1981 = vmatprep.subr.bf16.mxu0 0
        %1982 = vmatpush1.bf16.msra.mxu0 %v1906
        %1983 = vmatprep.subr.bf16.mxu0 0
        %1984 = vmatpush1.bf16.msra.mxu0 %v1905
        %1985 = vmatprep.subr.bf16.mxu0 0
        %1986 = vmatpush2.bf16.msra.mxu0 0
        %1987 = vmatprep.subr.bf16.mxu0 0
        %1988 = vmatpush2.bf16.msra.mxu0 0
        %1989 = vmatprep.subr.bf16.mxu0 0
        %1990 = vmatpush2.bf16.msra.mxu0 0
        %1991 = vmatprep.subr.bf16.mxu0 0
        %1992 = vmatpush2.bf16.msra.mxu0 0
        %1993 = vmatprep.subr.bf16.mxu0 0
        %1994 = vmatpush2.bf16.msra.mxu0 0
        %1995 = vmatprep.subr.bf16.mxu0 0
        %1996 = vmatpush2.bf16.msra.mxu0 0
        %1997 = vmatprep.subr.bf16.mxu0 0
        %1998 = vmatpush2.bf16.msra.mxu0 0
        %1999 = vmatprep.subr.bf16.mxu0 0
        %2000 = vmatpush2.bf16.msra.mxu0 0
        %2001 = vmatprep.mubr.bf16.mxu0 0
        %2002 = vmatmul.mubr.bf16.gmra.mxu0 %v1918
        %v2003 = vpop.f32.mrf.mxu0
        %v2004 = vadd.f32 0.0, %v2003
        %v2005 = vpop.f32.mrf.mxu0
        %v2006 = vpop.f32.mrf.mxu0
        %v2007 = vadd.f32 0.0, %v2006
        %v2008 = vpop.f32.mrf.mxu0
        %2009 = vmatprep.mubr.bf16.mxu0 0
        %2010 = vmatmul.mubr.bf16.gmra.mxu0 %v1921
        %v2011 = vpop.f32.mrf.mxu0
        %v2012 = vadd.f32 0.0, %v2011
        %v2013 = vpop.f32.mrf.mxu0
        %v2014 = vpop.f32.mrf.mxu0
        %v2015 = vadd.f32 0.0, %v2014
        %v2016 = vpop.f32.mrf.mxu0
        %2017 = vmatprep.mubr.bf16.mxu0 0
        %2018 = vmatmul.mubr.bf16.gmra.mxu0 %v1924
        %v2019 = vpop.f32.mrf.mxu0
        %v2020 = vadd.f32 0.0, %v2019
        %v2021 = vpop.f32.mrf.mxu0
        %v2022 = vpop.f32.mrf.mxu0
        %v2023 = vadd.f32 0.0, %v2022
        %v2024 = vpop.f32.mrf.mxu0
        %2025 = vmatprep.mubr.bf16.mxu0 0
        %2026 = vmatmul.mubr.bf16.gmra.mxu0 %v1927
        %v2027 = vpop.f32.mrf.mxu0
        %v2028 = vadd.f32 0.0, %v2027
        %v2029 = vpop.f32.mrf.mxu0
        %v2030 = vpop.f32.mrf.mxu0
        %v2031 = vadd.f32 0.0, %v2030
        %v2032 = vpop.f32.mrf.mxu0
        %2033 = vmatprep.mubr.bf16.mxu0 0
        %2034 = vmatmul.mubr.bf16.gmra.mxu0 %v1930
        %v2035 = vpop.f32.mrf.mxu0
        %v2036 = vadd.f32 0.0, %v2035
        %v2037 = vpop.f32.mrf.mxu0
        %v2038 = vpop.f32.mrf.mxu0
        %v2039 = vadd.f32 0.0, %v2038
        %v2040 = vpop.f32.mrf.mxu0
        %2041 = vmatprep.mubr.bf16.mxu0 0
        %2042 = vmatmul.mubr.bf16.gmra.mxu0 %v1933
        %v2043 = vpop.f32.mrf.mxu0
        %v2044 = vadd.f32 0.0, %v2043
        %v2045 = vpop.f32.mrf.mxu0
        %v2046 = vpop.f32.mrf.mxu0
        %v2047 = vadd.f32 0.0, %v2046
        %v2048 = vpop.f32.mrf.mxu0
        %2049 = vmatprep.mubr.bf16.mxu0 0
        %2050 = vmatmul.mubr.bf16.gmra.mxu0 %v1936
        %v2051 = vpop.f32.mrf.mxu0
        %v2052 = vadd.f32 0.0, %v2051
        %v2053 = vpop.f32.mrf.mxu0
        %v2054 = vpop.f32.mrf.mxu0
        %v2055 = vadd.f32 0.0, %v2054
        %v2056 = vpop.f32.mrf.mxu0
        %2057 = vmatprep.mubr.bf16.mxu0 0
        %2058 = vmatmul.mubr.bf16.gmra.mxu0 %v1939
        %v2059 = vpop.f32.mrf.mxu0
        %v2060 = vadd.f32 0.0, %v2059
        %v2061 = vpop.f32.mrf.mxu0
        %v2062 = vpop.f32.mrf.mxu0
        %v2063 = vadd.f32 0.0, %v2062
        %v2064 = vpop.f32.mrf.mxu0
        %2065 = vmatprep.mubr.bf16.mxu0 0
        %2066 = vmatmul.mubr.bf16.gmra.mxu0 %v1942
        %v2067 = vpop.f32.mrf.mxu0
        %v2068 = vadd.f32 0.0, %v2067
        %v2069 = vpop.f32.mrf.mxu0
        %v2070 = vpop.f32.mrf.mxu0
        %v2071 = vadd.f32 0.0, %v2070
        %v2072 = vpop.f32.mrf.mxu0
        %2073 = vmatprep.mubr.bf16.mxu0 0
        %2074 = vmatmul.mubr.bf16.gmra.mxu0 %v1945
        %v2075 = vpop.f32.mrf.mxu0
        %v2076 = vadd.f32 0.0, %v2075
        %v2077 = vpop.f32.mrf.mxu0
        %v2078 = vpop.f32.mrf.mxu0
        %v2079 = vadd.f32 0.0, %v2078
        %v2080 = vpop.f32.mrf.mxu0
        %2081 = vmatprep.mubr.bf16.mxu0 0
        %2082 = vmatmul.mubr.bf16.gmra.mxu0 %v1948
        %v2083 = vpop.f32.mrf.mxu0
        %v2084 = vadd.f32 0.0, %v2083
        %v2085 = vpop.f32.mrf.mxu0
        %v2086 = vpop.f32.mrf.mxu0
        %v2087 = vadd.f32 0.0, %v2086
        %v2088 = vpop.f32.mrf.mxu0
        %2089 = vmatprep.mubr.bf16.mxu0 0
        %2090 = vmatmul.mubr.bf16.gmra.mxu0 %v1951
        %v2091 = vpop.f32.mrf.mxu0
        %v2092 = vadd.f32 0.0, %v2091
        %v2093 = vpop.f32.mrf.mxu0
        %v2094 = vpop.f32.mrf.mxu0
        %v2095 = vadd.f32 0.0, %v2094
        %v2096 = vpop.f32.mrf.mxu0
        %2097 = vmatprep.mubr.bf16.mxu0 0
        %2098 = vmatmul.mubr.bf16.gmra.mxu0 %v1954
        %v2099 = vpop.f32.mrf.mxu0
        %v2100 = vadd.f32 0.0, %v2099
        %v2101 = vpop.f32.mrf.mxu0
        %v2102 = vpop.f32.mrf.mxu0
        %v2103 = vadd.f32 0.0, %v2102
        %v2104 = vpop.f32.mrf.mxu0
        %2105 = vmatprep.mubr.bf16.mxu0 0
        %2106 = vmatmul.mubr.bf16.gmra.mxu0 %v1957
        %v2107 = vpop.f32.mrf.mxu0
        %v2108 = vadd.f32 0.0, %v2107
        %v2109 = vpop.f32.mrf.mxu0
        %v2110 = vpop.f32.mrf.mxu0
        %v2111 = vadd.f32 0.0, %v2110
        %v2112 = vpop.f32.mrf.mxu0
        %2113 = vmatprep.mubr.bf16.mxu0 0
        %2114 = vmatmul.mubr.bf16.gmra.mxu0 %v1960
        %v2115 = vpop.f32.mrf.mxu0
        %v2116 = vadd.f32 0.0, %v2115
        %v2117 = vpop.f32.mrf.mxu0
        %v2118 = vpop.f32.mrf.mxu0
        %v2119 = vadd.f32 0.0, %v2118
        %v2120 = vpop.f32.mrf.mxu0
        %2121 = vmatprep.mubr.bf16.mxu0 0
        %2122 = vmatmul.mubr.bf16.gmra.mxu0 %v1963
        %v2123 = vpop.f32.mrf.mxu0
        %v2124 = vadd.f32 0.0, %v2123
        %v2125 = vpop.f32.mrf.mxu0
        %v2126 = vpop.f32.mrf.mxu0
        %v2127 = vadd.f32 0.0, %v2126
        %v2128 = vpop.f32.mrf.mxu0
        %2129 = vdwg.mxu0
        %2162 = vrot.lane.b32.xlu0 %v2004, 96
        %v2163 = vpop.permute.xlu0 %2162
        %2164 = vrot.lane.b32.xlu0 %v2007, 96
        %v2165 = vpop.permute.xlu0 %2164
        %2166 = vrot.lane.b32.xlu0 %v2012, 96
        %v2167 = vpop.permute.xlu0 %2166
        %2168 = vrot.lane.b32.xlu0 %v2015, 96
        %v2169 = vpop.permute.xlu0 %2168
        %2170 = vrot.lane.b32.xlu0 %v2020, 96
        %v2171 = vpop.permute.xlu0 %2170
        %2172 = vrot.lane.b32.xlu0 %v2023, 96
        %v2173 = vpop.permute.xlu0 %2172
        %2174 = vrot.lane.b32.xlu0 %v2028, 96
        %v2175 = vpop.permute.xlu0 %2174
        %2176 = vrot.lane.b32.xlu0 %v2031, 96
        %v2177 = vpop.permute.xlu0 %2176
        %2178 = vrot.lane.b32.xlu0 %v2036, 96
        %v2179 = vpop.permute.xlu0 %2178
        %2180 = vrot.lane.b32.xlu0 %v2039, 96
        %v2181 = vpop.permute.xlu0 %2180
        %2182 = vrot.lane.b32.xlu0 %v2044, 96
        %v2183 = vpop.permute.xlu0 %2182
        %2184 = vrot.lane.b32.xlu0 %v2047, 96
        %v2185 = vpop.permute.xlu0 %2184
        %2186 = vrot.lane.b32.xlu0 %v2052, 96
        %v2187 = vpop.permute.xlu0 %2186
        %2188 = vrot.lane.b32.xlu0 %v2055, 96
        %v2189 = vpop.permute.xlu0 %2188
        %2190 = vrot.lane.b32.xlu0 %v2060, 96
        %v2191 = vpop.permute.xlu0 %2190
        %2192 = vrot.lane.b32.xlu0 %v2063, 96
        %v2193 = vpop.permute.xlu0 %2192
        %2194 = vrot.lane.b32.xlu0 %v2068, 96
        %v2195 = vpop.permute.xlu0 %2194
        %2196 = vrot.lane.b32.xlu0 %v2071, 96
        %v2197 = vpop.permute.xlu0 %2196
        %2198 = vrot.lane.b32.xlu0 %v2076, 96
        %v2199 = vpop.permute.xlu0 %2198
        %2200 = vrot.lane.b32.xlu0 %v2079, 96
        %v2201 = vpop.permute.xlu0 %2200
        %2202 = vrot.lane.b32.xlu0 %v2084, 96
        %v2203 = vpop.permute.xlu0 %2202
        %2204 = vrot.lane.b32.xlu0 %v2087, 96
        %v2205 = vpop.permute.xlu0 %2204
        %2206 = vrot.lane.b32.xlu0 %v2092, 96
        %v2207 = vpop.permute.xlu0 %2206
        %2208 = vrot.lane.b32.xlu0 %v2095, 96
        %v2209 = vpop.permute.xlu0 %2208
        %2210 = vrot.lane.b32.xlu0 %v2100, 96
        %v2211 = vpop.permute.xlu0 %2210
        %2212 = vrot.lane.b32.xlu0 %v2103, 96
        %v2213 = vpop.permute.xlu0 %2212
        %2214 = vrot.lane.b32.xlu0 %v2108, 96
        %v2215 = vpop.permute.xlu0 %2214
        %2216 = vrot.lane.b32.xlu0 %v2111, 96
        %v2217 = vpop.permute.xlu0 %2216
        %2218 = vrot.lane.b32.xlu0 %v2116, 96
        %v2219 = vpop.permute.xlu0 %2218
        %2220 = vrot.lane.b32.xlu0 %v2119, 96
        %v2221 = vpop.permute.xlu0 %2220
        %2222 = vrot.lane.b32.xlu0 %v2124, 96
        %v2223 = vpop.permute.xlu0 %2222
        %2224 = vrot.lane.b32.xlu0 %v2127, 96
        %v2225 = vpop.permute.xlu0 %2224
        %v2258 = vadd.f32 %v2004, %v2163
        %v2259 = vadd.f32 %v2007, %v2165
        %v2260 = vadd.f32 %v2012, %v2167
        %v2261 = vadd.f32 %v2015, %v2169
        %v2262 = vadd.f32 %v2020, %v2171
        %v2263 = vadd.f32 %v2023, %v2173
        %v2264 = vadd.f32 %v2028, %v2175
        %v2265 = vadd.f32 %v2031, %v2177
        %v2266 = vadd.f32 %v2036, %v2179
        %v2267 = vadd.f32 %v2039, %v2181
        %v2268 = vadd.f32 %v2044, %v2183
        %v2269 = vadd.f32 %v2047, %v2185
        %v2270 = vadd.f32 %v2052, %v2187
        %v2271 = vadd.f32 %v2055, %v2189
        %v2272 = vadd.f32 %v2060, %v2191
        %v2273 = vadd.f32 %v2063, %v2193
        %v2274 = vadd.f32 %v2068, %v2195
        %v2275 = vadd.f32 %v2071, %v2197
        %v2276 = vadd.f32 %v2076, %v2199
        %v2277 = vadd.f32 %v2079, %v2201
        %v2278 = vadd.f32 %v2084, %v2203
        %v2279 = vadd.f32 %v2087, %v2205
        %v2280 = vadd.f32 %v2092, %v2207
        %v2281 = vadd.f32 %v2095, %v2209
        %v2282 = vadd.f32 %v2100, %v2211
        %v2283 = vadd.f32 %v2103, %v2213
        %v2284 = vadd.f32 %v2108, %v2215
        %v2285 = vadd.f32 %v2111, %v2217
        %v2286 = vadd.f32 %v2116, %v2219
        %v2287 = vadd.f32 %v2119, %v2221
        %v2288 = vadd.f32 %v2124, %v2223
        %v2289 = vadd.f32 %v2127, %v2225
        %v2290 = vmul.f32 %v2004, %v2163
        %v2291 = vmul.f32 %v2007, %v2165
        %v2292 = vmul.f32 %v2012, %v2167
        %v2293 = vmul.f32 %v2015, %v2169
        %v2294 = vmul.f32 %v2020, %v2171
        %v2295 = vmul.f32 %v2023, %v2173
        %v2296 = vmul.f32 %v2028, %v2175
        %v2297 = vmul.f32 %v2031, %v2177
        %v2298 = vmul.f32 %v2036, %v2179
        %v2299 = vmul.f32 %v2039, %v2181
        %v2300 = vmul.f32 %v2044, %v2183
        %v2301 = vmul.f32 %v2047, %v2185
        %v2302 = vmul.f32 %v2052, %v2187
        %v2303 = vmul.f32 %v2055, %v2189
        %v2304 = vmul.f32 %v2060, %v2191
        %v2305 = vmul.f32 %v2063, %v2193
        %v2306 = vmul.f32 %v2068, %v2195
        %v2307 = vmul.f32 %v2071, %v2197
        %v2308 = vmul.f32 %v2076, %v2199
        %v2309 = vmul.f32 %v2079, %v2201
        %v2310 = vmul.f32 %v2084, %v2203
        %v2311 = vmul.f32 %v2087, %v2205
        %v2312 = vmul.f32 %v2092, %v2207
        %v2313 = vmul.f32 %v2095, %v2209
        %v2314 = vmul.f32 %v2100, %v2211
        %v2315 = vmul.f32 %v2103, %v2213
        %v2316 = vmul.f32 %v2108, %v2215
        %v2317 = vmul.f32 %v2111, %v2217
        %v2318 = vmul.f32 %v2116, %v2219
        %v2319 = vmul.f32 %v2119, %v2221
        %v2320 = vmul.f32 %v2124, %v2223
        %v2321 = vmul.f32 %v2127, %v2225
        %v2322 = vadd.f32 %v2258, %v2290
        %v2323 = vadd.f32 %v2259, %v2291
        %v2324 = vadd.f32 %v2260, %v2292
        %v2325 = vadd.f32 %v2261, %v2293
        %v2326 = vadd.f32 %v2262, %v2294
        %v2327 = vadd.f32 %v2263, %v2295
        %v2328 = vadd.f32 %v2264, %v2296
        %v2329 = vadd.f32 %v2265, %v2297
        %v2330 = vadd.f32 %v2266, %v2298
        %v2331 = vadd.f32 %v2267, %v2299
        %v2332 = vadd.f32 %v2268, %v2300
        %v2333 = vadd.f32 %v2269, %v2301
        %v2334 = vadd.f32 %v2270, %v2302
        %v2335 = vadd.f32 %v2271, %v2303
        %v2336 = vadd.f32 %v2272, %v2304
        %v2337 = vadd.f32 %v2273, %v2305
        %v2338 = vadd.f32 %v2274, %v2306
        %v2339 = vadd.f32 %v2275, %v2307
        %v2340 = vadd.f32 %v2276, %v2308
        %v2341 = vadd.f32 %v2277, %v2309
        %v2342 = vadd.f32 %v2278, %v2310
        %v2343 = vadd.f32 %v2279, %v2311
        %v2344 = vadd.f32 %v2280, %v2312
        %v2345 = vadd.f32 %v2281, %v2313
        %v2346 = vadd.f32 %v2282, %v2314
        %v2347 = vadd.f32 %v2283, %v2315
        %v2348 = vadd.f32 %v2284, %v2316
        %v2349 = vadd.f32 %v2285, %v2317
        %v2350 = vadd.f32 %v2286, %v2318
        %v2351 = vadd.f32 %v2287, %v2319
        %v2352 = vadd.f32 %v2288, %v2320
        %v2353 = vadd.f32 %v2289, %v2321
        %v2354 = vpack.c.bf16 %v2323, %v2322
        %v2355 = vpack.c.bf16 %v2325, %v2324
        %v2356 = vpack.c.bf16 %v2327, %v2326
        %v2357 = vpack.c.bf16 %v2329, %v2328
        %v2358 = vpack.c.bf16 %v2331, %v2330
        %v2359 = vpack.c.bf16 %v2333, %v2332
        %v2360 = vpack.c.bf16 %v2335, %v2334
        %v2361 = vpack.c.bf16 %v2337, %v2336
        %v2362 = vpack.c.bf16 %v2339, %v2338
        %v2363 = vpack.c.bf16 %v2341, %v2340
        %v2364 = vpack.c.bf16 %v2343, %v2342
        %v2365 = vpack.c.bf16 %v2345, %v2344
        %v2366 = vpack.c.bf16 %v2347, %v2346
        %v2367 = vpack.c.bf16 %v2349, %v2348
        %v2368 = vpack.c.bf16 %v2351, %v2350
        %v2369 = vpack.c.bf16 %v2353, %v2352
        %v2370 = vld [vmem:[%s3] sm:$0xf]
        %v2371 = vld [vmem:[%s3 + $0x4] sm:$0xf]
        %v2372 = vld [vmem:[%s3 + $0x8] sm:$0xf]
        %v2373 = vld [vmem:[%s3 + $0xc] sm:$0xf]
        %v2374 = vld [vmem:[%s4] sm:$0x1]
        %v2376 = vlaneseq
        %v2377 = vshrl.u32 %v2376, 7
        %v2378 = vsub.s32 0, %v2377
        %v2379 = vrot.slane %v2374, %v2378
        %v2385 = vunpack.c.l.b16 %v2370
        %v2386 = vunpack.c.l.b16 %v2371
        %v2387 = vunpack.c.l.b16 %v2372
        %v2388 = vunpack.c.l.b16 %v2373
        %v2389 = vpack.c.b16 %v2386, %v2385
        %v2390 = vpack.c.b16 %v2388, %v2387
        %vm2393 = vcmask 261120
        %v2395 = vsel %vm2393, %v2354, 0
        %v2398 = vsel %vm2393, %v2355, 0
        %v2401 = vsel %vm2393, %v2356, 0
        %v2404 = vsel %vm2393, %v2357, 0
        %v2407 = vsel %vm2393, %v2358, 0
        %v2410 = vsel %vm2393, %v2359, 0
        %v2413 = vsel %vm2393, %v2360, 0
        %v2416 = vsel %vm2393, %v2361, 0
        %v2419 = vsel %vm2393, %v2362, 0
        %v2422 = vsel %vm2393, %v2363, 0
        %v2425 = vsel %vm2393, %v2364, 0
        %v2428 = vsel %vm2393, %v2365, 0
        %v2431 = vsel %vm2393, %v2366, 0
        %v2434 = vsel %vm2393, %v2367, 0
        %v2437 = vsel %vm2393, %v2368, 0
        %v2440 = vsel %vm2393, %v2369, 0
        %2442 = vmatprep.subr.bf16.mxu0 0
        %2443 = vmatpush1.bf16.msra.mxu0 0
        %2444 = vmatprep.subr.bf16.mxu0 0
        %2445 = vmatpush1.bf16.msra.mxu0 0
        %2446 = vmatprep.subr.bf16.mxu0 0
        %2447 = vmatpush1.bf16.msra.mxu0 0
        %2448 = vmatprep.subr.bf16.mxu0 0
        %2449 = vmatpush1.bf16.msra.mxu0 0
        %2450 = vmatprep.subr.bf16.mxu0 0
        %2451 = vmatpush1.bf16.msra.mxu0 0
        %2452 = vmatprep.subr.bf16.mxu0 0
        %2453 = vmatpush1.bf16.msra.mxu0 0
        %2454 = vmatprep.subr.bf16.mxu0 0
        %2455 = vmatpush1.bf16.msra.mxu0 %v2390
        %2456 = vmatprep.subr.bf16.mxu0 0
        %2457 = vmatpush1.bf16.msra.mxu0 %v2389
        %2458 = vmatprep.subr.bf16.mxu0 0
        %2459 = vmatpush2.bf16.msra.mxu0 0
        %2460 = vmatprep.subr.bf16.mxu0 0
        %2461 = vmatpush2.bf16.msra.mxu0 0
        %2462 = vmatprep.subr.bf16.mxu0 0
        %2463 = vmatpush2.bf16.msra.mxu0 0
        %2464 = vmatprep.subr.bf16.mxu0 0
        %2465 = vmatpush2.bf16.msra.mxu0 0
        %2466 = vmatprep.subr.bf16.mxu0 0
        %2467 = vmatpush2.bf16.msra.mxu0 0
        %2468 = vmatprep.subr.bf16.mxu0 0
        %2469 = vmatpush2.bf16.msra.mxu0 0
        %2470 = vmatprep.subr.bf16.mxu0 0
        %2471 = vmatpush2.bf16.msra.mxu0 0
        %2472 = vmatprep.subr.bf16.mxu0 0
        %2473 = vmatpush2.bf16.msra.mxu0 0
        %2474 = vmatprep.mubr.bf16.mxu0 0
        %2475 = vmatmul.mubr.bf16.gmra.mxu0 %v2395
        %v2476 = vpop.f32.mrf.mxu0
        %v2477 = vadd.f32 %v2379, %v2476
        %v2478 = vpop.f32.mrf.mxu0
        %v2479 = vpop.f32.mrf.mxu0
        %v2480 = vadd.f32 %v2379, %v2479
        %v2481 = vpop.f32.mrf.mxu0
        %2482 = vmatprep.mubr.bf16.mxu0 0
        %2483 = vmatmul.mubr.bf16.gmra.mxu0 %v2398
        %v2484 = vpop.f32.mrf.mxu0
        %v2485 = vadd.f32 %v2379, %v2484
        %v2486 = vpop.f32.mrf.mxu0
        %v2487 = vpop.f32.mrf.mxu0
        %v2488 = vadd.f32 %v2379, %v2487
        %v2489 = vpop.f32.mrf.mxu0
        %2490 = vmatprep.mubr.bf16.mxu0 0
        %2491 = vmatmul.mubr.bf16.gmra.mxu0 %v2401
        %v2492 = vpop.f32.mrf.mxu0
        %v2493 = vadd.f32 %v2379, %v2492
        %v2494 = vpop.f32.mrf.mxu0
        %v2495 = vpop.f32.mrf.mxu0
        %v2496 = vadd.f32 %v2379, %v2495
        %v2497 = vpop.f32.mrf.mxu0
        %2498 = vmatprep.mubr.bf16.mxu0 0
        %2499 = vmatmul.mubr.bf16.gmra.mxu0 %v2404
        %v2500 = vpop.f32.mrf.mxu0
        %v2501 = vadd.f32 %v2379, %v2500
        %v2502 = vpop.f32.mrf.mxu0
        %v2503 = vpop.f32.mrf.mxu0
        %v2504 = vadd.f32 %v2379, %v2503
        %v2505 = vpop.f32.mrf.mxu0
        %2506 = vmatprep.mubr.bf16.mxu0 0
        %2507 = vmatmul.mubr.bf16.gmra.mxu0 %v2407
        %v2508 = vpop.f32.mrf.mxu0
        %v2509 = vadd.f32 %v2379, %v2508
        %v2510 = vpop.f32.mrf.mxu0
        %v2511 = vpop.f32.mrf.mxu0
        %v2512 = vadd.f32 %v2379, %v2511
        %v2513 = vpop.f32.mrf.mxu0
        %2514 = vmatprep.mubr.bf16.mxu0 0
        %2515 = vmatmul.mubr.bf16.gmra.mxu0 %v2410
        %v2516 = vpop.f32.mrf.mxu0
        %v2517 = vadd.f32 %v2379, %v2516
        %v2518 = vpop.f32.mrf.mxu0
        %v2519 = vpop.f32.mrf.mxu0
        %v2520 = vadd.f32 %v2379, %v2519
        %v2521 = vpop.f32.mrf.mxu0
        %2522 = vmatprep.mubr.bf16.mxu0 0
        %2523 = vmatmul.mubr.bf16.gmra.mxu0 %v2413
        %v2524 = vpop.f32.mrf.mxu0
        %v2525 = vadd.f32 %v2379, %v2524
        %v2526 = vpop.f32.mrf.mxu0
        %v2527 = vpop.f32.mrf.mxu0
        %v2528 = vadd.f32 %v2379, %v2527
        %v2529 = vpop.f32.mrf.mxu0
        %2530 = vmatprep.mubr.bf16.mxu0 0
        %2531 = vmatmul.mubr.bf16.gmra.mxu0 %v2416
        %v2532 = vpop.f32.mrf.mxu0
        %v2533 = vadd.f32 %v2379, %v2532
        %v2534 = vpop.f32.mrf.mxu0
        %v2535 = vpop.f32.mrf.mxu0
        %v2536 = vadd.f32 %v2379, %v2535
        %v2537 = vpop.f32.mrf.mxu0
        %2538 = vmatprep.mubr.bf16.mxu0 0
        %2539 = vmatmul.mubr.bf16.gmra.mxu0 %v2419
        %v2540 = vpop.f32.mrf.mxu0
        %v2541 = vadd.f32 %v2379, %v2540
        %v2542 = vpop.f32.mrf.mxu0
        %v2543 = vpop.f32.mrf.mxu0
        %v2544 = vadd.f32 %v2379, %v2543
        %v2545 = vpop.f32.mrf.mxu0
        %2546 = vmatprep.mubr.bf16.mxu0 0
        %2547 = vmatmul.mubr.bf16.gmra.mxu0 %v2422
        %v2548 = vpop.f32.mrf.mxu0
        %v2549 = vadd.f32 %v2379, %v2548
        %v2550 = vpop.f32.mrf.mxu0
        %v2551 = vpop.f32.mrf.mxu0
        %v2552 = vadd.f32 %v2379, %v2551
        %v2553 = vpop.f32.mrf.mxu0
        %2554 = vmatprep.mubr.bf16.mxu0 0
        %2555 = vmatmul.mubr.bf16.gmra.mxu0 %v2425
        %v2556 = vpop.f32.mrf.mxu0
        %v2557 = vadd.f32 %v2379, %v2556
        %v2558 = vpop.f32.mrf.mxu0
        %v2559 = vpop.f32.mrf.mxu0
        %v2560 = vadd.f32 %v2379, %v2559
        %v2561 = vpop.f32.mrf.mxu0
        %2562 = vmatprep.mubr.bf16.mxu0 0
        %2563 = vmatmul.mubr.bf16.gmra.mxu0 %v2428
        %v2564 = vpop.f32.mrf.mxu0
        %v2565 = vadd.f32 %v2379, %v2564
        %v2566 = vpop.f32.mrf.mxu0
        %v2567 = vpop.f32.mrf.mxu0
        %v2568 = vadd.f32 %v2379, %v2567
        %v2569 = vpop.f32.mrf.mxu0
        %2570 = vmatprep.mubr.bf16.mxu0 0
        %2571 = vmatmul.mubr.bf16.gmra.mxu0 %v2431
        %v2572 = vpop.f32.mrf.mxu0
        %v2573 = vadd.f32 %v2379, %v2572
        %v2574 = vpop.f32.mrf.mxu0
        %v2575 = vpop.f32.mrf.mxu0
        %v2576 = vadd.f32 %v2379, %v2575
        %v2577 = vpop.f32.mrf.mxu0
        %2578 = vmatprep.mubr.bf16.mxu0 0
        %2579 = vmatmul.mubr.bf16.gmra.mxu0 %v2434
        %v2580 = vpop.f32.mrf.mxu0
        %v2581 = vadd.f32 %v2379, %v2580
        %v2582 = vpop.f32.mrf.mxu0
        %v2583 = vpop.f32.mrf.mxu0
        %v2584 = vadd.f32 %v2379, %v2583
        %v2585 = vpop.f32.mrf.mxu0
        %2586 = vmatprep.mubr.bf16.mxu0 0
        %2587 = vmatmul.mubr.bf16.gmra.mxu0 %v2437
        %v2588 = vpop.f32.mrf.mxu0
        %v2589 = vadd.f32 %v2379, %v2588
        %v2590 = vpop.f32.mrf.mxu0
        %v2591 = vpop.f32.mrf.mxu0
        %v2592 = vadd.f32 %v2379, %v2591
        %v2593 = vpop.f32.mrf.mxu0
        %2594 = vmatprep.mubr.bf16.mxu0 0
        %2595 = vmatmul.mubr.bf16.gmra.mxu0 %v2440
        %v2596 = vpop.f32.mrf.mxu0
        %v2597 = vadd.f32 %v2379, %v2596
        %v2598 = vpop.f32.mrf.mxu0
        %v2599 = vpop.f32.mrf.mxu0
        %v2600 = vadd.f32 %v2379, %v2599
        %v2601 = vpop.f32.mrf.mxu0
        %2602 = vdwg.mxu0
        %v2603 = vmax.f32 %v2477, 0.0
        %v2604 = vmax.f32 %v2480, 0.0
        %v2605 = vmax.f32 %v2485, 0.0
        %v2606 = vmax.f32 %v2488, 0.0
        %v2607 = vmax.f32 %v2493, 0.0
        %v2608 = vmax.f32 %v2496, 0.0
        %v2609 = vmax.f32 %v2501, 0.0
        %v2610 = vmax.f32 %v2504, 0.0
        %v2611 = vmax.f32 %v2509, 0.0
        %v2612 = vmax.f32 %v2512, 0.0
        %v2613 = vmax.f32 %v2517, 0.0
        %v2614 = vmax.f32 %v2520, 0.0
        %v2615 = vmax.f32 %v2525, 0.0
        %v2616 = vmax.f32 %v2528, 0.0
        %v2617 = vmax.f32 %v2533, 0.0
        %v2618 = vmax.f32 %v2536, 0.0
        %v2619 = vmax.f32 %v2541, 0.0
        %v2620 = vmax.f32 %v2544, 0.0
        %v2621 = vmax.f32 %v2549, 0.0
        %v2622 = vmax.f32 %v2552, 0.0
        %v2623 = vmax.f32 %v2557, 0.0
        %v2624 = vmax.f32 %v2560, 0.0
        %v2625 = vmax.f32 %v2565, 0.0
        %v2626 = vmax.f32 %v2568, 0.0
        %v2627 = vmax.f32 %v2573, 0.0
        %v2628 = vmax.f32 %v2576, 0.0
        %v2629 = vmax.f32 %v2581, 0.0
        %v2630 = vmax.f32 %v2584, 0.0
        %v2631 = vmax.f32 %v2589, 0.0
        %v2632 = vmax.f32 %v2592, 0.0
        %v2633 = vmax.f32 %v2597, 0.0
        %v2634 = vmax.f32 %v2600, 0.0
        %v2635 = vpack.c.bf16 %v2604, %v2603
        %v2636 = vpack.c.bf16 %v2606, %v2605
        %v2637 = vpack.c.bf16 %v2608, %v2607
        %v2638 = vpack.c.bf16 %v2610, %v2609
        %v2639 = vpack.c.bf16 %v2612, %v2611
        %v2640 = vpack.c.bf16 %v2614, %v2613
        %v2641 = vpack.c.bf16 %v2616, %v2615
        %v2642 = vpack.c.bf16 %v2618, %v2617
        %v2643 = vpack.c.bf16 %v2620, %v2619
        %v2644 = vpack.c.bf16 %v2622, %v2621
        %v2645 = vpack.c.bf16 %v2624, %v2623
        %v2646 = vpack.c.bf16 %v2626, %v2625
        %v2647 = vpack.c.bf16 %v2628, %v2627
        %v2648 = vpack.c.bf16 %v2630, %v2629
        %v2649 = vpack.c.bf16 %v2632, %v2631
        %v2650 = vpack.c.bf16 %v2634, %v2633
        %v2651 = vld [vmem:[%s5] sm:$0xf]
        %v2652 = vld [vmem:[%s5 + $0x4] sm:$0xf]
        %v2653 = vld [vmem:[%s5 + $0x8] sm:$0xf]
        %v2654 = vld [vmem:[%s5 + $0xc] sm:$0xf]
        %v2655 = vld [vmem:[%s5 + $0x10] sm:$0xf]
        %v2656 = vld [vmem:[%s5 + $0x14] sm:$0xf]
        %v2657 = vld [vmem:[%s5 + $0x18] sm:$0xf]
        %v2658 = vld [vmem:[%s5 + $0x1c] sm:$0xf]
        %v2659 = vld [vmem:[%s6] sm:$0x1]
        %v2661 = vlaneseq
        %v2662 = vshrl.u32 %v2661, 7
        %v2663 = vsub.s32 0, %v2662
        %v2664 = vrot.slane %v2659, %v2663
        %v2674 = vunpack.c.l.b16 %v2651
        %v2675 = vunpack.c.l.b16 %v2652
        %v2676 = vunpack.c.l.b16 %v2653
        %v2677 = vunpack.c.l.b16 %v2654
        %v2678 = vunpack.c.l.b16 %v2655
        %v2679 = vunpack.c.l.b16 %v2656
        %v2680 = vunpack.c.l.b16 %v2657
        %v2681 = vunpack.c.l.b16 %v2658
        %v2682 = vpack.c.b16 %v2675, %v2674
        %v2683 = vpack.c.b16 %v2677, %v2676
        %v2684 = vpack.c.b16 %v2679, %v2678
        %v2685 = vpack.c.b16 %v2681, %v2680
        %vm2690 = vcmask 523264
        %v2692 = vsel %vm2690, %v2635, 0
        %v2695 = vsel %vm2690, %v2636, 0
        %v2698 = vsel %vm2690, %v2637, 0
        %v2701 = vsel %vm2690, %v2638, 0
        %v2704 = vsel %vm2690, %v2639, 0
        %v2707 = vsel %vm2690, %v2640, 0
        %v2710 = vsel %vm2690, %v2641, 0
        %v2713 = vsel %vm2690, %v2642, 0
        %v2716 = vsel %vm2690, %v2643, 0
        %v2719 = vsel %vm2690, %v2644, 0
        %v2722 = vsel %vm2690, %v2645, 0
        %v2725 = vsel %vm2690, %v2646, 0
        %v2728 = vsel %vm2690, %v2647, 0
        %v2731 = vsel %vm2690, %v2648, 0
        %v2734 = vsel %vm2690, %v2649, 0
        %v2737 = vsel %vm2690, %v2650, 0
        %2739 = vmatprep.subr.bf16.mxu0 0
        %2740 = vmatpush1.bf16.msra.mxu0 0
        %2741 = vmatprep.subr.bf16.mxu0 0
        %2742 = vmatpush1.bf16.msra.mxu0 0
        %2743 = vmatprep.subr.bf16.mxu0 0
        %2744 = vmatpush1.bf16.msra.mxu0 0
        %2745 = vmatprep.subr.bf16.mxu0 0
        %2746 = vmatpush1.bf16.msra.mxu0 0
        %2747 = vmatprep.subr.bf16.mxu0 0
        %2748 = vmatpush1.bf16.msra.mxu0 %v2685
        %2749 = vmatprep.subr.bf16.mxu0 0
        %2750 = vmatpush1.bf16.msra.mxu0 %v2684
        %2751 = vmatprep.subr.bf16.mxu0 0
        %2752 = vmatpush1.bf16.msra.mxu0 %v2683
        %2753 = vmatprep.subr.bf16.mxu0 0
        %2754 = vmatpush1.bf16.msra.mxu0 %v2682
        %2755 = vmatprep.subr.bf16.mxu0 0
        %2756 = vmatpush2.bf16.msra.mxu0 0
        %2757 = vmatprep.subr.bf16.mxu0 0
        %2758 = vmatpush2.bf16.msra.mxu0 0
        %2759 = vmatprep.subr.bf16.mxu0 0
        %2760 = vmatpush2.bf16.msra.mxu0 0
        %2761 = vmatprep.subr.bf16.mxu0 0
        %2762 = vmatpush2.bf16.msra.mxu0 0
        %2763 = vmatprep.subr.bf16.mxu0 0
        %2764 = vmatpush2.bf16.msra.mxu0 0
        %2765 = vmatprep.subr.bf16.mxu0 0
        %2766 = vmatpush2.bf16.msra.mxu0 0
        %2767 = vmatprep.subr.bf16.mxu0 0
        %2768 = vmatpush2.bf16.msra.mxu0 0
        %2769 = vmatprep.subr.bf16.mxu0 0
        %2770 = vmatpush2.bf16.msra.mxu0 0
        %2771 = vmatprep.mubr.bf16.mxu0 0
        %2772 = vmatmul.mubr.bf16.gmra.mxu0 %v2692
        %v2773 = vpop.f32.mrf.mxu0
        %v2774 = vadd.f32 %v2664, %v2773
        %v2775 = vpop.f32.mrf.mxu0
        %v2776 = vpop.f32.mrf.mxu0
        %v2777 = vadd.f32 %v2664, %v2776
        %v2778 = vpop.f32.mrf.mxu0
        %2779 = vmatprep.mubr.bf16.mxu0 0
        %2780 = vmatmul.mubr.bf16.gmra.mxu0 %v2695
        %v2781 = vpop.f32.mrf.mxu0
        %v2782 = vadd.f32 %v2664, %v2781
        %v2783 = vpop.f32.mrf.mxu0
        %v2784 = vpop.f32.mrf.mxu0
        %v2785 = vadd.f32 %v2664, %v2784
        %v2786 = vpop.f32.mrf.mxu0
        %2787 = vmatprep.mubr.bf16.mxu0 0
        %2788 = vmatmul.mubr.bf16.gmra.mxu0 %v2698
        %v2789 = vpop.f32.mrf.mxu0
        %v2790 = vadd.f32 %v2664, %v2789
        %v2791 = vpop.f32.mrf.mxu0
        %v2792 = vpop.f32.mrf.mxu0
        %v2793 = vadd.f32 %v2664, %v2792
        %v2794 = vpop.f32.mrf.mxu0
        %2795 = vmatprep.mubr.bf16.mxu0 0
        %2796 = vmatmul.mubr.bf16.gmra.mxu0 %v2701
        %v2797 = vpop.f32.mrf.mxu0
        %v2798 = vadd.f32 %v2664, %v2797
        %v2799 = vpop.f32.mrf.mxu0
        %v2800 = vpop.f32.mrf.mxu0
        %v2801 = vadd.f32 %v2664, %v2800
        %v2802 = vpop.f32.mrf.mxu0
        %2803 = vmatprep.mubr.bf16.mxu0 0
        %2804 = vmatmul.mubr.bf16.gmra.mxu0 %v2704
        %v2805 = vpop.f32.mrf.mxu0
        %v2806 = vadd.f32 %v2664, %v2805
        %v2807 = vpop.f32.mrf.mxu0
        %v2808 = vpop.f32.mrf.mxu0
        %v2809 = vadd.f32 %v2664, %v2808
        %v2810 = vpop.f32.mrf.mxu0
        %2811 = vmatprep.mubr.bf16.mxu0 0
        %2812 = vmatmul.mubr.bf16.gmra.mxu0 %v2707
        %v2813 = vpop.f32.mrf.mxu0
        %v2814 = vadd.f32 %v2664, %v2813
        %v2815 = vpop.f32.mrf.mxu0
        %v2816 = vpop.f32.mrf.mxu0
        %v2817 = vadd.f32 %v2664, %v2816
        %v2818 = vpop.f32.mrf.mxu0
        %2819 = vmatprep.mubr.bf16.mxu0 0
        %2820 = vmatmul.mubr.bf16.gmra.mxu0 %v2710
        %v2821 = vpop.f32.mrf.mxu0
        %v2822 = vadd.f32 %v2664, %v2821
        %v2823 = vpop.f32.mrf.mxu0
        %v2824 = vpop.f32.mrf.mxu0
        %v2825 = vadd.f32 %v2664, %v2824
        %v2826 = vpop.f32.mrf.mxu0
        %2827 = vmatprep.mubr.bf16.mxu0 0
        %2828 = vmatmul.mubr.bf16.gmra.mxu0 %v2713
        %v2829 = vpop.f32.mrf.mxu0
        %v2830 = vadd.f32 %v2664, %v2829
        %v2831 = vpop.f32.mrf.mxu0
        %v2832 = vpop.f32.mrf.mxu0
        %v2833 = vadd.f32 %v2664, %v2832
        %v2834 = vpop.f32.mrf.mxu0
        %2835 = vmatprep.mubr.bf16.mxu0 0
        %2836 = vmatmul.mubr.bf16.gmra.mxu0 %v2716
        %v2837 = vpop.f32.mrf.mxu0
        %v2838 = vadd.f32 %v2664, %v2837
        %v2839 = vpop.f32.mrf.mxu0
        %v2840 = vpop.f32.mrf.mxu0
        %v2841 = vadd.f32 %v2664, %v2840
        %v2842 = vpop.f32.mrf.mxu0
        %2843 = vmatprep.mubr.bf16.mxu0 0
        %2844 = vmatmul.mubr.bf16.gmra.mxu0 %v2719
        %v2845 = vpop.f32.mrf.mxu0
        %v2846 = vadd.f32 %v2664, %v2845
        %v2847 = vpop.f32.mrf.mxu0
        %v2848 = vpop.f32.mrf.mxu0
        %v2849 = vadd.f32 %v2664, %v2848
        %v2850 = vpop.f32.mrf.mxu0
        %2851 = vmatprep.mubr.bf16.mxu0 0
        %2852 = vmatmul.mubr.bf16.gmra.mxu0 %v2722
        %v2853 = vpop.f32.mrf.mxu0
        %v2854 = vadd.f32 %v2664, %v2853
        %v2855 = vpop.f32.mrf.mxu0
        %v2856 = vpop.f32.mrf.mxu0
        %v2857 = vadd.f32 %v2664, %v2856
        %v2858 = vpop.f32.mrf.mxu0
        %2859 = vmatprep.mubr.bf16.mxu0 0
        %2860 = vmatmul.mubr.bf16.gmra.mxu0 %v2725
        %v2861 = vpop.f32.mrf.mxu0
        %v2862 = vadd.f32 %v2664, %v2861
        %v2863 = vpop.f32.mrf.mxu0
        %v2864 = vpop.f32.mrf.mxu0
        %v2865 = vadd.f32 %v2664, %v2864
        %v2866 = vpop.f32.mrf.mxu0
        %2867 = vmatprep.mubr.bf16.mxu0 0
        %2868 = vmatmul.mubr.bf16.gmra.mxu0 %v2728
        %v2869 = vpop.f32.mrf.mxu0
        %v2870 = vadd.f32 %v2664, %v2869
        %v2871 = vpop.f32.mrf.mxu0
        %v2872 = vpop.f32.mrf.mxu0
        %v2873 = vadd.f32 %v2664, %v2872
        %v2874 = vpop.f32.mrf.mxu0
        %2875 = vmatprep.mubr.bf16.mxu0 0
        %2876 = vmatmul.mubr.bf16.gmra.mxu0 %v2731
        %v2877 = vpop.f32.mrf.mxu0
        %v2878 = vadd.f32 %v2664, %v2877
        %v2879 = vpop.f32.mrf.mxu0
        %v2880 = vpop.f32.mrf.mxu0
        %v2881 = vadd.f32 %v2664, %v2880
        %v2882 = vpop.f32.mrf.mxu0
        %2883 = vmatprep.mubr.bf16.mxu0 0
        %2884 = vmatmul.mubr.bf16.gmra.mxu0 %v2734
        %v2885 = vpop.f32.mrf.mxu0
        %v2886 = vadd.f32 %v2664, %v2885
        %v2887 = vpop.f32.mrf.mxu0
        %v2888 = vpop.f32.mrf.mxu0
        %v2889 = vadd.f32 %v2664, %v2888
        %v2890 = vpop.f32.mrf.mxu0
        %2891 = vmatprep.mubr.bf16.mxu0 0
        %2892 = vmatmul.mubr.bf16.gmra.mxu0 %v2737
        %v2893 = vpop.f32.mrf.mxu0
        %v2894 = vadd.f32 %v2664, %v2893
        %v2895 = vpop.f32.mrf.mxu0
        %v2896 = vpop.f32.mrf.mxu0
        %v2897 = vadd.f32 %v2664, %v2896
        %v2898 = vpop.f32.mrf.mxu0
        %2899 = vdwg.mxu0
        %v2900 = vmax.f32 %v2774, 0.0
        %v2901 = vmax.f32 %v2777, 0.0
        %v2902 = vmax.f32 %v2782, 0.0
        %v2903 = vmax.f32 %v2785, 0.0
        %v2904 = vmax.f32 %v2790, 0.0
        %v2905 = vmax.f32 %v2793, 0.0
        %v2906 = vmax.f32 %v2798, 0.0
        %v2907 = vmax.f32 %v2801, 0.0
        %v2908 = vmax.f32 %v2806, 0.0
        %v2909 = vmax.f32 %v2809, 0.0
        %v2910 = vmax.f32 %v2814, 0.0
        %v2911 = vmax.f32 %v2817, 0.0
        %v2912 = vmax.f32 %v2822, 0.0
        %v2913 = vmax.f32 %v2825, 0.0
        %v2914 = vmax.f32 %v2830, 0.0
        %v2915 = vmax.f32 %v2833, 0.0
        %v2916 = vmax.f32 %v2838, 0.0
        %v2917 = vmax.f32 %v2841, 0.0
        %v2918 = vmax.f32 %v2846, 0.0
        %v2919 = vmax.f32 %v2849, 0.0
        %v2920 = vmax.f32 %v2854, 0.0
        %v2921 = vmax.f32 %v2857, 0.0
        %v2922 = vmax.f32 %v2862, 0.0
        %v2923 = vmax.f32 %v2865, 0.0
        %v2924 = vmax.f32 %v2870, 0.0
        %v2925 = vmax.f32 %v2873, 0.0
        %v2926 = vmax.f32 %v2878, 0.0
        %v2927 = vmax.f32 %v2881, 0.0
        %v2928 = vmax.f32 %v2886, 0.0
        %v2929 = vmax.f32 %v2889, 0.0
        %v2930 = vmax.f32 %v2894, 0.0
        %v2931 = vmax.f32 %v2897, 0.0
        %v2932 = vpack.c.bf16 %v2901, %v2900
        %v2933 = vpack.c.bf16 %v2903, %v2902
        %v2934 = vpack.c.bf16 %v2905, %v2904
        %v2935 = vpack.c.bf16 %v2907, %v2906
        %v2936 = vpack.c.bf16 %v2909, %v2908
        %v2937 = vpack.c.bf16 %v2911, %v2910
        %v2938 = vpack.c.bf16 %v2913, %v2912
        %v2939 = vpack.c.bf16 %v2915, %v2914
        %v2940 = vpack.c.bf16 %v2917, %v2916
        %v2941 = vpack.c.bf16 %v2919, %v2918
        %v2942 = vpack.c.bf16 %v2921, %v2920
        %v2943 = vpack.c.bf16 %v2923, %v2922
        %v2944 = vpack.c.bf16 %v2925, %v2924
        %v2945 = vpack.c.bf16 %v2927, %v2926
        %v2946 = vpack.c.bf16 %v2929, %v2928
        %v2947 = vpack.c.bf16 %v2931, %v2930
        %v2948 = vld [vmem:[%s7] sm:$0xf]
        %v2949 = vld [vmem:[%s7 + $0x4] sm:$0xf]
        %v2950 = vld [vmem:[%s7 + $0x8] sm:$0xf]
        %v2951 = vld [vmem:[%s7 + $0xc] sm:$0xf]
        %v2952 = vld [vmem:[%s8] sm:$0x1]
        %v2954 = vlaneseq
        %v2955 = vshrl.u32 %v2954, 7
        %v2956 = vsub.s32 0, %v2955
        %v2957 = vrot.slane %v2952, %v2956
        %v2963 = vunpack.c.l.b16 %v2948
        %v2964 = vunpack.c.l.b16 %v2949
        %v2965 = vunpack.c.l.b16 %v2950
        %v2966 = vunpack.c.l.b16 %v2951
        %v2967 = vpack.c.b16 %v2964, %v2963
        %v2968 = vpack.c.b16 %v2966, %v2965
        %v2972 = vsel %vm2393, %v2932, 0
        %v2975 = vsel %vm2393, %v2933, 0
        %v2978 = vsel %vm2393, %v2934, 0
        %v2981 = vsel %vm2393, %v2935, 0
        %v2984 = vsel %vm2393, %v2936, 0
        %v2987 = vsel %vm2393, %v2937, 0
        %v2990 = vsel %vm2393, %v2938, 0
        %v2993 = vsel %vm2393, %v2939, 0
        %v2996 = vsel %vm2393, %v2940, 0
        %v2999 = vsel %vm2393, %v2941, 0
        %v3002 = vsel %vm2393, %v2942, 0
        %v3005 = vsel %vm2393, %v2943, 0
        %v3008 = vsel %vm2393, %v2944, 0
        %v3011 = vsel %vm2393, %v2945, 0
        %v3014 = vsel %vm2393, %v2946, 0
        %v3017 = vsel %vm2393, %v2947, 0
        %3019 = vmatprep.subr.bf16.mxu0 0
        %3020 = vmatpush1.bf16.msra.mxu0 0
        %3021 = vmatprep.subr.bf16.mxu0 0
        %3022 = vmatpush1.bf16.msra.mxu0 0
        %3023 = vmatprep.subr.bf16.mxu0 0
        %3024 = vmatpush1.bf16.msra.mxu0 0
        %3025 = vmatprep.subr.bf16.mxu0 0
        %3026 = vmatpush1.bf16.msra.mxu0 0
        %3027 = vmatprep.subr.bf16.mxu0 0
        %3028 = vmatpush1.bf16.msra.mxu0 0
        %3029 = vmatprep.subr.bf16.mxu0 0
        %3030 = vmatpush1.bf16.msra.mxu0 0
        %3031 = vmatprep.subr.bf16.mxu0 0
        %3032 = vmatpush1.bf16.msra.mxu0 %v2968
        %3033 = vmatprep.subr.bf16.mxu0 0
        %3034 = vmatpush1.bf16.msra.mxu0 %v2967
        %3035 = vmatprep.subr.bf16.mxu0 0
        %3036 = vmatpush2.bf16.msra.mxu0 0
        %3037 = vmatprep.subr.bf16.mxu0 0
        %3038 = vmatpush2.bf16.msra.mxu0 0
        %3039 = vmatprep.subr.bf16.mxu0 0
        %3040 = vmatpush2.bf16.msra.mxu0 0
        %3041 = vmatprep.subr.bf16.mxu0 0
        %3042 = vmatpush2.bf16.msra.mxu0 0
        %3043 = vmatprep.subr.bf16.mxu0 0
        %3044 = vmatpush2.bf16.msra.mxu0 0
        %3045 = vmatprep.subr.bf16.mxu0 0
        %3046 = vmatpush2.bf16.msra.mxu0 0
        %3047 = vmatprep.subr.bf16.mxu0 0
        %3048 = vmatpush2.bf16.msra.mxu0 0
        %3049 = vmatprep.subr.bf16.mxu0 0
        %3050 = vmatpush2.bf16.msra.mxu0 0
        %3051 = vmatprep.mubr.bf16.mxu0 0
        %3052 = vmatmul.mubr.bf16.gmra.mxu0 %v2972
        %v3053 = vpop.f32.mrf.mxu0
        %v3054 = vadd.f32 %v2957, %v3053
        %v3055 = vpop.f32.mrf.mxu0
        %v3056 = vpop.f32.mrf.mxu0
        %v3057 = vadd.f32 %v2957, %v3056
        %v3058 = vpop.f32.mrf.mxu0
        %3059 = vmatprep.mubr.bf16.mxu0 0
        %3060 = vmatmul.mubr.bf16.gmra.mxu0 %v2975
        %v3061 = vpop.f32.mrf.mxu0
        %v3062 = vadd.f32 %v2957, %v3061
        %v3063 = vpop.f32.mrf.mxu0
        %v3064 = vpop.f32.mrf.mxu0
        %v3065 = vadd.f32 %v2957, %v3064
        %v3066 = vpop.f32.mrf.mxu0
        %3067 = vmatprep.mubr.bf16.mxu0 0
        %3068 = vmatmul.mubr.bf16.gmra.mxu0 %v2978
        %v3069 = vpop.f32.mrf.mxu0
        %v3070 = vadd.f32 %v2957, %v3069
        %v3071 = vpop.f32.mrf.mxu0
        %v3072 = vpop.f32.mrf.mxu0
        %v3073 = vadd.f32 %v2957, %v3072
        %v3074 = vpop.f32.mrf.mxu0
        %3075 = vmatprep.mubr.bf16.mxu0 0
        %3076 = vmatmul.mubr.bf16.gmra.mxu0 %v2981
        %v3077 = vpop.f32.mrf.mxu0
        %v3078 = vadd.f32 %v2957, %v3077
        %v3079 = vpop.f32.mrf.mxu0
        %v3080 = vpop.f32.mrf.mxu0
        %v3081 = vadd.f32 %v2957, %v3080
        %v3082 = vpop.f32.mrf.mxu0
        %3083 = vmatprep.mubr.bf16.mxu0 0
        %3084 = vmatmul.mubr.bf16.gmra.mxu0 %v2984
        %v3085 = vpop.f32.mrf.mxu0
        %v3086 = vadd.f32 %v2957, %v3085
        %v3087 = vpop.f32.mrf.mxu0
        %v3088 = vpop.f32.mrf.mxu0
        %v3089 = vadd.f32 %v2957, %v3088
        %v3090 = vpop.f32.mrf.mxu0
        %3091 = vmatprep.mubr.bf16.mxu0 0
        %3092 = vmatmul.mubr.bf16.gmra.mxu0 %v2987
        %v3093 = vpop.f32.mrf.mxu0
        %v3094 = vadd.f32 %v2957, %v3093
        %v3095 = vpop.f32.mrf.mxu0
        %v3096 = vpop.f32.mrf.mxu0
        %v3097 = vadd.f32 %v2957, %v3096
        %v3098 = vpop.f32.mrf.mxu0
        %3099 = vmatprep.mubr.bf16.mxu0 0
        %3100 = vmatmul.mubr.bf16.gmra.mxu0 %v2990
        %v3101 = vpop.f32.mrf.mxu0
        %v3102 = vadd.f32 %v2957, %v3101
        %v3103 = vpop.f32.mrf.mxu0
        %v3104 = vpop.f32.mrf.mxu0
        %v3105 = vadd.f32 %v2957, %v3104
        %v3106 = vpop.f32.mrf.mxu0
        %3107 = vmatprep.mubr.bf16.mxu0 0
        %3108 = vmatmul.mubr.bf16.gmra.mxu0 %v2993
        %v3109 = vpop.f32.mrf.mxu0
        %v3110 = vadd.f32 %v2957, %v3109
        %v3111 = vpop.f32.mrf.mxu0
        %v3112 = vpop.f32.mrf.mxu0
        %v3113 = vadd.f32 %v2957, %v3112
        %v3114 = vpop.f32.mrf.mxu0
        %3115 = vmatprep.mubr.bf16.mxu0 0
        %3116 = vmatmul.mubr.bf16.gmra.mxu0 %v2996
        %v3117 = vpop.f32.mrf.mxu0
        %v3118 = vadd.f32 %v2957, %v3117
        %v3119 = vpop.f32.mrf.mxu0
        %v3120 = vpop.f32.mrf.mxu0
        %v3121 = vadd.f32 %v2957, %v3120
        %v3122 = vpop.f32.mrf.mxu0
        %3123 = vmatprep.mubr.bf16.mxu0 0
        %3124 = vmatmul.mubr.bf16.gmra.mxu0 %v2999
        %v3125 = vpop.f32.mrf.mxu0
        %v3126 = vadd.f32 %v2957, %v3125
        %v3127 = vpop.f32.mrf.mxu0
        %v3128 = vpop.f32.mrf.mxu0
        %v3129 = vadd.f32 %v2957, %v3128
        %v3130 = vpop.f32.mrf.mxu0
        %3131 = vmatprep.mubr.bf16.mxu0 0
        %3132 = vmatmul.mubr.bf16.gmra.mxu0 %v3002
        %v3133 = vpop.f32.mrf.mxu0
        %v3134 = vadd.f32 %v2957, %v3133
        %v3135 = vpop.f32.mrf.mxu0
        %v3136 = vpop.f32.mrf.mxu0
        %v3137 = vadd.f32 %v2957, %v3136
        %v3138 = vpop.f32.mrf.mxu0
        %3139 = vmatprep.mubr.bf16.mxu0 0
        %3140 = vmatmul.mubr.bf16.gmra.mxu0 %v3005
        %v3141 = vpop.f32.mrf.mxu0
        %v3142 = vadd.f32 %v2957, %v3141
        %v3143 = vpop.f32.mrf.mxu0
        %v3144 = vpop.f32.mrf.mxu0
        %v3145 = vadd.f32 %v2957, %v3144
        %v3146 = vpop.f32.mrf.mxu0
        %3147 = vmatprep.mubr.bf16.mxu0 0
        %3148 = vmatmul.mubr.bf16.gmra.mxu0 %v3008
        %v3149 = vpop.f32.mrf.mxu0
        %v3150 = vadd.f32 %v2957, %v3149
        %v3151 = vpop.f32.mrf.mxu0
        %v3152 = vpop.f32.mrf.mxu0
        %v3153 = vadd.f32 %v2957, %v3152
        %v3154 = vpop.f32.mrf.mxu0
        %3155 = vmatprep.mubr.bf16.mxu0 0
        %3156 = vmatmul.mubr.bf16.gmra.mxu0 %v3011
        %v3157 = vpop.f32.mrf.mxu0
        %v3158 = vadd.f32 %v2957, %v3157
        %v3159 = vpop.f32.mrf.mxu0
        %v3160 = vpop.f32.mrf.mxu0
        %v3161 = vadd.f32 %v2957, %v3160
        %v3162 = vpop.f32.mrf.mxu0
        %3163 = vmatprep.mubr.bf16.mxu0 0
        %3164 = vmatmul.mubr.bf16.gmra.mxu0 %v3014
        %v3165 = vpop.f32.mrf.mxu0
        %v3166 = vadd.f32 %v2957, %v3165
        %v3167 = vpop.f32.mrf.mxu0
        %v3168 = vpop.f32.mrf.mxu0
        %v3169 = vadd.f32 %v2957, %v3168
        %v3170 = vpop.f32.mrf.mxu0
        %3171 = vmatprep.mubr.bf16.mxu0 0
        %3172 = vmatmul.mubr.bf16.gmra.mxu0 %v3017
        %v3173 = vpop.f32.mrf.mxu0
        %v3174 = vadd.f32 %v2957, %v3173
        %v3175 = vpop.f32.mrf.mxu0
        %v3176 = vpop.f32.mrf.mxu0
        %v3177 = vadd.f32 %v2957, %v3176
        %v3178 = vpop.f32.mrf.mxu0
        %3179 = vdwg.mxu0
        %v3180 = vmax.f32 %v3054, 0.0
        %v3181 = vmax.f32 %v3057, 0.0
        %v3182 = vmax.f32 %v3062, 0.0
        %v3183 = vmax.f32 %v3065, 0.0
        %v3184 = vmax.f32 %v3070, 0.0
        %v3185 = vmax.f32 %v3073, 0.0
        %v3186 = vmax.f32 %v3078, 0.0
        %v3187 = vmax.f32 %v3081, 0.0
        %v3188 = vmax.f32 %v3086, 0.0
        %v3189 = vmax.f32 %v3089, 0.0
        %v3190 = vmax.f32 %v3094, 0.0
        %v3191 = vmax.f32 %v3097, 0.0
        %v3192 = vmax.f32 %v3102, 0.0
        %v3193 = vmax.f32 %v3105, 0.0
        %v3194 = vmax.f32 %v3110, 0.0
        %v3195 = vmax.f32 %v3113, 0.0
        %v3196 = vmax.f32 %v3118, 0.0
        %v3197 = vmax.f32 %v3121, 0.0
        %v3198 = vmax.f32 %v3126, 0.0
        %v3199 = vmax.f32 %v3129, 0.0
        %v3200 = vmax.f32 %v3134, 0.0
        %v3201 = vmax.f32 %v3137, 0.0
        %v3202 = vmax.f32 %v3142, 0.0
        %v3203 = vmax.f32 %v3145, 0.0
        %v3204 = vmax.f32 %v3150, 0.0
        %v3205 = vmax.f32 %v3153, 0.0
        %v3206 = vmax.f32 %v3158, 0.0
        %v3207 = vmax.f32 %v3161, 0.0
        %v3208 = vmax.f32 %v3166, 0.0
        %v3209 = vmax.f32 %v3169, 0.0
        %v3210 = vmax.f32 %v3174, 0.0
        %v3211 = vmax.f32 %v3177, 0.0
        %v3212 = vpack.c.bf16 %v3181, %v3180
        %v3213 = vpack.c.bf16 %v3183, %v3182
        %v3214 = vpack.c.bf16 %v3185, %v3184
        %v3215 = vpack.c.bf16 %v3187, %v3186
        %v3216 = vpack.c.bf16 %v3189, %v3188
        %v3217 = vpack.c.bf16 %v3191, %v3190
        %v3218 = vpack.c.bf16 %v3193, %v3192
        %v3219 = vpack.c.bf16 %v3195, %v3194
        %v3220 = vpack.c.bf16 %v3197, %v3196
        %v3221 = vpack.c.bf16 %v3199, %v3198
        %v3222 = vpack.c.bf16 %v3201, %v3200
        %v3223 = vpack.c.bf16 %v3203, %v3202
        %v3224 = vpack.c.bf16 %v3205, %v3204
        %v3225 = vpack.c.bf16 %v3207, %v3206
        %v3226 = vpack.c.bf16 %v3209, %v3208
        %v3227 = vpack.c.bf16 %v3211, %v3210
        %v3228 = vld [vmem:[%s9] sm:$0xf]
        %v3229 = vld [vmem:[%s9 + $0x4] sm:$0xf]
        %v3230 = vld [vmem:[%s9 + $0x8] sm:$0xf]
        %v3231 = vld [vmem:[%s9 + $0xc] sm:$0xf]
        %v3232 = vld [vmem:[%s9 + $0x10] sm:$0xf]
        %v3233 = vld [vmem:[%s9 + $0x14] sm:$0xf]
        %v3234 = vld [vmem:[%s9 + $0x18] sm:$0xf]
        %v3235 = vld [vmem:[%s9 + $0x1c] sm:$0xf]
        %v3236 = vld [vmem:[%s10] sm:$0x1]
        %v3238 = vlaneseq
        %v3239 = vshrl.u32 %v3238, 7
        %v3240 = vsub.s32 0, %v3239
        %v3241 = vrot.slane %v3236, %v3240
        %v3251 = vunpack.c.l.b16 %v3228
        %v3252 = vunpack.c.l.b16 %v3229
        %v3253 = vunpack.c.l.b16 %v3230
        %v3254 = vunpack.c.l.b16 %v3231
        %v3255 = vunpack.c.l.b16 %v3232
        %v3256 = vunpack.c.l.b16 %v3233
        %v3257 = vunpack.c.l.b16 %v3234
        %v3258 = vunpack.c.l.b16 %v3235
        %v3259 = vpack.c.b16 %v3252, %v3251
        %v3260 = vpack.c.b16 %v3254, %v3253
        %v3261 = vpack.c.b16 %v3256, %v3255
        %v3262 = vpack.c.b16 %v3258, %v3257
        %v3268 = vsel %vm2690, %v3212, 0
        %v3271 = vsel %vm2690, %v3213, 0
        %v3274 = vsel %vm2690, %v3214, 0
        %v3277 = vsel %vm2690, %v3215, 0
        %v3280 = vsel %vm2690, %v3216, 0
        %v3283 = vsel %vm2690, %v3217, 0
        %v3286 = vsel %vm2690, %v3218, 0
        %v3289 = vsel %vm2690, %v3219, 0
        %v3292 = vsel %vm2690, %v3220, 0
        %v3295 = vsel %vm2690, %v3221, 0
        %v3298 = vsel %vm2690, %v3222, 0
        %v3301 = vsel %vm2690, %v3223, 0
        %v3304 = vsel %vm2690, %v3224, 0
        %v3307 = vsel %vm2690, %v3225, 0
        %v3310 = vsel %vm2690, %v3226, 0
        %v3313 = vsel %vm2690, %v3227, 0
        %3315 = vmatprep.subr.bf16.mxu0 0
        %3316 = vmatpush1.bf16.msra.mxu0 0
        %3317 = vmatprep.subr.bf16.mxu0 0
        %3318 = vmatpush1.bf16.msra.mxu0 0
        %3319 = vmatprep.subr.bf16.mxu0 0
        %3320 = vmatpush1.bf16.msra.mxu0 0
        %3321 = vmatprep.subr.bf16.mxu0 0
        %3322 = vmatpush1.bf16.msra.mxu0 0
        %3323 = vmatprep.subr.bf16.mxu0 0
        %3324 = vmatpush1.bf16.msra.mxu0 %v3262
        %3325 = vmatprep.subr.bf16.mxu0 0
        %3326 = vmatpush1.bf16.msra.mxu0 %v3261
        %3327 = vmatprep.subr.bf16.mxu0 0
        %3328 = vmatpush1.bf16.msra.mxu0 %v3260
        %3329 = vmatprep.subr.bf16.mxu0 0
        %3330 = vmatpush1.bf16.msra.mxu0 %v3259
        %3331 = vmatprep.subr.bf16.mxu0 0
        %3332 = vmatpush2.bf16.msra.mxu0 0
        %3333 = vmatprep.subr.bf16.mxu0 0
        %3334 = vmatpush2.bf16.msra.mxu0 0
        %3335 = vmatprep.subr.bf16.mxu0 0
        %3336 = vmatpush2.bf16.msra.mxu0 0
        %3337 = vmatprep.subr.bf16.mxu0 0
        %3338 = vmatpush2.bf16.msra.mxu0 0
        %3339 = vmatprep.subr.bf16.mxu0 0
        %3340 = vmatpush2.bf16.msra.mxu0 0
        %3341 = vmatprep.subr.bf16.mxu0 0
        %3342 = vmatpush2.bf16.msra.mxu0 0
        %3343 = vmatprep.subr.bf16.mxu0 0
        %3344 = vmatpush2.bf16.msra.mxu0 0
        %3345 = vmatprep.subr.bf16.mxu0 0
        %3346 = vmatpush2.bf16.msra.mxu0 0
        %3347 = vmatprep.mubr.bf16.mxu0 0
        %3348 = vmatmul.mubr.bf16.gmra.mxu0 %v3268
        %v3349 = vpop.f32.mrf.mxu0
        %v3350 = vadd.f32 %v3241, %v3349
        %v3351 = vpop.f32.mrf.mxu0
        %v3352 = vpop.f32.mrf.mxu0
        %v3353 = vadd.f32 %v3241, %v3352
        %v3354 = vpop.f32.mrf.mxu0
        %3355 = vmatprep.mubr.bf16.mxu0 0
        %3356 = vmatmul.mubr.bf16.gmra.mxu0 %v3271
        %v3357 = vpop.f32.mrf.mxu0
        %v3358 = vadd.f32 %v3241, %v3357
        %v3359 = vpop.f32.mrf.mxu0
        %v3360 = vpop.f32.mrf.mxu0
        %v3361 = vadd.f32 %v3241, %v3360
        %v3362 = vpop.f32.mrf.mxu0
        %3363 = vmatprep.mubr.bf16.mxu0 0
        %3364 = vmatmul.mubr.bf16.gmra.mxu0 %v3274
        %v3365 = vpop.f32.mrf.mxu0
        %v3366 = vadd.f32 %v3241, %v3365
        %v3367 = vpop.f32.mrf.mxu0
        %v3368 = vpop.f32.mrf.mxu0
        %v3369 = vadd.f32 %v3241, %v3368
        %v3370 = vpop.f32.mrf.mxu0
        %3371 = vmatprep.mubr.bf16.mxu0 0
        %3372 = vmatmul.mubr.bf16.gmra.mxu0 %v3277
        %v3373 = vpop.f32.mrf.mxu0
        %v3374 = vadd.f32 %v3241, %v3373
        %v3375 = vpop.f32.mrf.mxu0
        %v3376 = vpop.f32.mrf.mxu0
        %v3377 = vadd.f32 %v3241, %v3376
        %v3378 = vpop.f32.mrf.mxu0
        %3379 = vmatprep.mubr.bf16.mxu0 0
        %3380 = vmatmul.mubr.bf16.gmra.mxu0 %v3280
        %v3381 = vpop.f32.mrf.mxu0
        %v3382 = vadd.f32 %v3241, %v3381
        %v3383 = vpop.f32.mrf.mxu0
        %v3384 = vpop.f32.mrf.mxu0
        %v3385 = vadd.f32 %v3241, %v3384
        %v3386 = vpop.f32.mrf.mxu0
        %3387 = vmatprep.mubr.bf16.mxu0 0
        %3388 = vmatmul.mubr.bf16.gmra.mxu0 %v3283
        %v3389 = vpop.f32.mrf.mxu0
        %v3390 = vadd.f32 %v3241, %v3389
        %v3391 = vpop.f32.mrf.mxu0
        %v3392 = vpop.f32.mrf.mxu0
        %v3393 = vadd.f32 %v3241, %v3392
        %v3394 = vpop.f32.mrf.mxu0
        %3395 = vmatprep.mubr.bf16.mxu0 0
        %3396 = vmatmul.mubr.bf16.gmra.mxu0 %v3286
        %v3397 = vpop.f32.mrf.mxu0
        %v3398 = vadd.f32 %v3241, %v3397
        %v3399 = vpop.f32.mrf.mxu0
        %v3400 = vpop.f32.mrf.mxu0
        %v3401 = vadd.f32 %v3241, %v3400
        %v3402 = vpop.f32.mrf.mxu0
        %3403 = vmatprep.mubr.bf16.mxu0 0
        %3404 = vmatmul.mubr.bf16.gmra.mxu0 %v3289
        %v3405 = vpop.f32.mrf.mxu0
        %v3406 = vadd.f32 %v3241, %v3405
        %v3407 = vpop.f32.mrf.mxu0
        %v3408 = vpop.f32.mrf.mxu0
        %v3409 = vadd.f32 %v3241, %v3408
        %v3410 = vpop.f32.mrf.mxu0
        %3411 = vmatprep.mubr.bf16.mxu0 0
        %3412 = vmatmul.mubr.bf16.gmra.mxu0 %v3292
        %v3413 = vpop.f32.mrf.mxu0
        %v3414 = vadd.f32 %v3241, %v3413
        %v3415 = vpop.f32.mrf.mxu0
        %v3416 = vpop.f32.mrf.mxu0
        %v3417 = vadd.f32 %v3241, %v3416
        %v3418 = vpop.f32.mrf.mxu0
        %3419 = vmatprep.mubr.bf16.mxu0 0
        %3420 = vmatmul.mubr.bf16.gmra.mxu0 %v3295
        %v3421 = vpop.f32.mrf.mxu0
        %v3422 = vadd.f32 %v3241, %v3421
        %v3423 = vpop.f32.mrf.mxu0
        %v3424 = vpop.f32.mrf.mxu0
        %v3425 = vadd.f32 %v3241, %v3424
        %v3426 = vpop.f32.mrf.mxu0
        %3427 = vmatprep.mubr.bf16.mxu0 0
        %3428 = vmatmul.mubr.bf16.gmra.mxu0 %v3298
        %v3429 = vpop.f32.mrf.mxu0
        %v3430 = vadd.f32 %v3241, %v3429
        %v3431 = vpop.f32.mrf.mxu0
        %v3432 = vpop.f32.mrf.mxu0
        %v3433 = vadd.f32 %v3241, %v3432
        %v3434 = vpop.f32.mrf.mxu0
        %3435 = vmatprep.mubr.bf16.mxu0 0
        %3436 = vmatmul.mubr.bf16.gmra.mxu0 %v3301
        %v3437 = vpop.f32.mrf.mxu0
        %v3438 = vadd.f32 %v3241, %v3437
        %v3439 = vpop.f32.mrf.mxu0
        %v3440 = vpop.f32.mrf.mxu0
        %v3441 = vadd.f32 %v3241, %v3440
        %v3442 = vpop.f32.mrf.mxu0
        %3443 = vmatprep.mubr.bf16.mxu0 0
        %3444 = vmatmul.mubr.bf16.gmra.mxu0 %v3304
        %v3445 = vpop.f32.mrf.mxu0
        %v3446 = vadd.f32 %v3241, %v3445
        %v3447 = vpop.f32.mrf.mxu0
        %v3448 = vpop.f32.mrf.mxu0
        %v3449 = vadd.f32 %v3241, %v3448
        %v3450 = vpop.f32.mrf.mxu0
        %3451 = vmatprep.mubr.bf16.mxu0 0
        %3452 = vmatmul.mubr.bf16.gmra.mxu0 %v3307
        %v3453 = vpop.f32.mrf.mxu0
        %v3454 = vadd.f32 %v3241, %v3453
        %v3455 = vpop.f32.mrf.mxu0
        %v3456 = vpop.f32.mrf.mxu0
        %v3457 = vadd.f32 %v3241, %v3456
        %v3458 = vpop.f32.mrf.mxu0
        %3459 = vmatprep.mubr.bf16.mxu0 0
        %3460 = vmatmul.mubr.bf16.gmra.mxu0 %v3310
        %v3461 = vpop.f32.mrf.mxu0
        %v3462 = vadd.f32 %v3241, %v3461
        %v3463 = vpop.f32.mrf.mxu0
        %v3464 = vpop.f32.mrf.mxu0
        %v3465 = vadd.f32 %v3241, %v3464
        %v3466 = vpop.f32.mrf.mxu0
        %3467 = vmatprep.mubr.bf16.mxu0 0
        %3468 = vmatmul.mubr.bf16.gmra.mxu0 %v3313
        %v3469 = vpop.f32.mrf.mxu0
        %v3470 = vadd.f32 %v3241, %v3469
        %v3471 = vpop.f32.mrf.mxu0
        %v3472 = vpop.f32.mrf.mxu0
        %v3473 = vadd.f32 %v3241, %v3472
        %v3474 = vpop.f32.mrf.mxu0
        %3475 = vdwg.mxu0
        %3476 = vst [vmem:[%s396] sm:$0xff] %v3350
        %3477 = vst [vmem:[%s396 + $0x8] sm:$0xff] %v3353
        %3478 = vst [vmem:[%s396 + $0x10] sm:$0xff] %v3358
        %3479 = vst [vmem:[%s396 + $0x18] sm:$0xff] %v3361
        %3480 = vst [vmem:[%s396 + $0x20] sm:$0xff] %v3366
        %3481 = vst [vmem:[%s396 + $0x28] sm:$0xff] %v3369
        %3482 = vst [vmem:[%s396 + $0x30] sm:$0xff] %v3374
        %3483 = vst [vmem:[%s396 + $0x38] sm:$0xff] %v3377
        %3484 = vst [vmem:[%s396 + $0x40] sm:$0xff] %v3382
        %3485 = vst [vmem:[%s396 + $0x48] sm:$0xff] %v3385
        %3486 = vst [vmem:[%s396 + $0x50] sm:$0xff] %v3390
        %3487 = vst [vmem:[%s396 + $0x58] sm:$0xff] %v3393
        %3488 = vst [vmem:[%s396 + $0x60] sm:$0xff] %v3398
        %3489 = vst [vmem:[%s396 + $0x68] sm:$0xff] %v3401
        %3490 = vst [vmem:[%s396 + $0x70] sm:$0xff] %v3406
        %3491 = vst [vmem:[%s396 + $0x78] sm:$0xff] %v3409
        %3492 = vst [vmem:[%s396 + $0x80] sm:$0xff] %v3414
        %3493 = vst [vmem:[%s396 + $0x88] sm:$0xff] %v3417
        %3494 = vst [vmem:[%s396 + $0x90] sm:$0xff] %v3422
        %3495 = vst [vmem:[%s396 + $0x98] sm:$0xff] %v3425
        %3496 = vst [vmem:[%s396 + $0xa0] sm:$0xff] %v3430
        %3497 = vst [vmem:[%s396 + $0xa8] sm:$0xff] %v3433
        %3498 = vst [vmem:[%s396 + $0xb0] sm:$0xff] %v3438
        %3499 = vst [vmem:[%s396 + $0xb8] sm:$0xff] %v3441
        %3500 = vst [vmem:[%s396 + $0xc0] sm:$0xff] %v3446
        %3501 = vst [vmem:[%s396 + $0xc8] sm:$0xff] %v3449
        %3502 = vst [vmem:[%s396 + $0xd0] sm:$0xff] %v3454
        %3503 = vst [vmem:[%s396 + $0xd8] sm:$0xff] %v3457
        %3504 = vst [vmem:[%s396 + $0xe0] sm:$0xff] %v3462
        %3505 = vst [vmem:[%s396 + $0xe8] sm:$0xff] %v3465
        %3506 = vst [vmem:[%s396 + $0xf0] sm:$0xff] %v3470
        %3507 = vst [vmem:[%s396 + $0xf8] sm:$0xff] %v3473
        %s3508 = sand.u32 %s274, 1
        %s3509 = scalar_lea.sflag [#allocation3], %s3508
        %s3510 = sand.u32 %s274, 1
        %s3511 = smul.addr %s3510, 256
        %s3512 = scalar_lea.vmem [#allocation2], %s3511
        // Predicated region
        $region65: #{tpu_custom_call.1} parent=63 // pred_check
          %p3513 = pneg %p284
        $region66: #{tpu_custom_call.1} parent=63 // pred_check_branch
          %3515 = sbr.rel (%p3513) target = $region68
        $region67: #{tpu_custom_call.1} parent=63 // pred_region
          %s3516 = smul.u32 32, %s25
          %s3518 = ssub.s32 4096, 4096
          %3519 = vsyncadd %s3509, %s3518
          %s3520 = smul.addr %s3516, 128
          %s3521 = scalar_lea.hbm %s11, %s3520
          %s3522 = sshll.u32 %s3512, 4
          %s3523 = int_to_ptr.vmem [resolvable:$true] %s3522
          %3528 = dma.vmem_to_hbm [thread:$0]  %s3523, 4096, %s3521, %s3509, 128, 128, 8
        $region68: #{tpu_custom_call.1} parent=63 // pred_fallthru
          _
      $region64: #{tpu_custom_call.1} parent=5 // pred_fallthru
        _
      %p3529 = scmp.le.s32.totalorder 2, %s20
      // Predicated region
      $region69: #{tpu_custom_call.1} parent=5 // pred_check
        %p3530 = pneg %p3529
      $region70: #{tpu_custom_call.1} parent=5 // pred_check_branch
        %3532 = sbr.rel (%p3530) target = $region72
      $region71: #{tpu_custom_call.1} parent=5 // pred_region
        %s3533 = ssub.s32 %s20, 2
        // Predicated region
        $region73: #{tpu_custom_call.1} parent=71 // pred_check
          %p3534 = pneg %p290
        $region74: #{tpu_custom_call.1} parent=71 // pred_check_branch
          %3536 = sbr.rel (%p3534) target = $region76
        $region75: #{tpu_custom_call.1} parent=71 // pred_region
          %s3537 = sand.u32 %s275, 1
          %s3538 = scalar_lea.sflag [#allocation3], %s3537
          %s3539 = sand.u32 %s275, 1
          %s3540 = smul.addr %s3539, 256
          %s3541 = scalar_lea.vmem [#allocation2], %s3540
          %3542 = dma.done %s3538, 4096
        $region76: #{tpu_custom_call.1} parent=71 // pred_fallthru
          _
      $region72: #{tpu_custom_call.1} parent=5 // pred_fallthru
        _
    $region6: #{tpu_custom_call.1} parent=1 // loop_footer
      %s24 = sadd.s32 1, %s20
    $region7: #{tpu_custom_call.1} parent=1 // loop_footer_branch
      %19 = sbr.rel target = $region3
    $region8: #{tpu_custom_call.1} parent=1 // loop_exit
      _
    %3543 = vsyncpa [#allocation3], 1
    %s3544 = scalar_lea.sflag [#allocation3], 1
    %3545 = vsyncpa %s3544, 1

</llo_original>
